<compile_context>
chip_gen: v7x
topology: tpu7x:2x2x1
jax: 0.10.0
libtpu: 0.0.40
codegen_flags: <defaults>
</compile_context>

<pallas_src>
import functools

import jax
import jax.numpy as jnp
from jax.experimental import pallas as pl
from jax.experimental.pallas import tpu as pltpu


def _elu(x):
    # F.elu with alpha=1.0
    return jnp.where(x > 0.0, x, jnp.exp(x) - 1.0)


def _encoder_kernel(x_ref, w1_ref, b1_ref, w2_ref, b2_ref, w3_ref, b3_ref, out_ref):
    # x_ref: (tb, Din); weights resident in VMEM for every grid step.
    x = x_ref[...]

    h1 = jnp.dot(x, w1_ref[...],
                 preferred_element_type=jnp.float32,
                 precision=jax.lax.Precision.HIGHEST) + b1_ref[...]
    h1 = _elu(h1)                                                 # (tb, 128)

    h2 = jnp.dot(h1, w2_ref[...],
                 preferred_element_type=jnp.float32,
                 precision=jax.lax.Precision.HIGHEST) + b2_ref[...]
    h2 = _elu(h2)                                                 # (tb, 64)

    out = jnp.dot(h2, w3_ref[...],
                  preferred_element_type=jnp.float32,
                  precision=jax.lax.Precision.HIGHEST) + b3_ref[...]
    out_ref[...] = out.astype(out_ref.dtype)                      # (tb, Dout)


def mnist_encoder(x, params, latent_dim, block_b=256):
    """x: (B, input_dim) f32. Returns (z: (B, latent_dim), eta: (B, eta_dim))."""
    w1, b1, w2, b2, w3, b3 = params
    B, d_in = x.shape
    d_out = w3.shape[1]

    tb = B if B <= block_b else block_b          # full batch if small, else tile
    grid = (pl.cdiv(B, tb),)

    def resident(arr):
        # Full-array block, same block for every grid step -> stays in VMEM.
        return pl.BlockSpec(arr.shape, lambda i: (0, 0))

    out = pl.pallas_call(
        _encoder_kernel,
        out_shape=jax.ShapeDtypeStruct((B, d_out), jnp.float32),
        grid_spec=pltpu.PrefetchScalarGridSpec(
            num_scalar_prefetch=0,
            grid=grid,
            in_specs=[
                pl.BlockSpec((tb, d_in), lambda i: (i, 0)),   # x, tiled over batch
                resident(w1), resident(b1),
                resident(w2), resident(b2),
                resident(w3), resident(b3),
            ],
            out_specs=pl.BlockSpec((tb, d_out), lambda i: (i, 0)),
        ),
        compiler_params=pltpu.CompilerParams(
            dimension_semantics=("parallel",)),    # shard batch tiles across TCs
    )(x, w1, b1, w2, b2, w3, b3)

    z = out[:, :latent_dim]
    eta = out[:, latent_dim:]
    return z, eta


def mnist_encoder_ref(x, params, latent_dim):
    """Pure-JAX reference (same precision) for correctness checking."""
    w1, b1, w2, b2, w3, b3 = params
    hp = jax.lax.Precision.HIGHEST
    h1 = jax.nn.elu(jnp.dot(x, w1, precision=hp) + b1)
    h2 = jax.nn.elu(jnp.dot(h1, w2, precision=hp) + b2)
    out = jnp.dot(h2, w3, precision=hp) + b3
    return out[:, :latent_dim], out[:, latent_dim:]


def init_params(key, input_dim, latent_dim, eta_dim, hidden_dim=None):
    """Kaiming-normal weights (a=0.01, fan_in) like the module's _init_weights,
    nn.Linear-style uniform biases. Weights stored transposed as (in, out) so
    out-features map to the 128-lane axis inside the kernel."""
    del hidden_dim  # unused by the module's forward (fc sizes are 128/64 fixed)
    a = 0.01
    gain = (2.0 / (1.0 + a * a)) ** 0.5
    d_out = latent_dim + eta_dim
    ks = jax.random.split(key, 6)

    def kaiming_w(k, fan_in, fan_out):
        return (gain / jnp.sqrt(float(fan_in))) * jax.random.normal(
            k, (fan_in, fan_out), jnp.float32)

    def uniform_b(k, fan_in, fan_out):
        bound = 1.0 / jnp.sqrt(float(fan_in))
        return jax.random.uniform(k, (1, fan_out), jnp.float32, -bound, bound)

    w1 = kaiming_w(ks[0], input_dim, 128)
    b1 = uniform_b(ks[1], input_dim, 128)
    w2 = kaiming_w(ks[2], 128, 64)
    b2 = uniform_b(ks[3], 128, 64)
    w3 = kaiming_w(ks[4], 64, d_out)
    b3 = uniform_b(ks[5], 64, d_out)
    return w1, b1, w2, b2, w3, b3


if __name__ == "__main__":
    key = jax.random.PRNGKey(0)
    k_param, k_x = jax.random.split(key)

    batch = 8
    input_dim = 784          # MNIST 28*28 flattened
    latent_dim = 16
    eta_dim = 4
    hidden_dim = 32          # accepted for API parity; unused by the forward

    params = init_params(k_param, input_dim, latent_dim, eta_dim, hidden_dim)
    x = jax.random.normal(k_x, (batch, input_dim), jnp.float32)

    encoder = jax.jit(functools.partial(mnist_encoder, latent_dim=latent_dim))
    z, eta = encoder(x, params)
    jax.block_until_ready((z, eta))

    z_ref, eta_ref = mnist_encoder_ref(x, params, latent_dim)
    assert z.shape == (batch, latent_dim), z.shape
    assert eta.shape == (batch, eta_dim), eta.shape
    assert jnp.allclose(z, z_ref, atol=1e-4, rtol=1e-4)
    assert jnp.allclose(eta, eta_ref, atol=1e-4, rtol=1e-4)

    print("KERNEL_OK")
</pallas_src>

<mosaic_0001>
module attributes {stable_mosaic.version = 11 : i64} {
  func.func @_encoder_kernel(%arg0: i32, %arg1: memref<8x784xf32, #tpu.memory_space<vmem>>, %arg2: memref<784x128xf32, #tpu.memory_space<vmem>>, %arg3: memref<1x128xf32, #tpu.memory_space<vmem>>, %arg4: memref<128x64xf32, #tpu.memory_space<vmem>>, %arg5: memref<1x64xf32, #tpu.memory_space<vmem>>, %arg6: memref<64x20xf32, #tpu.memory_space<vmem>>, %arg7: memref<1x20xf32, #tpu.memory_space<vmem>>, %arg8: memref<8x20xf32, #tpu.memory_space<vmem>>) attributes {dimension_semantics = [#tpu.dimension_semantics<parallel>], iteration_bounds = array<i64: 1>, scalar_prefetch = 0 : i64, scratch_operands = 0 : i64, tpu.core_type = #tpu.core_type<tc>, window_params = [{transform_indices = @transform_0, window_bounds = array<i64: 8, 784>}, {pipeline_mode = #tpu.pipeline_mode<synchronous>, transform_indices = @transform_1, window_bounds = array<i64: 784, 128>}, {pipeline_mode = #tpu.pipeline_mode<synchronous>, transform_indices = @transform_2, window_bounds = array<i64: 1, 128>}, {pipeline_mode = #tpu.pipeline_mode<synchronous>, transform_indices = @transform_3, window_bounds = array<i64: 128, 64>}, {pipeline_mode = #tpu.pipeline_mode<synchronous>, transform_indices = @transform_4, window_bounds = array<i64: 1, 64>}, {pipeline_mode = #tpu.pipeline_mode<synchronous>, transform_indices = @transform_5, window_bounds = array<i64: 64, 20>}, {pipeline_mode = #tpu.pipeline_mode<synchronous>, transform_indices = @transform_6, window_bounds = array<i64: 1, 20>}, {transform_indices = @transform_7, window_bounds = array<i64: 8, 20>}]} {
    %c0 = arith.constant 0 : index
    %c0_0 = arith.constant 0 : index
    %0 = vector.load %arg1[%c0, %c0_0] : memref<8x784xf32, #tpu.memory_space<vmem>>, vector<8x784xf32>
    %c0_1 = arith.constant 0 : index
    %c0_2 = arith.constant 0 : index
    %1 = vector.load %arg2[%c0_1, %c0_2] : memref<784x128xf32, #tpu.memory_space<vmem>>, vector<784x128xf32>
    %cst = arith.constant dense<0.000000e+00> : vector<8x128xf32>
    %2 = tpu.matmul %0, %1, %cst {dimension_numbers = #tpu.dot_dimension_numbers<[1], [0], [0], [1], [0, 0, 1, 1], [], []>, precision = #tpu.contract_precision<fp32>} : vector<8x784xf32>, vector<784x128xf32>, vector<8x128xf32> -> vector<8x128xf32>
    %c0_3 = arith.constant 0 : index
    %c0_4 = arith.constant 0 : index
    %3 = vector.load %arg3[%c0_3, %c0_4] : memref<1x128xf32, #tpu.memory_space<vmem>>, vector<1x128xf32>
    %4 = vector.broadcast %3 : vector<1x128xf32> to vector<8x128xf32>
    %5 = arith.addf %2, %4 : vector<8x128xf32>
    %cst_5 = arith.constant 0.000000e+00 : f32
    %6 = vector.broadcast %cst_5 : f32 to vector<8x128xf32>
    %7 = arith.cmpf ogt, %5, %6 : vector<8x128xf32>
    %8 = math.exp %5 : vector<8x128xf32>
    %cst_6 = arith.constant 1.000000e+00 : f32
    %9 = vector.broadcast %cst_6 : f32 to vector<8x128xf32>
    %10 = arith.subf %8, %9 : vector<8x128xf32>
    %11 = arith.select %7, %5, %10 : vector<8x128xi1>, vector<8x128xf32>
    %c0_7 = arith.constant 0 : index
    %c0_8 = arith.constant 0 : index
    %12 = vector.load %arg4[%c0_7, %c0_8] : memref<128x64xf32, #tpu.memory_space<vmem>>, vector<128x64xf32>
    %cst_9 = arith.constant dense<0.000000e+00> : vector<8x64xf32>
    %13 = tpu.matmul %11, %12, %cst_9 {dimension_numbers = #tpu.dot_dimension_numbers<[1], [0], [0], [1], [0, 0, 1, 1], [], []>, precision = #tpu.contract_precision<fp32>} : vector<8x128xf32>, vector<128x64xf32>, vector<8x64xf32> -> vector<8x64xf32>
    %c0_10 = arith.constant 0 : index
    %c0_11 = arith.constant 0 : index
    %14 = vector.load %arg5[%c0_10, %c0_11] : memref<1x64xf32, #tpu.memory_space<vmem>>, vector<1x64xf32>
    %15 = vector.broadcast %14 : vector<1x64xf32> to vector<8x64xf32>
    %16 = arith.addf %13, %15 : vector<8x64xf32>
    %cst_12 = arith.constant 0.000000e+00 : f32
    %17 = vector.broadcast %cst_12 : f32 to vector<8x64xf32>
    %18 = arith.cmpf ogt, %16, %17 : vector<8x64xf32>
    %19 = math.exp %16 : vector<8x64xf32>
    %cst_13 = arith.constant 1.000000e+00 : f32
    %20 = vector.broadcast %cst_13 : f32 to vector<8x64xf32>
    %21 = arith.subf %19, %20 : vector<8x64xf32>
    %22 = arith.select %18, %16, %21 : vector<8x64xi1>, vector<8x64xf32>
    %c0_14 = arith.constant 0 : index
    %c0_15 = arith.constant 0 : index
    %23 = vector.load %arg6[%c0_14, %c0_15] : memref<64x20xf32, #tpu.memory_space<vmem>>, vector<64x20xf32>
    %cst_16 = arith.constant dense<0.000000e+00> : vector<8x20xf32>
    %24 = tpu.matmul %22, %23, %cst_16 {dimension_numbers = #tpu.dot_dimension_numbers<[1], [0], [0], [1], [0, 0, 1, 1], [], []>, precision = #tpu.contract_precision<fp32>} : vector<8x64xf32>, vector<64x20xf32>, vector<8x20xf32> -> vector<8x20xf32>
    %c0_17 = arith.constant 0 : index
    %c0_18 = arith.constant 0 : index
    %25 = vector.load %arg7[%c0_17, %c0_18] : memref<1x20xf32, #tpu.memory_space<vmem>>, vector<1x20xf32>
    %26 = vector.broadcast %25 : vector<1x20xf32> to vector<8x20xf32>
    %27 = arith.addf %24, %26 : vector<8x20xf32>
    %c0_19 = arith.constant 0 : index
    %c0_20 = arith.constant 0 : index
    %28 = vector.load %arg8[%c0_19, %c0_20] : memref<8x20xf32, #tpu.memory_space<vmem>>, vector<8x20xf32>
    tpu.vector_store %arg8[%c0_19, %c0_20], %27 {strides = array<i32>} : memref<8x20xf32, #tpu.memory_space<vmem>>, vector<8x20xf32>,
    return
  }
  func.func @transform_0(%arg0: i32) -> (i32, i32) {
    %c0_i32 = arith.constant 0 : i32
    %c0_i32_0 = arith.constant 0 : i32
    return %arg0, %c0_i32 : i32, i32
  }
  func.func @transform_1(%arg0: i32) -> (i32, i32) {
    %c0_i32 = arith.constant 0 : i32
    %c0_i32_0 = arith.constant 0 : i32
    %c0_i32_1 = arith.constant 0 : i32
    return %c0_i32, %c0_i32_0 : i32, i32
  }
  func.func @transform_2(%arg0: i32) -> (i32, i32) {
    %c0_i32 = arith.constant 0 : i32
    %c0_i32_0 = arith.constant 0 : i32
    %c0_i32_1 = arith.constant 0 : i32
    return %c0_i32, %c0_i32_0 : i32, i32
  }
  func.func @transform_3(%arg0: i32) -> (i32, i32) {
    %c0_i32 = arith.constant 0 : i32
    %c0_i32_0 = arith.constant 0 : i32
    %c0_i32_1 = arith.constant 0 : i32
    return %c0_i32, %c0_i32_0 : i32, i32
  }
  func.func @transform_4(%arg0: i32) -> (i32, i32) {
    %c0_i32 = arith.constant 0 : i32
    %c0_i32_0 = arith.constant 0 : i32
    %c0_i32_1 = arith.constant 0 : i32
    return %c0_i32, %c0_i32_0 : i32, i32
  }
  func.func @transform_5(%arg0: i32) -> (i32, i32) {
    %c0_i32 = arith.constant 0 : i32
    %c0_i32_0 = arith.constant 0 : i32
    %c0_i32_1 = arith.constant 0 : i32
    return %c0_i32, %c0_i32_0 : i32, i32
  }
  func.func @transform_6(%arg0: i32) -> (i32, i32) {
    %c0_i32 = arith.constant 0 : i32
    %c0_i32_0 = arith.constant 0 : i32
    %c0_i32_1 = arith.constant 0 : i32
    return %c0_i32, %c0_i32_0 : i32, i32
  }
  func.func @transform_7(%arg0: i32) -> (i32, i32) {
    %c0_i32 = arith.constant 0 : i32
    %c0_i32_0 = arith.constant 0 : i32
    return %arg0, %c0_i32 : i32, i32
  }
}

</mosaic_0001>

<llo_original>
// kernel: mnist_encoder.1
$region0: #{mnist_encoder.1}
  #allocation0 [shape = 'u32[]', space=smem, size = 0x4, offset = 0x4, fixed_abs, tag = 'smem constant byte address 0x4 - core index']
  #allocation1 [shape = 'u32[144,128]{1,0:T(1,128)}', space=vmem, size = 0x12000, scoped, tag = 'internal scratch']
  %s0 = inlined_call_operand.vmem [shape: f32[8,784], index: 0, kind: input, shape index: {}]
  %s1 = inlined_call_operand.hbm [shape: f32[784,128], index: 1, kind: input, shape index: {}]
  %s2 = inlined_call_operand.vmem [shape: f32[1,128], index: 2, kind: input, shape index: {}]
  %s3 = inlined_call_operand.vmem [shape: f32[128,64], index: 3, kind: input, shape index: {}]
  %s4 = inlined_call_operand.vmem [shape: f32[1,64], index: 4, kind: input, shape index: {}]
  %s5 = inlined_call_operand.vmem [shape: f32[64,20], index: 5, kind: input, shape index: {}]
  %s6 = inlined_call_operand.vmem [shape: f32[1,20], index: 6, kind: input, shape index: {}]
  %s7 = inlined_call_operand.vmem [shape: f32[8,20], index: 7, kind: output, shape index: {}]
  %s8 = sld [smem:[#allocation0]]
  $region42: #{mnist_encoder.1} parent=0
    _
  %s10 = ssub.s32 1, %s8
  %s11 = scalar_select 0, %s10, %s8
  $region1: #{mnist_encoder.1} parent=0
    #allocation2 [shape = 'u8[401408]{0}', space=vmem, size = 0x62000, scoped, tag = 'input window, operand 1, single buffered']
    #allocation3 [shape = 's32[1]{0}', space=sflag, size = 0x4, scoped, tag = 'scoped memory for mnist_encoder.1']
    %12 = vsyncpa [#allocation3], 0
    // Predicated region
    $region2: #{mnist_encoder.1} parent=1 // pred_check
      _
    $region3: #{mnist_encoder.1} parent=1 // pred_check_branch
      %14 = sbr.rel (0) target = $region5
    $region4: #{mnist_encoder.1} parent=1 // pred_region
      _
    $region5: #{mnist_encoder.1} parent=1 // pred_fallthru
      _
    // Predicated region
    $region6: #{mnist_encoder.1} parent=1 // pred_check
      _
    $region7: #{mnist_encoder.1} parent=1 // pred_check_branch
      %16 = sbr.rel (0) target = $region9
    $region8: #{mnist_encoder.1} parent=1 // pred_region
      %s18 = ssub.s32 12544, 12544
      %19 = vsyncadd [#allocation3], %s18
      %s20 = sshll.u32 [#allocation2], 4
      %s21 = int_to_ptr.vmem [resolvable:$true] %s20
      %26 = dma.hbm_to_vmem [thread:$0]  %s1, 12544, %s21, [#allocation3], 128, 128, 8
    $region9: #{mnist_encoder.1} parent=1 // pred_fallthru
      _
    // Predicated region
    $region10: #{mnist_encoder.1} parent=1 // pred_check
      _
    $region11: #{mnist_encoder.1} parent=1 // pred_check_branch
      %28 = sbr.rel (0) target = $region13
    $region12: #{mnist_encoder.1} parent=1 // pred_region
      _
    $region13: #{mnist_encoder.1} parent=1 // pred_fallthru
      _
    // Predicated region
    $region14: #{mnist_encoder.1} parent=1 // pred_check
      _
    $region15: #{mnist_encoder.1} parent=1 // pred_check_branch
      %30 = sbr.rel (0) target = $region17
    $region16: #{mnist_encoder.1} parent=1 // pred_region
      _
    $region17: #{mnist_encoder.1} parent=1 // pred_fallthru
      _
    // Predicated region
    $region18: #{mnist_encoder.1} parent=1 // pred_check
      _
    $region19: #{mnist_encoder.1} parent=1 // pred_check_branch
      %32 = sbr.rel (0) target = $region21
    $region20: #{mnist_encoder.1} parent=1 // pred_region
      _
    $region21: #{mnist_encoder.1} parent=1 // pred_fallthru
      _
    // Predicated region
    $region22: #{mnist_encoder.1} parent=1 // pred_check
      _
    $region23: #{mnist_encoder.1} parent=1 // pred_check_branch
      %34 = sbr.rel (0) target = $region25
    $region24: #{mnist_encoder.1} parent=1 // pred_region
      _
    $region25: #{mnist_encoder.1} parent=1 // pred_fallthru
      _
    // Predicated region
    $region26: #{mnist_encoder.1} parent=1 // pred_check
      _
    $region27: #{mnist_encoder.1} parent=1 // pred_check_branch
      %36 = sbr.rel (0) target = $region29
    $region28: #{mnist_encoder.1} parent=1 // pred_region
      _
    $region29: #{mnist_encoder.1} parent=1 // pred_fallthru
      _
    // Predicated region
    $region30: #{mnist_encoder.1} parent=1 // pred_check
      _
    $region31: #{mnist_encoder.1} parent=1 // pred_check_branch
      %38 = sbr.rel (0) target = $region33
    $region32: #{mnist_encoder.1} parent=1 // pred_region
      %39 = dma.done [#allocation3], 12544
    $region33: #{mnist_encoder.1} parent=1 // pred_fallthru
      _
    %v40 = vld [vmem:[%s0] sm:$0xff]
    %v41 = vld [vmem:[%s0 + $0x8] sm:$0xff]
    %v42 = vld [vmem:[%s0 + $0x10] sm:$0xff]
    %v43 = vld [vmem:[%s0 + $0x18] sm:$0xff]
    %v44 = vld [vmem:[%s0 + $0x20] sm:$0xff]
    %v45 = vld [vmem:[%s0 + $0x28] sm:$0xff]
    %v46 = vld [vmem:[%s0 + $0x30] sm:$0xff]
    %v47 = vld [vmem:[#allocation2] sm:$0xff]
    %v48 = vld [vmem:[#allocation2 + $0x8] sm:$0xff]
    %v49 = vld [vmem:[#allocation2 + $0x10] sm:$0xff]
    %v50 = vld [vmem:[#allocation2 + $0x18] sm:$0xff]
    %v51 = vld [vmem:[#allocation2 + $0x20] sm:$0xff]
    %v52 = vld [vmem:[#allocation2 + $0x28] sm:$0xff]
    %v53 = vld [vmem:[#allocation2 + $0x30] sm:$0xff]
    %v54 = vld [vmem:[#allocation2 + $0x38] sm:$0xff]
    %v55 = vld [vmem:[#allocation2 + $0x40] sm:$0xff]
    %v56 = vld [vmem:[#allocation2 + $0x48] sm:$0xff]
    %v57 = vld [vmem:[#allocation2 + $0x50] sm:$0xff]
    %v58 = vld [vmem:[#allocation2 + $0x58] sm:$0xff]
    %v59 = vld [vmem:[#allocation2 + $0x60] sm:$0xff]
    %v60 = vld [vmem:[#allocation2 + $0x68] sm:$0xff]
    %v61 = vld [vmem:[#allocation2 + $0x70] sm:$0xff]
    %v62 = vld [vmem:[#allocation2 + $0x78] sm:$0xff]
    %v63 = vld [vmem:[#allocation2 + $0x80] sm:$0xff]
    %v64 = vld [vmem:[#allocation2 + $0x88] sm:$0xff]
    %v65 = vld [vmem:[#allocation2 + $0x90] sm:$0xff]
    %v66 = vld [vmem:[#allocation2 + $0x98] sm:$0xff]
    %v67 = vld [vmem:[#allocation2 + $0xa0] sm:$0xff]
    %v68 = vld [vmem:[#allocation2 + $0xa8] sm:$0xff]
    %v69 = vld [vmem:[#allocation2 + $0xb0] sm:$0xff]
    %v70 = vld [vmem:[#allocation2 + $0xb8] sm:$0xff]
    %v71 = vld [vmem:[#allocation2 + $0xc0] sm:$0xff]
    %v72 = vld [vmem:[#allocation2 + $0xc8] sm:$0xff]
    %v73 = vld [vmem:[#allocation2 + $0xd0] sm:$0xff]
    %v74 = vld [vmem:[#allocation2 + $0xd8] sm:$0xff]
    %v75 = vld [vmem:[#allocation2 + $0xe0] sm:$0xff]
    %v76 = vld [vmem:[#allocation2 + $0xe8] sm:$0xff]
    %v77 = vld [vmem:[#allocation2 + $0xf0] sm:$0xff]
    %v78 = vld [vmem:[#allocation2 + $0xf8] sm:$0xff]
    %v79 = vld [vmem:[#allocation2 + $0x100] sm:$0xff]
    %v80 = vld [vmem:[#allocation2 + $0x108] sm:$0xff]
    %v81 = vld [vmem:[#allocation2 + $0x110] sm:$0xff]
    %v82 = vld [vmem:[#allocation2 + $0x118] sm:$0xff]
    %v83 = vld [vmem:[#allocation2 + $0x120] sm:$0xff]
    %v84 = vld [vmem:[#allocation2 + $0x128] sm:$0xff]
    %v85 = vld [vmem:[#allocation2 + $0x130] sm:$0xff]
    %v86 = vld [vmem:[#allocation2 + $0x138] sm:$0xff]
    %v87 = vld [vmem:[#allocation2 + $0x140] sm:$0xff]
    %v88 = vld [vmem:[#allocation2 + $0x148] sm:$0xff]
    %v89 = vld [vmem:[#allocation2 + $0x150] sm:$0xff]
    %v90 = vld [vmem:[#allocation2 + $0x158] sm:$0xff]
    %v91 = vld [vmem:[#allocation2 + $0x160] sm:$0xff]
    %v92 = vld [vmem:[#allocation2 + $0x168] sm:$0xff]
    %v93 = vld [vmem:[#allocation2 + $0x170] sm:$0xff]
    %v94 = vld [vmem:[#allocation2 + $0x178] sm:$0xff]
    %v95 = vld [vmem:[#allocation2 + $0x180] sm:$0xff]
    %v96 = vld [vmem:[#allocation2 + $0x188] sm:$0xff]
    %v97 = vld [vmem:[#allocation2 + $0x190] sm:$0xff]
    %v98 = vld [vmem:[#allocation2 + $0x198] sm:$0xff]
    %v99 = vld [vmem:[#allocation2 + $0x1a0] sm:$0xff]
    %v100 = vld [vmem:[#allocation2 + $0x1a8] sm:$0xff]
    %v101 = vld [vmem:[#allocation2 + $0x1b0] sm:$0xff]
    %v102 = vld [vmem:[#allocation2 + $0x1b8] sm:$0xff]
    %v103 = vld [vmem:[#allocation2 + $0x1c0] sm:$0xff]
    %v104 = vld [vmem:[#allocation2 + $0x1c8] sm:$0xff]
    %v105 = vld [vmem:[#allocation2 + $0x1d0] sm:$0xff]
    %v106 = vld [vmem:[#allocation2 + $0x1d8] sm:$0xff]
    %v107 = vld [vmem:[#allocation2 + $0x1e0] sm:$0xff]
    %v108 = vld [vmem:[#allocation2 + $0x1e8] sm:$0xff]
    %v109 = vld [vmem:[#allocation2 + $0x1f0] sm:$0xff]
    %v110 = vld [vmem:[#allocation2 + $0x1f8] sm:$0xff]
    %v111 = vld [vmem:[#allocation2 + $0x200] sm:$0xff]
    %v112 = vld [vmem:[#allocation2 + $0x208] sm:$0xff]
    %v113 = vld [vmem:[#allocation2 + $0x210] sm:$0xff]
    %v114 = vld [vmem:[#allocation2 + $0x218] sm:$0xff]
    %v115 = vld [vmem:[#allocation2 + $0x220] sm:$0xff]
    %v116 = vld [vmem:[#allocation2 + $0x228] sm:$0xff]
    %v117 = vld [vmem:[#allocation2 + $0x230] sm:$0xff]
    %v118 = vld [vmem:[#allocation2 + $0x238] sm:$0xff]
    %v119 = vld [vmem:[#allocation2 + $0x240] sm:$0xff]
    %v120 = vld [vmem:[#allocation2 + $0x248] sm:$0xff]
    %v121 = vld [vmem:[#allocation2 + $0x250] sm:$0xff]
    %v122 = vld [vmem:[#allocation2 + $0x258] sm:$0xff]
    %v123 = vld [vmem:[#allocation2 + $0x260] sm:$0xff]
    %v124 = vld [vmem:[#allocation2 + $0x268] sm:$0xff]
    %v125 = vld [vmem:[#allocation2 + $0x270] sm:$0xff]
    %v126 = vld [vmem:[#allocation2 + $0x278] sm:$0xff]
    %v127 = vld [vmem:[#allocation2 + $0x280] sm:$0xff]
    %v128 = vld [vmem:[#allocation2 + $0x288] sm:$0xff]
    %v129 = vld [vmem:[#allocation2 + $0x290] sm:$0xff]
    %v130 = vld [vmem:[#allocation2 + $0x298] sm:$0xff]
    %v131 = vld [vmem:[#allocation2 + $0x2a0] sm:$0xff]
    %v132 = vld [vmem:[#allocation2 + $0x2a8] sm:$0xff]
    %v133 = vld [vmem:[#allocation2 + $0x2b0] sm:$0xff]
    %v134 = vld [vmem:[#allocation2 + $0x2b8] sm:$0xff]
    %v135 = vld [vmem:[#allocation2 + $0x2c0] sm:$0xff]
    %v136 = vld [vmem:[#allocation2 + $0x2c8] sm:$0xff]
    %v137 = vld [vmem:[#allocation2 + $0x2d0] sm:$0xff]
    %v138 = vld [vmem:[#allocation2 + $0x2d8] sm:$0xff]
    %v139 = vld [vmem:[#allocation2 + $0x2e0] sm:$0xff]
    %v140 = vld [vmem:[#allocation2 + $0x2e8] sm:$0xff]
    %v141 = vld [vmem:[#allocation2 + $0x2f0] sm:$0xff]
    %v142 = vld [vmem:[#allocation2 + $0x2f8] sm:$0xff]
    %v143 = vld [vmem:[#allocation2 + $0x300] sm:$0xff]
    %v144 = vld [vmem:[#allocation2 + $0x308] sm:$0xff]
    %v145 = vld [vmem:[%s2] sm:$0x1]
    %v147 = vlaneseq
    %v148 = vshrl.u32 %v147, 7
    %v149 = vsub.s32 0, %v148
    %v150 = vrot.slane %v145, %v149
    %vm152 = vcmask 130048
    %v154 = vsel %vm152, %v46, 0
    %156 = vmatprep.subr.mxu0 0.0
    %v157 = vand.u32 %v47, 4294901760
    %158 = vmatpush1.msra.mxu0 %v157
    %159 = vmatprep.subr.mxu0 0.0
    %v160 = vand.u32 %v48, 4294901760
    %161 = vmatpush1.msra.mxu0 %v160
    %162 = vmatprep.subr.mxu0 0.0
    %v163 = vand.u32 %v49, 4294901760
    %164 = vmatpush1.msra.mxu0 %v163
    %165 = vmatprep.subr.mxu0 0.0
    %v166 = vand.u32 %v50, 4294901760
    %167 = vmatpush1.msra.mxu0 %v166
    %168 = vmatprep.subr.mxu0 0.0
    %v169 = vand.u32 %v51, 4294901760
    %170 = vmatpush1.msra.mxu0 %v169
    %171 = vmatprep.subr.mxu0 0.0
    %v172 = vand.u32 %v52, 4294901760
    %173 = vmatpush1.msra.mxu0 %v172
    %174 = vmatprep.subr.mxu0 0.0
    %v175 = vand.u32 %v53, 4294901760
    %176 = vmatpush1.msra.mxu0 %v175
    %177 = vmatprep.subr.mxu0 0.0
    %v178 = vand.u32 %v54, 4294901760
    %179 = vmatpush1.msra.mxu0 %v178
    %180 = vmatprep.subr.mxu0 0.0
    %v181 = vand.u32 %v55, 4294901760
    %182 = vmatpush1.msra.mxu0 %v181
    %183 = vmatprep.subr.mxu0 0.0
    %v184 = vand.u32 %v56, 4294901760
    %185 = vmatpush1.msra.mxu0 %v184
    %186 = vmatprep.subr.mxu0 0.0
    %v187 = vand.u32 %v57, 4294901760
    %188 = vmatpush1.msra.mxu0 %v187
    %189 = vmatprep.subr.mxu0 0.0
    %v190 = vand.u32 %v58, 4294901760
    %191 = vmatpush1.msra.mxu0 %v190
    %192 = vmatprep.subr.mxu0 0.0
    %v193 = vand.u32 %v59, 4294901760
    %194 = vmatpush1.msra.mxu0 %v193
    %195 = vmatprep.subr.mxu0 0.0
    %v196 = vand.u32 %v60, 4294901760
    %197 = vmatpush1.msra.mxu0 %v196
    %198 = vmatprep.subr.mxu0 0.0
    %v199 = vand.u32 %v61, 4294901760
    %200 = vmatpush1.msra.mxu0 %v199
    %201 = vmatprep.subr.mxu0 0.0
    %v202 = vand.u32 %v62, 4294901760
    %203 = vmatpush1.msra.mxu0 %v202
    %204 = vmatprep.subr.mxu0 0.0
    %v205 = vand.u32 %v63, 4294901760
    %206 = vmatpush1.msra.mxu0 %v205
    %207 = vmatprep.subr.mxu0 0.0
    %v208 = vand.u32 %v64, 4294901760
    %209 = vmatpush1.msra.mxu0 %v208
    %210 = vmatprep.subr.mxu0 0.0
    %v211 = vand.u32 %v65, 4294901760
    %212 = vmatpush1.msra.mxu0 %v211
    %213 = vmatprep.subr.mxu0 0.0
    %v214 = vand.u32 %v66, 4294901760
    %215 = vmatpush1.msra.mxu0 %v214
    %216 = vmatprep.subr.mxu0 0.0
    %v217 = vand.u32 %v67, 4294901760
    %218 = vmatpush1.msra.mxu0 %v217
    %219 = vmatprep.subr.mxu0 0.0
    %v220 = vand.u32 %v68, 4294901760
    %221 = vmatpush1.msra.mxu0 %v220
    %222 = vmatprep.subr.mxu0 0.0
    %v223 = vand.u32 %v69, 4294901760
    %224 = vmatpush1.msra.mxu0 %v223
    %225 = vmatprep.subr.mxu0 0.0
    %v226 = vand.u32 %v70, 4294901760
    %227 = vmatpush1.msra.mxu0 %v226
    %228 = vmatprep.subr.mxu0 0.0
    %v229 = vand.u32 %v71, 4294901760
    %230 = vmatpush1.msra.mxu0 %v229
    %231 = vmatprep.subr.mxu0 0.0
    %v232 = vand.u32 %v72, 4294901760
    %233 = vmatpush1.msra.mxu0 %v232
    %234 = vmatprep.subr.mxu0 0.0
    %v235 = vand.u32 %v73, 4294901760
    %236 = vmatpush1.msra.mxu0 %v235
    %237 = vmatprep.subr.mxu0 0.0
    %v238 = vand.u32 %v74, 4294901760
    %239 = vmatpush1.msra.mxu0 %v238
    %240 = vmatprep.subr.mxu0 0.0
    %v241 = vand.u32 %v75, 4294901760
    %242 = vmatpush1.msra.mxu0 %v241
    %243 = vmatprep.subr.mxu0 0.0
    %v244 = vand.u32 %v76, 4294901760
    %245 = vmatpush1.msra.mxu0 %v244
    %246 = vmatprep.subr.mxu0 0.0
    %v247 = vand.u32 %v77, 4294901760
    %248 = vmatpush1.msra.mxu0 %v247
    %249 = vmatprep.subr.mxu0 0.0
    %v250 = vand.u32 %v78, 4294901760
    %251 = vmatpush1.msra.mxu0 %v250
    %v252 = vand.u32 %v41, 4294901760
    %v253 = vsub.f32 %v41, %v252
    %v254 = vand.u32 %v253, 4294901760
    %v255 = vsub.f32 %v253, %v254
    %v256 = vand.u32 %v255, 4294901760
    %257 = vmatprep.mubr.f32.mxu0 %v256
    %v258 = vand.u32 %v40, 4294901760
    %v259 = vsub.f32 %v40, %v258
    %v260 = vand.u32 %v259, 4294901760
    %v261 = vsub.f32 %v259, %v260
    %v262 = vand.u32 %v261, 4294901760
    %263 = vmatmul.mubr.f32.gmra.mrb[0].mxu0 %v262
    %v264 = vpop.f32.mrb[0].mxu0
    %v265 = vadd.f32 %v150, %v264
    %v266 = vpop.f32.mrb[0].mxu0
    %267 = vdwg.mxu0
    %268 = vmatprep.subr.mxu0 0.0
    %v269 = vand.u32 %v47, 4294901760
    %v270 = vsub.f32 %v47, %v269
    %v271 = vand.u32 %v270, 4294901760
    %v272 = vsub.f32 %v270, %v271
    %v273 = vand.u32 %v272, 4294901760
    %274 = vmatpush1.msra.mxu0 %v273
    %275 = vmatprep.subr.mxu0 0.0
    %v276 = vand.u32 %v48, 4294901760
    %v277 = vsub.f32 %v48, %v276
    %v278 = vand.u32 %v277, 4294901760
    %v279 = vsub.f32 %v277, %v278
    %v280 = vand.u32 %v279, 4294901760
    %281 = vmatpush1.msra.mxu0 %v280
    %282 = vmatprep.subr.mxu0 0.0
    %v283 = vand.u32 %v49, 4294901760
    %v284 = vsub.f32 %v49, %v283
    %v285 = vand.u32 %v284, 4294901760
    %v286 = vsub.f32 %v284, %v285
    %v287 = vand.u32 %v286, 4294901760
    %288 = vmatpush1.msra.mxu0 %v287
    %289 = vmatprep.subr.mxu0 0.0
    %v290 = vand.u32 %v50, 4294901760
    %v291 = vsub.f32 %v50, %v290
    %v292 = vand.u32 %v291, 4294901760
    %v293 = vsub.f32 %v291, %v292
    %v294 = vand.u32 %v293, 4294901760
    %295 = vmatpush1.msra.mxu0 %v294
    %296 = vmatprep.subr.mxu0 0.0
    %v297 = vand.u32 %v51, 4294901760
    %v298 = vsub.f32 %v51, %v297
    %v299 = vand.u32 %v298, 4294901760
    %v300 = vsub.f32 %v298, %v299
    %v301 = vand.u32 %v300, 4294901760
    %302 = vmatpush1.msra.mxu0 %v301
    %303 = vmatprep.subr.mxu0 0.0
    %v304 = vand.u32 %v52, 4294901760
    %v305 = vsub.f32 %v52, %v304
    %v306 = vand.u32 %v305, 4294901760
    %v307 = vsub.f32 %v305, %v306
    %v308 = vand.u32 %v307, 4294901760
    %309 = vmatpush1.msra.mxu0 %v308
    %310 = vmatprep.subr.mxu0 0.0
    %v311 = vand.u32 %v53, 4294901760
    %v312 = vsub.f32 %v53, %v311
    %v313 = vand.u32 %v312, 4294901760
    %v314 = vsub.f32 %v312, %v313
    %v315 = vand.u32 %v314, 4294901760
    %316 = vmatpush1.msra.mxu0 %v315
    %317 = vmatprep.subr.mxu0 0.0
    %v318 = vand.u32 %v54, 4294901760
    %v319 = vsub.f32 %v54, %v318
    %v320 = vand.u32 %v319, 4294901760
    %v321 = vsub.f32 %v319, %v320
    %v322 = vand.u32 %v321, 4294901760
    %323 = vmatpush1.msra.mxu0 %v322
    %324 = vmatprep.subr.mxu0 0.0
    %v325 = vand.u32 %v55, 4294901760
    %v326 = vsub.f32 %v55, %v325
    %v327 = vand.u32 %v326, 4294901760
    %v328 = vsub.f32 %v326, %v327
    %v329 = vand.u32 %v328, 4294901760
    %330 = vmatpush1.msra.mxu0 %v329
    %331 = vmatprep.subr.mxu0 0.0
    %v332 = vand.u32 %v56, 4294901760
    %v333 = vsub.f32 %v56, %v332
    %v334 = vand.u32 %v333, 4294901760
    %v335 = vsub.f32 %v333, %v334
    %v336 = vand.u32 %v335, 4294901760
    %337 = vmatpush1.msra.mxu0 %v336
    %338 = vmatprep.subr.mxu0 0.0
    %v339 = vand.u32 %v57, 4294901760
    %v340 = vsub.f32 %v57, %v339
    %v341 = vand.u32 %v340, 4294901760
    %v342 = vsub.f32 %v340, %v341
    %v343 = vand.u32 %v342, 4294901760
    %344 = vmatpush1.msra.mxu0 %v343
    %345 = vmatprep.subr.mxu0 0.0
    %v346 = vand.u32 %v58, 4294901760
    %v347 = vsub.f32 %v58, %v346
    %v348 = vand.u32 %v347, 4294901760
    %v349 = vsub.f32 %v347, %v348
    %v350 = vand.u32 %v349, 4294901760
    %351 = vmatpush1.msra.mxu0 %v350
    %352 = vmatprep.subr.mxu0 0.0
    %v353 = vand.u32 %v59, 4294901760
    %v354 = vsub.f32 %v59, %v353
    %v355 = vand.u32 %v354, 4294901760
    %v356 = vsub.f32 %v354, %v355
    %v357 = vand.u32 %v356, 4294901760
    %358 = vmatpush1.msra.mxu0 %v357
    %359 = vmatprep.subr.mxu0 0.0
    %v360 = vand.u32 %v60, 4294901760
    %v361 = vsub.f32 %v60, %v360
    %v362 = vand.u32 %v361, 4294901760
    %v363 = vsub.f32 %v361, %v362
    %v364 = vand.u32 %v363, 4294901760
    %365 = vmatpush1.msra.mxu0 %v364
    %366 = vmatprep.subr.mxu0 0.0
    %v367 = vand.u32 %v61, 4294901760
    %v368 = vsub.f32 %v61, %v367
    %v369 = vand.u32 %v368, 4294901760
    %v370 = vsub.f32 %v368, %v369
    %v371 = vand.u32 %v370, 4294901760
    %372 = vmatpush1.msra.mxu0 %v371
    %373 = vmatprep.subr.mxu0 0.0
    %v374 = vand.u32 %v62, 4294901760
    %v375 = vsub.f32 %v62, %v374
    %v376 = vand.u32 %v375, 4294901760
    %v377 = vsub.f32 %v375, %v376
    %v378 = vand.u32 %v377, 4294901760
    %379 = vmatpush1.msra.mxu0 %v378
    %380 = vmatprep.subr.mxu0 0.0
    %v381 = vand.u32 %v63, 4294901760
    %v382 = vsub.f32 %v63, %v381
    %v383 = vand.u32 %v382, 4294901760
    %v384 = vsub.f32 %v382, %v383
    %v385 = vand.u32 %v384, 4294901760
    %386 = vmatpush1.msra.mxu0 %v385
    %387 = vmatprep.subr.mxu0 0.0
    %v388 = vand.u32 %v64, 4294901760
    %v389 = vsub.f32 %v64, %v388
    %v390 = vand.u32 %v389, 4294901760
    %v391 = vsub.f32 %v389, %v390
    %v392 = vand.u32 %v391, 4294901760
    %393 = vmatpush1.msra.mxu0 %v392
    %394 = vmatprep.subr.mxu0 0.0
    %v395 = vand.u32 %v65, 4294901760
    %v396 = vsub.f32 %v65, %v395
    %v397 = vand.u32 %v396, 4294901760
    %v398 = vsub.f32 %v396, %v397
    %v399 = vand.u32 %v398, 4294901760
    %400 = vmatpush1.msra.mxu0 %v399
    %401 = vmatprep.subr.mxu0 0.0
    %v402 = vand.u32 %v66, 4294901760
    %v403 = vsub.f32 %v66, %v402
    %v404 = vand.u32 %v403, 4294901760
    %v405 = vsub.f32 %v403, %v404
    %v406 = vand.u32 %v405, 4294901760
    %407 = vmatpush1.msra.mxu0 %v406
    %408 = vmatprep.subr.mxu0 0.0
    %v409 = vand.u32 %v67, 4294901760
    %v410 = vsub.f32 %v67, %v409
    %v411 = vand.u32 %v410, 4294901760
    %v412 = vsub.f32 %v410, %v411
    %v413 = vand.u32 %v412, 4294901760
    %414 = vmatpush1.msra.mxu0 %v413
    %415 = vmatprep.subr.mxu0 0.0
    %v416 = vand.u32 %v68, 4294901760
    %v417 = vsub.f32 %v68, %v416
    %v418 = vand.u32 %v417, 4294901760
    %v419 = vsub.f32 %v417, %v418
    %v420 = vand.u32 %v419, 4294901760
    %421 = vmatpush1.msra.mxu0 %v420
    %422 = vmatprep.subr.mxu0 0.0
    %v423 = vand.u32 %v69, 4294901760
    %v424 = vsub.f32 %v69, %v423
    %v425 = vand.u32 %v424, 4294901760
    %v426 = vsub.f32 %v424, %v425
    %v427 = vand.u32 %v426, 4294901760
    %428 = vmatpush1.msra.mxu0 %v427
    %429 = vmatprep.subr.mxu0 0.0
    %v430 = vand.u32 %v70, 4294901760
    %v431 = vsub.f32 %v70, %v430
    %v432 = vand.u32 %v431, 4294901760
    %v433 = vsub.f32 %v431, %v432
    %v434 = vand.u32 %v433, 4294901760
    %435 = vmatpush1.msra.mxu0 %v434
    %436 = vmatprep.subr.mxu0 0.0
    %v437 = vand.u32 %v71, 4294901760
    %v438 = vsub.f32 %v71, %v437
    %v439 = vand.u32 %v438, 4294901760
    %v440 = vsub.f32 %v438, %v439
    %v441 = vand.u32 %v440, 4294901760
    %442 = vmatpush1.msra.mxu0 %v441
    %443 = vmatprep.subr.mxu0 0.0
    %v444 = vand.u32 %v72, 4294901760
    %v445 = vsub.f32 %v72, %v444
    %v446 = vand.u32 %v445, 4294901760
    %v447 = vsub.f32 %v445, %v446
    %v448 = vand.u32 %v447, 4294901760
    %449 = vmatpush1.msra.mxu0 %v448
    %450 = vmatprep.subr.mxu0 0.0
    %v451 = vand.u32 %v73, 4294901760
    %v452 = vsub.f32 %v73, %v451
    %v453 = vand.u32 %v452, 4294901760
    %v454 = vsub.f32 %v452, %v453
    %v455 = vand.u32 %v454, 4294901760
    %456 = vmatpush1.msra.mxu0 %v455
    %457 = vmatprep.subr.mxu0 0.0
    %v458 = vand.u32 %v74, 4294901760
    %v459 = vsub.f32 %v74, %v458
    %v460 = vand.u32 %v459, 4294901760
    %v461 = vsub.f32 %v459, %v460
    %v462 = vand.u32 %v461, 4294901760
    %463 = vmatpush1.msra.mxu0 %v462
    %464 = vmatprep.subr.mxu0 0.0
    %v465 = vand.u32 %v75, 4294901760
    %v466 = vsub.f32 %v75, %v465
    %v467 = vand.u32 %v466, 4294901760
    %v468 = vsub.f32 %v466, %v467
    %v469 = vand.u32 %v468, 4294901760
    %470 = vmatpush1.msra.mxu0 %v469
    %471 = vmatprep.subr.mxu0 0.0
    %v472 = vand.u32 %v76, 4294901760
    %v473 = vsub.f32 %v76, %v472
    %v474 = vand.u32 %v473, 4294901760
    %v475 = vsub.f32 %v473, %v474
    %v476 = vand.u32 %v475, 4294901760
    %477 = vmatpush1.msra.mxu0 %v476
    %478 = vmatprep.subr.mxu0 0.0
    %v479 = vand.u32 %v77, 4294901760
    %v480 = vsub.f32 %v77, %v479
    %v481 = vand.u32 %v480, 4294901760
    %v482 = vsub.f32 %v480, %v481
    %v483 = vand.u32 %v482, 4294901760
    %484 = vmatpush1.msra.mxu0 %v483
    %485 = vmatprep.subr.mxu0 0.0
    %v486 = vand.u32 %v78, 4294901760
    %v487 = vsub.f32 %v78, %v486
    %v488 = vand.u32 %v487, 4294901760
    %v489 = vsub.f32 %v487, %v488
    %v490 = vand.u32 %v489, 4294901760
    %491 = vmatpush1.msra.mxu0 %v490
    %v492 = vand.u32 %v41, 4294901760
    %493 = vmatprep.mubr.f32.mxu0 %v492
    %v494 = vand.u32 %v40, 4294901760
    %495 = vmatmul.mubr.f32.gmra.mrb[0].mxu0 %v494
    %v496 = vpop.f32.mrb[0].mxu0
    %v497 = vadd.f32 %v265, %v496
    %v498 = vpop.f32.mrb[0].mxu0
    %499 = vdwg.mxu0
    %500 = vmatprep.subr.mxu0 0.0
    %v501 = vand.u32 %v47, 4294901760
    %v502 = vsub.f32 %v47, %v501
    %503 = vmatpush1.msra.mxu0 %v502
    %504 = vmatprep.subr.mxu0 0.0
    %v505 = vand.u32 %v48, 4294901760
    %v506 = vsub.f32 %v48, %v505
    %507 = vmatpush1.msra.mxu0 %v506
    %508 = vmatprep.subr.mxu0 0.0
    %v509 = vand.u32 %v49, 4294901760
    %v510 = vsub.f32 %v49, %v509
    %511 = vmatpush1.msra.mxu0 %v510
    %512 = vmatprep.subr.mxu0 0.0
    %v513 = vand.u32 %v50, 4294901760
    %v514 = vsub.f32 %v50, %v513
    %515 = vmatpush1.msra.mxu0 %v514
    %516 = vmatprep.subr.mxu0 0.0
    %v517 = vand.u32 %v51, 4294901760
    %v518 = vsub.f32 %v51, %v517
    %519 = vmatpush1.msra.mxu0 %v518
    %520 = vmatprep.subr.mxu0 0.0
    %v521 = vand.u32 %v52, 4294901760
    %v522 = vsub.f32 %v52, %v521
    %523 = vmatpush1.msra.mxu0 %v522
    %524 = vmatprep.subr.mxu0 0.0
    %v525 = vand.u32 %v53, 4294901760
    %v526 = vsub.f32 %v53, %v525
    %527 = vmatpush1.msra.mxu0 %v526
    %528 = vmatprep.subr.mxu0 0.0
    %v529 = vand.u32 %v54, 4294901760
    %v530 = vsub.f32 %v54, %v529
    %531 = vmatpush1.msra.mxu0 %v530
    %532 = vmatprep.subr.mxu0 0.0
    %v533 = vand.u32 %v55, 4294901760
    %v534 = vsub.f32 %v55, %v533
    %535 = vmatpush1.msra.mxu0 %v534
    %536 = vmatprep.subr.mxu0 0.0
    %v537 = vand.u32 %v56, 4294901760
    %v538 = vsub.f32 %v56, %v537
    %539 = vmatpush1.msra.mxu0 %v538
    %540 = vmatprep.subr.mxu0 0.0
    %v541 = vand.u32 %v57, 4294901760
    %v542 = vsub.f32 %v57, %v541
    %543 = vmatpush1.msra.mxu0 %v542
    %544 = vmatprep.subr.mxu0 0.0
    %v545 = vand.u32 %v58, 4294901760
    %v546 = vsub.f32 %v58, %v545
    %547 = vmatpush1.msra.mxu0 %v546
    %548 = vmatprep.subr.mxu0 0.0
    %v549 = vand.u32 %v59, 4294901760
    %v550 = vsub.f32 %v59, %v549
    %551 = vmatpush1.msra.mxu0 %v550
    %552 = vmatprep.subr.mxu0 0.0
    %v553 = vand.u32 %v60, 4294901760
    %v554 = vsub.f32 %v60, %v553
    %555 = vmatpush1.msra.mxu0 %v554
    %556 = vmatprep.subr.mxu0 0.0
    %v557 = vand.u32 %v61, 4294901760
    %v558 = vsub.f32 %v61, %v557
    %559 = vmatpush1.msra.mxu0 %v558
    %560 = vmatprep.subr.mxu0 0.0
    %v561 = vand.u32 %v62, 4294901760
    %v562 = vsub.f32 %v62, %v561
    %563 = vmatpush1.msra.mxu0 %v562
    %564 = vmatprep.subr.mxu0 0.0
    %v565 = vand.u32 %v63, 4294901760
    %v566 = vsub.f32 %v63, %v565
    %567 = vmatpush1.msra.mxu0 %v566
    %568 = vmatprep.subr.mxu0 0.0
    %v569 = vand.u32 %v64, 4294901760
    %v570 = vsub.f32 %v64, %v569
    %571 = vmatpush1.msra.mxu0 %v570
    %572 = vmatprep.subr.mxu0 0.0
    %v573 = vand.u32 %v65, 4294901760
    %v574 = vsub.f32 %v65, %v573
    %575 = vmatpush1.msra.mxu0 %v574
    %576 = vmatprep.subr.mxu0 0.0
    %v577 = vand.u32 %v66, 4294901760
    %v578 = vsub.f32 %v66, %v577
    %579 = vmatpush1.msra.mxu0 %v578
    %580 = vmatprep.subr.mxu0 0.0
    %v581 = vand.u32 %v67, 4294901760
    %v582 = vsub.f32 %v67, %v581
    %583 = vmatpush1.msra.mxu0 %v582
    %584 = vmatprep.subr.mxu0 0.0
    %v585 = vand.u32 %v68, 4294901760
    %v586 = vsub.f32 %v68, %v585
    %587 = vmatpush1.msra.mxu0 %v586
    %588 = vmatprep.subr.mxu0 0.0
    %v589 = vand.u32 %v69, 4294901760
    %v590 = vsub.f32 %v69, %v589
    %591 = vmatpush1.msra.mxu0 %v590
    %592 = vmatprep.subr.mxu0 0.0
    %v593 = vand.u32 %v70, 4294901760
    %v594 = vsub.f32 %v70, %v593
    %595 = vmatpush1.msra.mxu0 %v594
    %596 = vmatprep.subr.mxu0 0.0
    %v597 = vand.u32 %v71, 4294901760
    %v598 = vsub.f32 %v71, %v597
    %599 = vmatpush1.msra.mxu0 %v598
    %600 = vmatprep.subr.mxu0 0.0
    %v601 = vand.u32 %v72, 4294901760
    %v602 = vsub.f32 %v72, %v601
    %603 = vmatpush1.msra.mxu0 %v602
    %604 = vmatprep.subr.mxu0 0.0
    %v605 = vand.u32 %v73, 4294901760
    %v606 = vsub.f32 %v73, %v605
    %607 = vmatpush1.msra.mxu0 %v606
    %608 = vmatprep.subr.mxu0 0.0
    %v609 = vand.u32 %v74, 4294901760
    %v610 = vsub.f32 %v74, %v609
    %611 = vmatpush1.msra.mxu0 %v610
    %612 = vmatprep.subr.mxu0 0.0
    %v613 = vand.u32 %v75, 4294901760
    %v614 = vsub.f32 %v75, %v613
    %615 = vmatpush1.msra.mxu0 %v614
    %616 = vmatprep.subr.mxu0 0.0
    %v617 = vand.u32 %v76, 4294901760
    %v618 = vsub.f32 %v76, %v617
    %619 = vmatpush1.msra.mxu0 %v618
    %620 = vmatprep.subr.mxu0 0.0
    %v621 = vand.u32 %v77, 4294901760
    %v622 = vsub.f32 %v77, %v621
    %623 = vmatpush1.msra.mxu0 %v622
    %624 = vmatprep.subr.mxu0 0.0
    %v625 = vand.u32 %v78, 4294901760
    %v626 = vsub.f32 %v78, %v625
    %627 = vmatpush1.msra.mxu0 %v626
    %v628 = vand.u32 %v41, 4294901760
    %v629 = vsub.f32 %v41, %v628
    %630 = vmatprep.mubr.f32.mxu0 %v629
    %v631 = vand.u32 %v40, 4294901760
    %v632 = vsub.f32 %v40, %v631
    %633 = vmatmul.mubr.f32.gmra.mrb[0].mxu0 %v632
    %v634 = vpop.f32.mrb[0].mxu0
    %v635 = vadd.f32 %v497, %v634
    %v636 = vpop.f32.mrb[0].mxu0
    %637 = vdwg.mxu0
    %638 = vmatprep.subr.mxu0 0.0
    %v639 = vand.u32 %v47, 4294901760
    %640 = vmatpush1.msra.mxu0 %v639
    %641 = vmatprep.subr.mxu0 0.0
    %v642 = vand.u32 %v48, 4294901760
    %643 = vmatpush1.msra.mxu0 %v642
    %644 = vmatprep.subr.mxu0 0.0
    %v645 = vand.u32 %v49, 4294901760
    %646 = vmatpush1.msra.mxu0 %v645
    %647 = vmatprep.subr.mxu0 0.0
    %v648 = vand.u32 %v50, 4294901760
    %649 = vmatpush1.msra.mxu0 %v648
    %650 = vmatprep.subr.mxu0 0.0
    %v651 = vand.u32 %v51, 4294901760
    %652 = vmatpush1.msra.mxu0 %v651
    %653 = vmatprep.subr.mxu0 0.0
    %v654 = vand.u32 %v52, 4294901760
    %655 = vmatpush1.msra.mxu0 %v654
    %656 = vmatprep.subr.mxu0 0.0
    %v657 = vand.u32 %v53, 4294901760
    %658 = vmatpush1.msra.mxu0 %v657
    %659 = vmatprep.subr.mxu0 0.0
    %v660 = vand.u32 %v54, 4294901760
    %661 = vmatpush1.msra.mxu0 %v660
    %662 = vmatprep.subr.mxu0 0.0
    %v663 = vand.u32 %v55, 4294901760
    %664 = vmatpush1.msra.mxu0 %v663
    %665 = vmatprep.subr.mxu0 0.0
    %v666 = vand.u32 %v56, 4294901760
    %667 = vmatpush1.msra.mxu0 %v666
    %668 = vmatprep.subr.mxu0 0.0
    %v669 = vand.u32 %v57, 4294901760
    %670 = vmatpush1.msra.mxu0 %v669
    %671 = vmatprep.subr.mxu0 0.0
    %v672 = vand.u32 %v58, 4294901760
    %673 = vmatpush1.msra.mxu0 %v672
    %674 = vmatprep.subr.mxu0 0.0
    %v675 = vand.u32 %v59, 4294901760
    %676 = vmatpush1.msra.mxu0 %v675
    %677 = vmatprep.subr.mxu0 0.0
    %v678 = vand.u32 %v60, 4294901760
    %679 = vmatpush1.msra.mxu0 %v678
    %680 = vmatprep.subr.mxu0 0.0
    %v681 = vand.u32 %v61, 4294901760
    %682 = vmatpush1.msra.mxu0 %v681
    %683 = vmatprep.subr.mxu0 0.0
    %v684 = vand.u32 %v62, 4294901760
    %685 = vmatpush1.msra.mxu0 %v684
    %686 = vmatprep.subr.mxu0 0.0
    %v687 = vand.u32 %v63, 4294901760
    %688 = vmatpush1.msra.mxu0 %v687
    %689 = vmatprep.subr.mxu0 0.0
    %v690 = vand.u32 %v64, 4294901760
    %691 = vmatpush1.msra.mxu0 %v690
    %692 = vmatprep.subr.mxu0 0.0
    %v693 = vand.u32 %v65, 4294901760
    %694 = vmatpush1.msra.mxu0 %v693
    %695 = vmatprep.subr.mxu0 0.0
    %v696 = vand.u32 %v66, 4294901760
    %697 = vmatpush1.msra.mxu0 %v696
    %698 = vmatprep.subr.mxu0 0.0
    %v699 = vand.u32 %v67, 4294901760
    %700 = vmatpush1.msra.mxu0 %v699
    %701 = vmatprep.subr.mxu0 0.0
    %v702 = vand.u32 %v68, 4294901760
    %703 = vmatpush1.msra.mxu0 %v702
    %704 = vmatprep.subr.mxu0 0.0
    %v705 = vand.u32 %v69, 4294901760
    %706 = vmatpush1.msra.mxu0 %v705
    %707 = vmatprep.subr.mxu0 0.0
    %v708 = vand.u32 %v70, 4294901760
    %709 = vmatpush1.msra.mxu0 %v708
    %710 = vmatprep.subr.mxu0 0.0
    %v711 = vand.u32 %v71, 4294901760
    %712 = vmatpush1.msra.mxu0 %v711
    %713 = vmatprep.subr.mxu0 0.0
    %v714 = vand.u32 %v72, 4294901760
    %715 = vmatpush1.msra.mxu0 %v714
    %716 = vmatprep.subr.mxu0 0.0
    %v717 = vand.u32 %v73, 4294901760
    %718 = vmatpush1.msra.mxu0 %v717
    %719 = vmatprep.subr.mxu0 0.0
    %v720 = vand.u32 %v74, 4294901760
    %721 = vmatpush1.msra.mxu0 %v720
    %722 = vmatprep.subr.mxu0 0.0
    %v723 = vand.u32 %v75, 4294901760
    %724 = vmatpush1.msra.mxu0 %v723
    %725 = vmatprep.subr.mxu0 0.0
    %v726 = vand.u32 %v76, 4294901760
    %727 = vmatpush1.msra.mxu0 %v726
    %728 = vmatprep.subr.mxu0 0.0
    %v729 = vand.u32 %v77, 4294901760
    %730 = vmatpush1.msra.mxu0 %v729
    %731 = vmatprep.subr.mxu0 0.0
    %v732 = vand.u32 %v78, 4294901760
    %733 = vmatpush1.msra.mxu0 %v732
    %v734 = vand.u32 %v41, 4294901760
    %v735 = vsub.f32 %v41, %v734
    %v736 = vand.u32 %v735, 4294901760
    %737 = vmatprep.mubr.f32.mxu0 %v736
    %v738 = vand.u32 %v40, 4294901760
    %v739 = vsub.f32 %v40, %v738
    %v740 = vand.u32 %v739, 4294901760
    %741 = vmatmul.mubr.f32.gmra.mrb[0].mxu0 %v740
    %v742 = vpop.f32.mrb[0].mxu0
    %v743 = vadd.f32 %v635, %v742
    %v744 = vpop.f32.mrb[0].mxu0
    %745 = vdwg.mxu0
    %746 = vmatprep.subr.mxu0 0.0
    %v747 = vand.u32 %v47, 4294901760
    %v748 = vsub.f32 %v47, %v747
    %v749 = vand.u32 %v748, 4294901760
    %750 = vmatpush1.msra.mxu0 %v749
    %751 = vmatprep.subr.mxu0 0.0
    %v752 = vand.u32 %v48, 4294901760
    %v753 = vsub.f32 %v48, %v752
    %v754 = vand.u32 %v753, 4294901760
    %755 = vmatpush1.msra.mxu0 %v754
    %756 = vmatprep.subr.mxu0 0.0
    %v757 = vand.u32 %v49, 4294901760
    %v758 = vsub.f32 %v49, %v757
    %v759 = vand.u32 %v758, 4294901760
    %760 = vmatpush1.msra.mxu0 %v759
    %761 = vmatprep.subr.mxu0 0.0
    %v762 = vand.u32 %v50, 4294901760
    %v763 = vsub.f32 %v50, %v762
    %v764 = vand.u32 %v763, 4294901760
    %765 = vmatpush1.msra.mxu0 %v764
    %766 = vmatprep.subr.mxu0 0.0
    %v767 = vand.u32 %v51, 4294901760
    %v768 = vsub.f32 %v51, %v767
    %v769 = vand.u32 %v768, 4294901760
    %770 = vmatpush1.msra.mxu0 %v769
    %771 = vmatprep.subr.mxu0 0.0
    %v772 = vand.u32 %v52, 4294901760
    %v773 = vsub.f32 %v52, %v772
    %v774 = vand.u32 %v773, 4294901760
    %775 = vmatpush1.msra.mxu0 %v774
    %776 = vmatprep.subr.mxu0 0.0
    %v777 = vand.u32 %v53, 4294901760
    %v778 = vsub.f32 %v53, %v777
    %v779 = vand.u32 %v778, 4294901760
    %780 = vmatpush1.msra.mxu0 %v779
    %781 = vmatprep.subr.mxu0 0.0
    %v782 = vand.u32 %v54, 4294901760
    %v783 = vsub.f32 %v54, %v782
    %v784 = vand.u32 %v783, 4294901760
    %785 = vmatpush1.msra.mxu0 %v784
    %786 = vmatprep.subr.mxu0 0.0
    %v787 = vand.u32 %v55, 4294901760
    %v788 = vsub.f32 %v55, %v787
    %v789 = vand.u32 %v788, 4294901760
    %790 = vmatpush1.msra.mxu0 %v789
    %791 = vmatprep.subr.mxu0 0.0
    %v792 = vand.u32 %v56, 4294901760
    %v793 = vsub.f32 %v56, %v792
    %v794 = vand.u32 %v793, 4294901760
    %795 = vmatpush1.msra.mxu0 %v794
    %796 = vmatprep.subr.mxu0 0.0
    %v797 = vand.u32 %v57, 4294901760
    %v798 = vsub.f32 %v57, %v797
    %v799 = vand.u32 %v798, 4294901760
    %800 = vmatpush1.msra.mxu0 %v799
    %801 = vmatprep.subr.mxu0 0.0
    %v802 = vand.u32 %v58, 4294901760
    %v803 = vsub.f32 %v58, %v802
    %v804 = vand.u32 %v803, 4294901760
    %805 = vmatpush1.msra.mxu0 %v804
    %806 = vmatprep.subr.mxu0 0.0
    %v807 = vand.u32 %v59, 4294901760
    %v808 = vsub.f32 %v59, %v807
    %v809 = vand.u32 %v808, 4294901760
    %810 = vmatpush1.msra.mxu0 %v809
    %811 = vmatprep.subr.mxu0 0.0
    %v812 = vand.u32 %v60, 4294901760
    %v813 = vsub.f32 %v60, %v812
    %v814 = vand.u32 %v813, 4294901760
    %815 = vmatpush1.msra.mxu0 %v814
    %816 = vmatprep.subr.mxu0 0.0
    %v817 = vand.u32 %v61, 4294901760
    %v818 = vsub.f32 %v61, %v817
    %v819 = vand.u32 %v818, 4294901760
    %820 = vmatpush1.msra.mxu0 %v819
    %821 = vmatprep.subr.mxu0 0.0
    %v822 = vand.u32 %v62, 4294901760
    %v823 = vsub.f32 %v62, %v822
    %v824 = vand.u32 %v823, 4294901760
    %825 = vmatpush1.msra.mxu0 %v824
    %826 = vmatprep.subr.mxu0 0.0
    %v827 = vand.u32 %v63, 4294901760
    %v828 = vsub.f32 %v63, %v827
    %v829 = vand.u32 %v828, 4294901760
    %830 = vmatpush1.msra.mxu0 %v829
    %831 = vmatprep.subr.mxu0 0.0
    %v832 = vand.u32 %v64, 4294901760
    %v833 = vsub.f32 %v64, %v832
    %v834 = vand.u32 %v833, 4294901760
    %835 = vmatpush1.msra.mxu0 %v834
    %836 = vmatprep.subr.mxu0 0.0
    %v837 = vand.u32 %v65, 4294901760
    %v838 = vsub.f32 %v65, %v837
    %v839 = vand.u32 %v838, 4294901760
    %840 = vmatpush1.msra.mxu0 %v839
    %841 = vmatprep.subr.mxu0 0.0
    %v842 = vand.u32 %v66, 4294901760
    %v843 = vsub.f32 %v66, %v842
    %v844 = vand.u32 %v843, 4294901760
    %845 = vmatpush1.msra.mxu0 %v844
    %846 = vmatprep.subr.mxu0 0.0
    %v847 = vand.u32 %v67, 4294901760
    %v848 = vsub.f32 %v67, %v847
    %v849 = vand.u32 %v848, 4294901760
    %850 = vmatpush1.msra.mxu0 %v849
    %851 = vmatprep.subr.mxu0 0.0
    %v852 = vand.u32 %v68, 4294901760
    %v853 = vsub.f32 %v68, %v852
    %v854 = vand.u32 %v853, 4294901760
    %855 = vmatpush1.msra.mxu0 %v854
    %856 = vmatprep.subr.mxu0 0.0
    %v857 = vand.u32 %v69, 4294901760
    %v858 = vsub.f32 %v69, %v857
    %v859 = vand.u32 %v858, 4294901760
    %860 = vmatpush1.msra.mxu0 %v859
    %861 = vmatprep.subr.mxu0 0.0
    %v862 = vand.u32 %v70, 4294901760
    %v863 = vsub.f32 %v70, %v862
    %v864 = vand.u32 %v863, 4294901760
    %865 = vmatpush1.msra.mxu0 %v864
    %866 = vmatprep.subr.mxu0 0.0
    %v867 = vand.u32 %v71, 4294901760
    %v868 = vsub.f32 %v71, %v867
    %v869 = vand.u32 %v868, 4294901760
    %870 = vmatpush1.msra.mxu0 %v869
    %871 = vmatprep.subr.mxu0 0.0
    %v872 = vand.u32 %v72, 4294901760
    %v873 = vsub.f32 %v72, %v872
    %v874 = vand.u32 %v873, 4294901760
    %875 = vmatpush1.msra.mxu0 %v874
    %876 = vmatprep.subr.mxu0 0.0
    %v877 = vand.u32 %v73, 4294901760
    %v878 = vsub.f32 %v73, %v877
    %v879 = vand.u32 %v878, 4294901760
    %880 = vmatpush1.msra.mxu0 %v879
    %881 = vmatprep.subr.mxu0 0.0
    %v882 = vand.u32 %v74, 4294901760
    %v883 = vsub.f32 %v74, %v882
    %v884 = vand.u32 %v883, 4294901760
    %885 = vmatpush1.msra.mxu0 %v884
    %886 = vmatprep.subr.mxu0 0.0
    %v887 = vand.u32 %v75, 4294901760
    %v888 = vsub.f32 %v75, %v887
    %v889 = vand.u32 %v888, 4294901760
    %890 = vmatpush1.msra.mxu0 %v889
    %891 = vmatprep.subr.mxu0 0.0
    %v892 = vand.u32 %v76, 4294901760
    %v893 = vsub.f32 %v76, %v892
    %v894 = vand.u32 %v893, 4294901760
    %895 = vmatpush1.msra.mxu0 %v894
    %896 = vmatprep.subr.mxu0 0.0
    %v897 = vand.u32 %v77, 4294901760
    %v898 = vsub.f32 %v77, %v897
    %v899 = vand.u32 %v898, 4294901760
    %900 = vmatpush1.msra.mxu0 %v899
    %901 = vmatprep.subr.mxu0 0.0
    %v902 = vand.u32 %v78, 4294901760
    %v903 = vsub.f32 %v78, %v902
    %v904 = vand.u32 %v903, 4294901760
    %905 = vmatpush1.msra.mxu0 %v904
    %v906 = vand.u32 %v41, 4294901760
    %907 = vmatprep.mubr.f32.mxu0 %v906
    %v908 = vand.u32 %v40, 4294901760
    %909 = vmatmul.mubr.f32.gmra.mrb[0].mxu0 %v908
    %v910 = vpop.f32.mrb[0].mxu0
    %v911 = vadd.f32 %v743, %v910
    %v912 = vpop.f32.mrb[0].mxu0
    %913 = vdwg.mxu0
    %914 = vmatprep.subr.mxu0 0.0
    %v915 = vand.u32 %v47, 4294901760
    %916 = vmatpush1.msra.mxu0 %v915
    %917 = vmatprep.subr.mxu0 0.0
    %v918 = vand.u32 %v48, 4294901760
    %919 = vmatpush1.msra.mxu0 %v918
    %920 = vmatprep.subr.mxu0 0.0
    %v921 = vand.u32 %v49, 4294901760
    %922 = vmatpush1.msra.mxu0 %v921
    %923 = vmatprep.subr.mxu0 0.0
    %v924 = vand.u32 %v50, 4294901760
    %925 = vmatpush1.msra.mxu0 %v924
    %926 = vmatprep.subr.mxu0 0.0
    %v927 = vand.u32 %v51, 4294901760
    %928 = vmatpush1.msra.mxu0 %v927
    %929 = vmatprep.subr.mxu0 0.0
    %v930 = vand.u32 %v52, 4294901760
    %931 = vmatpush1.msra.mxu0 %v930
    %932 = vmatprep.subr.mxu0 0.0
    %v933 = vand.u32 %v53, 4294901760
    %934 = vmatpush1.msra.mxu0 %v933
    %935 = vmatprep.subr.mxu0 0.0
    %v936 = vand.u32 %v54, 4294901760
    %937 = vmatpush1.msra.mxu0 %v936
    %938 = vmatprep.subr.mxu0 0.0
    %v939 = vand.u32 %v55, 4294901760
    %940 = vmatpush1.msra.mxu0 %v939
    %941 = vmatprep.subr.mxu0 0.0
    %v942 = vand.u32 %v56, 4294901760
    %943 = vmatpush1.msra.mxu0 %v942
    %944 = vmatprep.subr.mxu0 0.0
    %v945 = vand.u32 %v57, 4294901760
    %946 = vmatpush1.msra.mxu0 %v945
    %947 = vmatprep.subr.mxu0 0.0
    %v948 = vand.u32 %v58, 4294901760
    %949 = vmatpush1.msra.mxu0 %v948
    %950 = vmatprep.subr.mxu0 0.0
    %v951 = vand.u32 %v59, 4294901760
    %952 = vmatpush1.msra.mxu0 %v951
    %953 = vmatprep.subr.mxu0 0.0
    %v954 = vand.u32 %v60, 4294901760
    %955 = vmatpush1.msra.mxu0 %v954
    %956 = vmatprep.subr.mxu0 0.0
    %v957 = vand.u32 %v61, 4294901760
    %958 = vmatpush1.msra.mxu0 %v957
    %959 = vmatprep.subr.mxu0 0.0
    %v960 = vand.u32 %v62, 4294901760
    %961 = vmatpush1.msra.mxu0 %v960
    %962 = vmatprep.subr.mxu0 0.0
    %v963 = vand.u32 %v63, 4294901760
    %964 = vmatpush1.msra.mxu0 %v963
    %965 = vmatprep.subr.mxu0 0.0
    %v966 = vand.u32 %v64, 4294901760
    %967 = vmatpush1.msra.mxu0 %v966
    %968 = vmatprep.subr.mxu0 0.0
    %v969 = vand.u32 %v65, 4294901760
    %970 = vmatpush1.msra.mxu0 %v969
    %971 = vmatprep.subr.mxu0 0.0
    %v972 = vand.u32 %v66, 4294901760
    %973 = vmatpush1.msra.mxu0 %v972
    %974 = vmatprep.subr.mxu0 0.0
    %v975 = vand.u32 %v67, 4294901760
    %976 = vmatpush1.msra.mxu0 %v975
    %977 = vmatprep.subr.mxu0 0.0
    %v978 = vand.u32 %v68, 4294901760
    %979 = vmatpush1.msra.mxu0 %v978
    %980 = vmatprep.subr.mxu0 0.0
    %v981 = vand.u32 %v69, 4294901760
    %982 = vmatpush1.msra.mxu0 %v981
    %983 = vmatprep.subr.mxu0 0.0
    %v984 = vand.u32 %v70, 4294901760
    %985 = vmatpush1.msra.mxu0 %v984
    %986 = vmatprep.subr.mxu0 0.0
    %v987 = vand.u32 %v71, 4294901760
    %988 = vmatpush1.msra.mxu0 %v987
    %989 = vmatprep.subr.mxu0 0.0
    %v990 = vand.u32 %v72, 4294901760
    %991 = vmatpush1.msra.mxu0 %v990
    %992 = vmatprep.subr.mxu0 0.0
    %v993 = vand.u32 %v73, 4294901760
    %994 = vmatpush1.msra.mxu0 %v993
    %995 = vmatprep.subr.mxu0 0.0
    %v996 = vand.u32 %v74, 4294901760
    %997 = vmatpush1.msra.mxu0 %v996
    %998 = vmatprep.subr.mxu0 0.0
    %v999 = vand.u32 %v75, 4294901760
    %1000 = vmatpush1.msra.mxu0 %v999
    %1001 = vmatprep.subr.mxu0 0.0
    %v1002 = vand.u32 %v76, 4294901760
    %1003 = vmatpush1.msra.mxu0 %v1002
    %1004 = vmatprep.subr.mxu0 0.0
    %v1005 = vand.u32 %v77, 4294901760
    %1006 = vmatpush1.msra.mxu0 %v1005
    %1007 = vmatprep.subr.mxu0 0.0
    %v1008 = vand.u32 %v78, 4294901760
    %1009 = vmatpush1.msra.mxu0 %v1008
    %v1010 = vand.u32 %v41, 4294901760
    %1011 = vmatprep.mubr.f32.mxu0 %v1010
    %v1012 = vand.u32 %v40, 4294901760
    %1013 = vmatmul.mubr.f32.gmra.mrb[0].mxu0 %v1012
    %v1014 = vpop.f32.mrb[0].mxu0
    %v1015 = vadd.f32 %v911, %v1014
    %v1016 = vpop.f32.mrb[0].mxu0
    %1017 = vdwg.mxu0
    %1018 = vmatprep.subr.mxu0 0.0
    %v1019 = vand.u32 %v79, 4294901760
    %1020 = vmatpush1.msra.mxu0 %v1019
    %1021 = vmatprep.subr.mxu0 0.0
    %v1022 = vand.u32 %v80, 4294901760
    %1023 = vmatpush1.msra.mxu0 %v1022
    %1024 = vmatprep.subr.mxu0 0.0
    %v1025 = vand.u32 %v81, 4294901760
    %1026 = vmatpush1.msra.mxu0 %v1025
    %1027 = vmatprep.subr.mxu0 0.0
    %v1028 = vand.u32 %v82, 4294901760
    %1029 = vmatpush1.msra.mxu0 %v1028
    %1030 = vmatprep.subr.mxu0 0.0
    %v1031 = vand.u32 %v83, 4294901760
    %1032 = vmatpush1.msra.mxu0 %v1031
    %1033 = vmatprep.subr.mxu0 0.0
    %v1034 = vand.u32 %v84, 4294901760
    %1035 = vmatpush1.msra.mxu0 %v1034
    %1036 = vmatprep.subr.mxu0 0.0
    %v1037 = vand.u32 %v85, 4294901760
    %1038 = vmatpush1.msra.mxu0 %v1037
    %1039 = vmatprep.subr.mxu0 0.0
    %v1040 = vand.u32 %v86, 4294901760
    %1041 = vmatpush1.msra.mxu0 %v1040
    %1042 = vmatprep.subr.mxu0 0.0
    %v1043 = vand.u32 %v87, 4294901760
    %1044 = vmatpush1.msra.mxu0 %v1043
    %1045 = vmatprep.subr.mxu0 0.0
    %v1046 = vand.u32 %v88, 4294901760
    %1047 = vmatpush1.msra.mxu0 %v1046
    %1048 = vmatprep.subr.mxu0 0.0
    %v1049 = vand.u32 %v89, 4294901760
    %1050 = vmatpush1.msra.mxu0 %v1049
    %1051 = vmatprep.subr.mxu0 0.0
    %v1052 = vand.u32 %v90, 4294901760
    %1053 = vmatpush1.msra.mxu0 %v1052
    %1054 = vmatprep.subr.mxu0 0.0
    %v1055 = vand.u32 %v91, 4294901760
    %1056 = vmatpush1.msra.mxu0 %v1055
    %1057 = vmatprep.subr.mxu0 0.0
    %v1058 = vand.u32 %v92, 4294901760
    %1059 = vmatpush1.msra.mxu0 %v1058
    %1060 = vmatprep.subr.mxu0 0.0
    %v1061 = vand.u32 %v93, 4294901760
    %1062 = vmatpush1.msra.mxu0 %v1061
    %1063 = vmatprep.subr.mxu0 0.0
    %v1064 = vand.u32 %v94, 4294901760
    %1065 = vmatpush1.msra.mxu0 %v1064
    %1066 = vmatprep.subr.mxu0 0.0
    %v1067 = vand.u32 %v95, 4294901760
    %1068 = vmatpush1.msra.mxu0 %v1067
    %1069 = vmatprep.subr.mxu0 0.0
    %v1070 = vand.u32 %v96, 4294901760
    %1071 = vmatpush1.msra.mxu0 %v1070
    %1072 = vmatprep.subr.mxu0 0.0
    %v1073 = vand.u32 %v97, 4294901760
    %1074 = vmatpush1.msra.mxu0 %v1073
    %1075 = vmatprep.subr.mxu0 0.0
    %v1076 = vand.u32 %v98, 4294901760
    %1077 = vmatpush1.msra.mxu0 %v1076
    %1078 = vmatprep.subr.mxu0 0.0
    %v1079 = vand.u32 %v99, 4294901760
    %1080 = vmatpush1.msra.mxu0 %v1079
    %1081 = vmatprep.subr.mxu0 0.0
    %v1082 = vand.u32 %v100, 4294901760
    %1083 = vmatpush1.msra.mxu0 %v1082
    %1084 = vmatprep.subr.mxu0 0.0
    %v1085 = vand.u32 %v101, 4294901760
    %1086 = vmatpush1.msra.mxu0 %v1085
    %1087 = vmatprep.subr.mxu0 0.0
    %v1088 = vand.u32 %v102, 4294901760
    %1089 = vmatpush1.msra.mxu0 %v1088
    %1090 = vmatprep.subr.mxu0 0.0
    %v1091 = vand.u32 %v103, 4294901760
    %1092 = vmatpush1.msra.mxu0 %v1091
    %1093 = vmatprep.subr.mxu0 0.0
    %v1094 = vand.u32 %v104, 4294901760
    %1095 = vmatpush1.msra.mxu0 %v1094
    %1096 = vmatprep.subr.mxu0 0.0
    %v1097 = vand.u32 %v105, 4294901760
    %1098 = vmatpush1.msra.mxu0 %v1097
    %1099 = vmatprep.subr.mxu0 0.0
    %v1100 = vand.u32 %v106, 4294901760
    %1101 = vmatpush1.msra.mxu0 %v1100
    %1102 = vmatprep.subr.mxu0 0.0
    %v1103 = vand.u32 %v107, 4294901760
    %1104 = vmatpush1.msra.mxu0 %v1103
    %1105 = vmatprep.subr.mxu0 0.0
    %v1106 = vand.u32 %v108, 4294901760
    %1107 = vmatpush1.msra.mxu0 %v1106
    %1108 = vmatprep.subr.mxu0 0.0
    %v1109 = vand.u32 %v109, 4294901760
    %1110 = vmatpush1.msra.mxu0 %v1109
    %1111 = vmatprep.subr.mxu0 0.0
    %v1112 = vand.u32 %v110, 4294901760
    %1113 = vmatpush1.msra.mxu0 %v1112
    %v1114 = vand.u32 %v43, 4294901760
    %v1115 = vsub.f32 %v43, %v1114
    %v1116 = vand.u32 %v1115, 4294901760
    %v1117 = vsub.f32 %v1115, %v1116
    %v1118 = vand.u32 %v1117, 4294901760
    %1119 = vmatprep.mubr.f32.mxu0 %v1118
    %v1120 = vand.u32 %v42, 4294901760
    %v1121 = vsub.f32 %v42, %v1120
    %v1122 = vand.u32 %v1121, 4294901760
    %v1123 = vsub.f32 %v1121, %v1122
    %v1124 = vand.u32 %v1123, 4294901760
    %1125 = vmatmul.mubr.f32.gmra.mrb[0].mxu0 %v1124
    %v1126 = vpop.f32.mrb[0].mxu0
    %v1127 = vadd.f32 %v1015, %v1126
    %v1128 = vpop.f32.mrb[0].mxu0
    %1129 = vdwg.mxu0
    %1130 = vmatprep.subr.mxu0 0.0
    %v1131 = vand.u32 %v79, 4294901760
    %v1132 = vsub.f32 %v79, %v1131
    %v1133 = vand.u32 %v1132, 4294901760
    %v1134 = vsub.f32 %v1132, %v1133
    %v1135 = vand.u32 %v1134, 4294901760
    %1136 = vmatpush1.msra.mxu0 %v1135
    %1137 = vmatprep.subr.mxu0 0.0
    %v1138 = vand.u32 %v80, 4294901760
    %v1139 = vsub.f32 %v80, %v1138
    %v1140 = vand.u32 %v1139, 4294901760
    %v1141 = vsub.f32 %v1139, %v1140
    %v1142 = vand.u32 %v1141, 4294901760
    %1143 = vmatpush1.msra.mxu0 %v1142
    %1144 = vmatprep.subr.mxu0 0.0
    %v1145 = vand.u32 %v81, 4294901760
    %v1146 = vsub.f32 %v81, %v1145
    %v1147 = vand.u32 %v1146, 4294901760
    %v1148 = vsub.f32 %v1146, %v1147
    %v1149 = vand.u32 %v1148, 4294901760
    %1150 = vmatpush1.msra.mxu0 %v1149
    %1151 = vmatprep.subr.mxu0 0.0
    %v1152 = vand.u32 %v82, 4294901760
    %v1153 = vsub.f32 %v82, %v1152
    %v1154 = vand.u32 %v1153, 4294901760
    %v1155 = vsub.f32 %v1153, %v1154
    %v1156 = vand.u32 %v1155, 4294901760
    %1157 = vmatpush1.msra.mxu0 %v1156
    %1158 = vmatprep.subr.mxu0 0.0
    %v1159 = vand.u32 %v83, 4294901760
    %v1160 = vsub.f32 %v83, %v1159
    %v1161 = vand.u32 %v1160, 4294901760
    %v1162 = vsub.f32 %v1160, %v1161
    %v1163 = vand.u32 %v1162, 4294901760
    %1164 = vmatpush1.msra.mxu0 %v1163
    %1165 = vmatprep.subr.mxu0 0.0
    %v1166 = vand.u32 %v84, 4294901760
    %v1167 = vsub.f32 %v84, %v1166
    %v1168 = vand.u32 %v1167, 4294901760
    %v1169 = vsub.f32 %v1167, %v1168
    %v1170 = vand.u32 %v1169, 4294901760
    %1171 = vmatpush1.msra.mxu0 %v1170
    %1172 = vmatprep.subr.mxu0 0.0
    %v1173 = vand.u32 %v85, 4294901760
    %v1174 = vsub.f32 %v85, %v1173
    %v1175 = vand.u32 %v1174, 4294901760
    %v1176 = vsub.f32 %v1174, %v1175
    %v1177 = vand.u32 %v1176, 4294901760
    %1178 = vmatpush1.msra.mxu0 %v1177
    %1179 = vmatprep.subr.mxu0 0.0
    %v1180 = vand.u32 %v86, 4294901760
    %v1181 = vsub.f32 %v86, %v1180
    %v1182 = vand.u32 %v1181, 4294901760
    %v1183 = vsub.f32 %v1181, %v1182
    %v1184 = vand.u32 %v1183, 4294901760
    %1185 = vmatpush1.msra.mxu0 %v1184
    %1186 = vmatprep.subr.mxu0 0.0
    %v1187 = vand.u32 %v87, 4294901760
    %v1188 = vsub.f32 %v87, %v1187
    %v1189 = vand.u32 %v1188, 4294901760
    %v1190 = vsub.f32 %v1188, %v1189
    %v1191 = vand.u32 %v1190, 4294901760
    %1192 = vmatpush1.msra.mxu0 %v1191
    %1193 = vmatprep.subr.mxu0 0.0
    %v1194 = vand.u32 %v88, 4294901760
    %v1195 = vsub.f32 %v88, %v1194
    %v1196 = vand.u32 %v1195, 4294901760
    %v1197 = vsub.f32 %v1195, %v1196
    %v1198 = vand.u32 %v1197, 4294901760
    %1199 = vmatpush1.msra.mxu0 %v1198
    %1200 = vmatprep.subr.mxu0 0.0
    %v1201 = vand.u32 %v89, 4294901760
    %v1202 = vsub.f32 %v89, %v1201
    %v1203 = vand.u32 %v1202, 4294901760
    %v1204 = vsub.f32 %v1202, %v1203
    %v1205 = vand.u32 %v1204, 4294901760
    %1206 = vmatpush1.msra.mxu0 %v1205
    %1207 = vmatprep.subr.mxu0 0.0
    %v1208 = vand.u32 %v90, 4294901760
    %v1209 = vsub.f32 %v90, %v1208
    %v1210 = vand.u32 %v1209, 4294901760
    %v1211 = vsub.f32 %v1209, %v1210
    %v1212 = vand.u32 %v1211, 4294901760
    %1213 = vmatpush1.msra.mxu0 %v1212
    %1214 = vmatprep.subr.mxu0 0.0
    %v1215 = vand.u32 %v91, 4294901760
    %v1216 = vsub.f32 %v91, %v1215
    %v1217 = vand.u32 %v1216, 4294901760
    %v1218 = vsub.f32 %v1216, %v1217
    %v1219 = vand.u32 %v1218, 4294901760
    %1220 = vmatpush1.msra.mxu0 %v1219
    %1221 = vmatprep.subr.mxu0 0.0
    %v1222 = vand.u32 %v92, 4294901760
    %v1223 = vsub.f32 %v92, %v1222
    %v1224 = vand.u32 %v1223, 4294901760
    %v1225 = vsub.f32 %v1223, %v1224
    %v1226 = vand.u32 %v1225, 4294901760
    %1227 = vmatpush1.msra.mxu0 %v1226
    %1228 = vmatprep.subr.mxu0 0.0
    %v1229 = vand.u32 %v93, 4294901760
    %v1230 = vsub.f32 %v93, %v1229
    %v1231 = vand.u32 %v1230, 4294901760
    %v1232 = vsub.f32 %v1230, %v1231
    %v1233 = vand.u32 %v1232, 4294901760
    %1234 = vmatpush1.msra.mxu0 %v1233
    %1235 = vmatprep.subr.mxu0 0.0
    %v1236 = vand.u32 %v94, 4294901760
    %v1237 = vsub.f32 %v94, %v1236
    %v1238 = vand.u32 %v1237, 4294901760
    %v1239 = vsub.f32 %v1237, %v1238
    %v1240 = vand.u32 %v1239, 4294901760
    %1241 = vmatpush1.msra.mxu0 %v1240
    %1242 = vmatprep.subr.mxu0 0.0
    %v1243 = vand.u32 %v95, 4294901760
    %v1244 = vsub.f32 %v95, %v1243
    %v1245 = vand.u32 %v1244, 4294901760
    %v1246 = vsub.f32 %v1244, %v1245
    %v1247 = vand.u32 %v1246, 4294901760
    %1248 = vmatpush1.msra.mxu0 %v1247
    %1249 = vmatprep.subr.mxu0 0.0
    %v1250 = vand.u32 %v96, 4294901760
    %v1251 = vsub.f32 %v96, %v1250
    %v1252 = vand.u32 %v1251, 4294901760
    %v1253 = vsub.f32 %v1251, %v1252
    %v1254 = vand.u32 %v1253, 4294901760
    %1255 = vmatpush1.msra.mxu0 %v1254
    %1256 = vmatprep.subr.mxu0 0.0
    %v1257 = vand.u32 %v97, 4294901760
    %v1258 = vsub.f32 %v97, %v1257
    %v1259 = vand.u32 %v1258, 4294901760
    %v1260 = vsub.f32 %v1258, %v1259
    %v1261 = vand.u32 %v1260, 4294901760
    %1262 = vmatpush1.msra.mxu0 %v1261
    %1263 = vmatprep.subr.mxu0 0.0
    %v1264 = vand.u32 %v98, 4294901760
    %v1265 = vsub.f32 %v98, %v1264
    %v1266 = vand.u32 %v1265, 4294901760
    %v1267 = vsub.f32 %v1265, %v1266
    %v1268 = vand.u32 %v1267, 4294901760
    %1269 = vmatpush1.msra.mxu0 %v1268
    %1270 = vmatprep.subr.mxu0 0.0
    %v1271 = vand.u32 %v99, 4294901760
    %v1272 = vsub.f32 %v99, %v1271
    %v1273 = vand.u32 %v1272, 4294901760
    %v1274 = vsub.f32 %v1272, %v1273
    %v1275 = vand.u32 %v1274, 4294901760
    %1276 = vmatpush1.msra.mxu0 %v1275
    %1277 = vmatprep.subr.mxu0 0.0
    %v1278 = vand.u32 %v100, 4294901760
    %v1279 = vsub.f32 %v100, %v1278
    %v1280 = vand.u32 %v1279, 4294901760
    %v1281 = vsub.f32 %v1279, %v1280
    %v1282 = vand.u32 %v1281, 4294901760
    %1283 = vmatpush1.msra.mxu0 %v1282
    %1284 = vmatprep.subr.mxu0 0.0
    %v1285 = vand.u32 %v101, 4294901760
    %v1286 = vsub.f32 %v101, %v1285
    %v1287 = vand.u32 %v1286, 4294901760
    %v1288 = vsub.f32 %v1286, %v1287
    %v1289 = vand.u32 %v1288, 4294901760
    %1290 = vmatpush1.msra.mxu0 %v1289
    %1291 = vmatprep.subr.mxu0 0.0
    %v1292 = vand.u32 %v102, 4294901760
    %v1293 = vsub.f32 %v102, %v1292
    %v1294 = vand.u32 %v1293, 4294901760
    %v1295 = vsub.f32 %v1293, %v1294
    %v1296 = vand.u32 %v1295, 4294901760
    %1297 = vmatpush1.msra.mxu0 %v1296
    %1298 = vmatprep.subr.mxu0 0.0
    %v1299 = vand.u32 %v103, 4294901760
    %v1300 = vsub.f32 %v103, %v1299
    %v1301 = vand.u32 %v1300, 4294901760
    %v1302 = vsub.f32 %v1300, %v1301
    %v1303 = vand.u32 %v1302, 4294901760
    %1304 = vmatpush1.msra.mxu0 %v1303
    %1305 = vmatprep.subr.mxu0 0.0
    %v1306 = vand.u32 %v104, 4294901760
    %v1307 = vsub.f32 %v104, %v1306
    %v1308 = vand.u32 %v1307, 4294901760
    %v1309 = vsub.f32 %v1307, %v1308
    %v1310 = vand.u32 %v1309, 4294901760
    %1311 = vmatpush1.msra.mxu0 %v1310
    %1312 = vmatprep.subr.mxu0 0.0
    %v1313 = vand.u32 %v105, 4294901760
    %v1314 = vsub.f32 %v105, %v1313
    %v1315 = vand.u32 %v1314, 4294901760
    %v1316 = vsub.f32 %v1314, %v1315
    %v1317 = vand.u32 %v1316, 4294901760
    %1318 = vmatpush1.msra.mxu0 %v1317
    %1319 = vmatprep.subr.mxu0 0.0
    %v1320 = vand.u32 %v106, 4294901760
    %v1321 = vsub.f32 %v106, %v1320
    %v1322 = vand.u32 %v1321, 4294901760
    %v1323 = vsub.f32 %v1321, %v1322
    %v1324 = vand.u32 %v1323, 4294901760
    %1325 = vmatpush1.msra.mxu0 %v1324
    %1326 = vmatprep.subr.mxu0 0.0
    %v1327 = vand.u32 %v107, 4294901760
    %v1328 = vsub.f32 %v107, %v1327
    %v1329 = vand.u32 %v1328, 4294901760
    %v1330 = vsub.f32 %v1328, %v1329
    %v1331 = vand.u32 %v1330, 4294901760
    %1332 = vmatpush1.msra.mxu0 %v1331
    %1333 = vmatprep.subr.mxu0 0.0
    %v1334 = vand.u32 %v108, 4294901760
    %v1335 = vsub.f32 %v108, %v1334
    %v1336 = vand.u32 %v1335, 4294901760
    %v1337 = vsub.f32 %v1335, %v1336
    %v1338 = vand.u32 %v1337, 4294901760
    %1339 = vmatpush1.msra.mxu0 %v1338
    %1340 = vmatprep.subr.mxu0 0.0
    %v1341 = vand.u32 %v109, 4294901760
    %v1342 = vsub.f32 %v109, %v1341
    %v1343 = vand.u32 %v1342, 4294901760
    %v1344 = vsub.f32 %v1342, %v1343
    %v1345 = vand.u32 %v1344, 4294901760
    %1346 = vmatpush1.msra.mxu0 %v1345
    %1347 = vmatprep.subr.mxu0 0.0
    %v1348 = vand.u32 %v110, 4294901760
    %v1349 = vsub.f32 %v110, %v1348
    %v1350 = vand.u32 %v1349, 4294901760
    %v1351 = vsub.f32 %v1349, %v1350
    %v1352 = vand.u32 %v1351, 4294901760
    %1353 = vmatpush1.msra.mxu0 %v1352
    %v1354 = vand.u32 %v43, 4294901760
    %1355 = vmatprep.mubr.f32.mxu0 %v1354
    %v1356 = vand.u32 %v42, 4294901760
    %1357 = vmatmul.mubr.f32.gmra.mrb[0].mxu0 %v1356
    %v1358 = vpop.f32.mrb[0].mxu0
    %v1359 = vadd.f32 %v1127, %v1358
    %v1360 = vpop.f32.mrb[0].mxu0
    %1361 = vdwg.mxu0
    %1362 = vmatprep.subr.mxu0 0.0
    %v1363 = vand.u32 %v79, 4294901760
    %v1364 = vsub.f32 %v79, %v1363
    %1365 = vmatpush1.msra.mxu0 %v1364
    %1366 = vmatprep.subr.mxu0 0.0
    %v1367 = vand.u32 %v80, 4294901760
    %v1368 = vsub.f32 %v80, %v1367
    %1369 = vmatpush1.msra.mxu0 %v1368
    %1370 = vmatprep.subr.mxu0 0.0
    %v1371 = vand.u32 %v81, 4294901760
    %v1372 = vsub.f32 %v81, %v1371
    %1373 = vmatpush1.msra.mxu0 %v1372
    %1374 = vmatprep.subr.mxu0 0.0
    %v1375 = vand.u32 %v82, 4294901760
    %v1376 = vsub.f32 %v82, %v1375
    %1377 = vmatpush1.msra.mxu0 %v1376
    %1378 = vmatprep.subr.mxu0 0.0
    %v1379 = vand.u32 %v83, 4294901760
    %v1380 = vsub.f32 %v83, %v1379
    %1381 = vmatpush1.msra.mxu0 %v1380
    %1382 = vmatprep.subr.mxu0 0.0
    %v1383 = vand.u32 %v84, 4294901760
    %v1384 = vsub.f32 %v84, %v1383
    %1385 = vmatpush1.msra.mxu0 %v1384
    %1386 = vmatprep.subr.mxu0 0.0
    %v1387 = vand.u32 %v85, 4294901760
    %v1388 = vsub.f32 %v85, %v1387
    %1389 = vmatpush1.msra.mxu0 %v1388
    %1390 = vmatprep.subr.mxu0 0.0
    %v1391 = vand.u32 %v86, 4294901760
    %v1392 = vsub.f32 %v86, %v1391
    %1393 = vmatpush1.msra.mxu0 %v1392
    %1394 = vmatprep.subr.mxu0 0.0
    %v1395 = vand.u32 %v87, 4294901760
    %v1396 = vsub.f32 %v87, %v1395
    %1397 = vmatpush1.msra.mxu0 %v1396
    %1398 = vmatprep.subr.mxu0 0.0
    %v1399 = vand.u32 %v88, 4294901760
    %v1400 = vsub.f32 %v88, %v1399
    %1401 = vmatpush1.msra.mxu0 %v1400
    %1402 = vmatprep.subr.mxu0 0.0
    %v1403 = vand.u32 %v89, 4294901760
    %v1404 = vsub.f32 %v89, %v1403
    %1405 = vmatpush1.msra.mxu0 %v1404
    %1406 = vmatprep.subr.mxu0 0.0
    %v1407 = vand.u32 %v90, 4294901760
    %v1408 = vsub.f32 %v90, %v1407
    %1409 = vmatpush1.msra.mxu0 %v1408
    %1410 = vmatprep.subr.mxu0 0.0
    %v1411 = vand.u32 %v91, 4294901760
    %v1412 = vsub.f32 %v91, %v1411
    %1413 = vmatpush1.msra.mxu0 %v1412
    %1414 = vmatprep.subr.mxu0 0.0
    %v1415 = vand.u32 %v92, 4294901760
    %v1416 = vsub.f32 %v92, %v1415
    %1417 = vmatpush1.msra.mxu0 %v1416
    %1418 = vmatprep.subr.mxu0 0.0
    %v1419 = vand.u32 %v93, 4294901760
    %v1420 = vsub.f32 %v93, %v1419
    %1421 = vmatpush1.msra.mxu0 %v1420
    %1422 = vmatprep.subr.mxu0 0.0
    %v1423 = vand.u32 %v94, 4294901760
    %v1424 = vsub.f32 %v94, %v1423
    %1425 = vmatpush1.msra.mxu0 %v1424
    %1426 = vmatprep.subr.mxu0 0.0
    %v1427 = vand.u32 %v95, 4294901760
    %v1428 = vsub.f32 %v95, %v1427
    %1429 = vmatpush1.msra.mxu0 %v1428
    %1430 = vmatprep.subr.mxu0 0.0
    %v1431 = vand.u32 %v96, 4294901760
    %v1432 = vsub.f32 %v96, %v1431
    %1433 = vmatpush1.msra.mxu0 %v1432
    %1434 = vmatprep.subr.mxu0 0.0
    %v1435 = vand.u32 %v97, 4294901760
    %v1436 = vsub.f32 %v97, %v1435
    %1437 = vmatpush1.msra.mxu0 %v1436
    %1438 = vmatprep.subr.mxu0 0.0
    %v1439 = vand.u32 %v98, 4294901760
    %v1440 = vsub.f32 %v98, %v1439
    %1441 = vmatpush1.msra.mxu0 %v1440
    %1442 = vmatprep.subr.mxu0 0.0
    %v1443 = vand.u32 %v99, 4294901760
    %v1444 = vsub.f32 %v99, %v1443
    %1445 = vmatpush1.msra.mxu0 %v1444
    %1446 = vmatprep.subr.mxu0 0.0
    %v1447 = vand.u32 %v100, 4294901760
    %v1448 = vsub.f32 %v100, %v1447
    %1449 = vmatpush1.msra.mxu0 %v1448
    %1450 = vmatprep.subr.mxu0 0.0
    %v1451 = vand.u32 %v101, 4294901760
    %v1452 = vsub.f32 %v101, %v1451
    %1453 = vmatpush1.msra.mxu0 %v1452
    %1454 = vmatprep.subr.mxu0 0.0
    %v1455 = vand.u32 %v102, 4294901760
    %v1456 = vsub.f32 %v102, %v1455
    %1457 = vmatpush1.msra.mxu0 %v1456
    %1458 = vmatprep.subr.mxu0 0.0
    %v1459 = vand.u32 %v103, 4294901760
    %v1460 = vsub.f32 %v103, %v1459
    %1461 = vmatpush1.msra.mxu0 %v1460
    %1462 = vmatprep.subr.mxu0 0.0
    %v1463 = vand.u32 %v104, 4294901760
    %v1464 = vsub.f32 %v104, %v1463
    %1465 = vmatpush1.msra.mxu0 %v1464
    %1466 = vmatprep.subr.mxu0 0.0
    %v1467 = vand.u32 %v105, 4294901760
    %v1468 = vsub.f32 %v105, %v1467
    %1469 = vmatpush1.msra.mxu0 %v1468
    %1470 = vmatprep.subr.mxu0 0.0
    %v1471 = vand.u32 %v106, 4294901760
    %v1472 = vsub.f32 %v106, %v1471
    %1473 = vmatpush1.msra.mxu0 %v1472
    %1474 = vmatprep.subr.mxu0 0.0
    %v1475 = vand.u32 %v107, 4294901760
    %v1476 = vsub.f32 %v107, %v1475
    %1477 = vmatpush1.msra.mxu0 %v1476
    %1478 = vmatprep.subr.mxu0 0.0
    %v1479 = vand.u32 %v108, 4294901760
    %v1480 = vsub.f32 %v108, %v1479
    %1481 = vmatpush1.msra.mxu0 %v1480
    %1482 = vmatprep.subr.mxu0 0.0
    %v1483 = vand.u32 %v109, 4294901760
    %v1484 = vsub.f32 %v109, %v1483
    %1485 = vmatpush1.msra.mxu0 %v1484
    %1486 = vmatprep.subr.mxu0 0.0
    %v1487 = vand.u32 %v110, 4294901760
    %v1488 = vsub.f32 %v110, %v1487
    %1489 = vmatpush1.msra.mxu0 %v1488
    %v1490 = vand.u32 %v43, 4294901760
    %v1491 = vsub.f32 %v43, %v1490
    %1492 = vmatprep.mubr.f32.mxu0 %v1491
    %v1493 = vand.u32 %v42, 4294901760
    %v1494 = vsub.f32 %v42, %v1493
    %1495 = vmatmul.mubr.f32.gmra.mrb[0].mxu0 %v1494
    %v1496 = vpop.f32.mrb[0].mxu0
    %v1497 = vadd.f32 %v1359, %v1496
    %v1498 = vpop.f32.mrb[0].mxu0
    %1499 = vdwg.mxu0
    %1500 = vmatprep.subr.mxu0 0.0
    %v1501 = vand.u32 %v79, 4294901760
    %1502 = vmatpush1.msra.mxu0 %v1501
    %1503 = vmatprep.subr.mxu0 0.0
    %v1504 = vand.u32 %v80, 4294901760
    %1505 = vmatpush1.msra.mxu0 %v1504
    %1506 = vmatprep.subr.mxu0 0.0
    %v1507 = vand.u32 %v81, 4294901760
    %1508 = vmatpush1.msra.mxu0 %v1507
    %1509 = vmatprep.subr.mxu0 0.0
    %v1510 = vand.u32 %v82, 4294901760
    %1511 = vmatpush1.msra.mxu0 %v1510
    %1512 = vmatprep.subr.mxu0 0.0
    %v1513 = vand.u32 %v83, 4294901760
    %1514 = vmatpush1.msra.mxu0 %v1513
    %1515 = vmatprep.subr.mxu0 0.0
    %v1516 = vand.u32 %v84, 4294901760
    %1517 = vmatpush1.msra.mxu0 %v1516
    %1518 = vmatprep.subr.mxu0 0.0
    %v1519 = vand.u32 %v85, 4294901760
    %1520 = vmatpush1.msra.mxu0 %v1519
    %1521 = vmatprep.subr.mxu0 0.0
    %v1522 = vand.u32 %v86, 4294901760
    %1523 = vmatpush1.msra.mxu0 %v1522
    %1524 = vmatprep.subr.mxu0 0.0
    %v1525 = vand.u32 %v87, 4294901760
    %1526 = vmatpush1.msra.mxu0 %v1525
    %1527 = vmatprep.subr.mxu0 0.0
    %v1528 = vand.u32 %v88, 4294901760
    %1529 = vmatpush1.msra.mxu0 %v1528
    %1530 = vmatprep.subr.mxu0 0.0
    %v1531 = vand.u32 %v89, 4294901760
    %1532 = vmatpush1.msra.mxu0 %v1531
    %1533 = vmatprep.subr.mxu0 0.0
    %v1534 = vand.u32 %v90, 4294901760
    %1535 = vmatpush1.msra.mxu0 %v1534
    %1536 = vmatprep.subr.mxu0 0.0
    %v1537 = vand.u32 %v91, 4294901760
    %1538 = vmatpush1.msra.mxu0 %v1537
    %1539 = vmatprep.subr.mxu0 0.0
    %v1540 = vand.u32 %v92, 4294901760
    %1541 = vmatpush1.msra.mxu0 %v1540
    %1542 = vmatprep.subr.mxu0 0.0
    %v1543 = vand.u32 %v93, 4294901760
    %1544 = vmatpush1.msra.mxu0 %v1543
    %1545 = vmatprep.subr.mxu0 0.0
    %v1546 = vand.u32 %v94, 4294901760
    %1547 = vmatpush1.msra.mxu0 %v1546
    %1548 = vmatprep.subr.mxu0 0.0
    %v1549 = vand.u32 %v95, 4294901760
    %1550 = vmatpush1.msra.mxu0 %v1549
    %1551 = vmatprep.subr.mxu0 0.0
    %v1552 = vand.u32 %v96, 4294901760
    %1553 = vmatpush1.msra.mxu0 %v1552
    %1554 = vmatprep.subr.mxu0 0.0
    %v1555 = vand.u32 %v97, 4294901760
    %1556 = vmatpush1.msra.mxu0 %v1555
    %1557 = vmatprep.subr.mxu0 0.0
    %v1558 = vand.u32 %v98, 4294901760
    %1559 = vmatpush1.msra.mxu0 %v1558
    %1560 = vmatprep.subr.mxu0 0.0
    %v1561 = vand.u32 %v99, 4294901760
    %1562 = vmatpush1.msra.mxu0 %v1561
    %1563 = vmatprep.subr.mxu0 0.0
    %v1564 = vand.u32 %v100, 4294901760
    %1565 = vmatpush1.msra.mxu0 %v1564
    %1566 = vmatprep.subr.mxu0 0.0
    %v1567 = vand.u32 %v101, 4294901760
    %1568 = vmatpush1.msra.mxu0 %v1567
    %1569 = vmatprep.subr.mxu0 0.0
    %v1570 = vand.u32 %v102, 4294901760
    %1571 = vmatpush1.msra.mxu0 %v1570
    %1572 = vmatprep.subr.mxu0 0.0
    %v1573 = vand.u32 %v103, 4294901760
    %1574 = vmatpush1.msra.mxu0 %v1573
    %1575 = vmatprep.subr.mxu0 0.0
    %v1576 = vand.u32 %v104, 4294901760
    %1577 = vmatpush1.msra.mxu0 %v1576
    %1578 = vmatprep.subr.mxu0 0.0
    %v1579 = vand.u32 %v105, 4294901760
    %1580 = vmatpush1.msra.mxu0 %v1579
    %1581 = vmatprep.subr.mxu0 0.0
    %v1582 = vand.u32 %v106, 4294901760
    %1583 = vmatpush1.msra.mxu0 %v1582
    %1584 = vmatprep.subr.mxu0 0.0
    %v1585 = vand.u32 %v107, 4294901760
    %1586 = vmatpush1.msra.mxu0 %v1585
    %1587 = vmatprep.subr.mxu0 0.0
    %v1588 = vand.u32 %v108, 4294901760
    %1589 = vmatpush1.msra.mxu0 %v1588
    %1590 = vmatprep.subr.mxu0 0.0
    %v1591 = vand.u32 %v109, 4294901760
    %1592 = vmatpush1.msra.mxu0 %v1591
    %1593 = vmatprep.subr.mxu0 0.0
    %v1594 = vand.u32 %v110, 4294901760
    %1595 = vmatpush1.msra.mxu0 %v1594
    %v1596 = vand.u32 %v43, 4294901760
    %v1597 = vsub.f32 %v43, %v1596
    %v1598 = vand.u32 %v1597, 4294901760
    %1599 = vmatprep.mubr.f32.mxu0 %v1598
    %v1600 = vand.u32 %v42, 4294901760
    %v1601 = vsub.f32 %v42, %v1600
    %v1602 = vand.u32 %v1601, 4294901760
    %1603 = vmatmul.mubr.f32.gmra.mrb[0].mxu0 %v1602
    %v1604 = vpop.f32.mrb[0].mxu0
    %v1605 = vadd.f32 %v1497, %v1604
    %v1606 = vpop.f32.mrb[0].mxu0
    %1607 = vdwg.mxu0
    %1608 = vmatprep.subr.mxu0 0.0
    %v1609 = vand.u32 %v79, 4294901760
    %v1610 = vsub.f32 %v79, %v1609
    %v1611 = vand.u32 %v1610, 4294901760
    %1612 = vmatpush1.msra.mxu0 %v1611
    %1613 = vmatprep.subr.mxu0 0.0
    %v1614 = vand.u32 %v80, 4294901760
    %v1615 = vsub.f32 %v80, %v1614
    %v1616 = vand.u32 %v1615, 4294901760
    %1617 = vmatpush1.msra.mxu0 %v1616
    %1618 = vmatprep.subr.mxu0 0.0
    %v1619 = vand.u32 %v81, 4294901760
    %v1620 = vsub.f32 %v81, %v1619
    %v1621 = vand.u32 %v1620, 4294901760
    %1622 = vmatpush1.msra.mxu0 %v1621
    %1623 = vmatprep.subr.mxu0 0.0
    %v1624 = vand.u32 %v82, 4294901760
    %v1625 = vsub.f32 %v82, %v1624
    %v1626 = vand.u32 %v1625, 4294901760
    %1627 = vmatpush1.msra.mxu0 %v1626
    %1628 = vmatprep.subr.mxu0 0.0
    %v1629 = vand.u32 %v83, 4294901760
    %v1630 = vsub.f32 %v83, %v1629
    %v1631 = vand.u32 %v1630, 4294901760
    %1632 = vmatpush1.msra.mxu0 %v1631
    %1633 = vmatprep.subr.mxu0 0.0
    %v1634 = vand.u32 %v84, 4294901760
    %v1635 = vsub.f32 %v84, %v1634
    %v1636 = vand.u32 %v1635, 4294901760
    %1637 = vmatpush1.msra.mxu0 %v1636
    %1638 = vmatprep.subr.mxu0 0.0
    %v1639 = vand.u32 %v85, 4294901760
    %v1640 = vsub.f32 %v85, %v1639
    %v1641 = vand.u32 %v1640, 4294901760
    %1642 = vmatpush1.msra.mxu0 %v1641
    %1643 = vmatprep.subr.mxu0 0.0
    %v1644 = vand.u32 %v86, 4294901760
    %v1645 = vsub.f32 %v86, %v1644
    %v1646 = vand.u32 %v1645, 4294901760
    %1647 = vmatpush1.msra.mxu0 %v1646
    %1648 = vmatprep.subr.mxu0 0.0
    %v1649 = vand.u32 %v87, 4294901760
    %v1650 = vsub.f32 %v87, %v1649
    %v1651 = vand.u32 %v1650, 4294901760
    %1652 = vmatpush1.msra.mxu0 %v1651
    %1653 = vmatprep.subr.mxu0 0.0
    %v1654 = vand.u32 %v88, 4294901760
    %v1655 = vsub.f32 %v88, %v1654
    %v1656 = vand.u32 %v1655, 4294901760
    %1657 = vmatpush1.msra.mxu0 %v1656
    %1658 = vmatprep.subr.mxu0 0.0
    %v1659 = vand.u32 %v89, 4294901760
    %v1660 = vsub.f32 %v89, %v1659
    %v1661 = vand.u32 %v1660, 4294901760
    %1662 = vmatpush1.msra.mxu0 %v1661
    %1663 = vmatprep.subr.mxu0 0.0
    %v1664 = vand.u32 %v90, 4294901760
    %v1665 = vsub.f32 %v90, %v1664
    %v1666 = vand.u32 %v1665, 4294901760
    %1667 = vmatpush1.msra.mxu0 %v1666
    %1668 = vmatprep.subr.mxu0 0.0
    %v1669 = vand.u32 %v91, 4294901760
    %v1670 = vsub.f32 %v91, %v1669
    %v1671 = vand.u32 %v1670, 4294901760
    %1672 = vmatpush1.msra.mxu0 %v1671
    %1673 = vmatprep.subr.mxu0 0.0
    %v1674 = vand.u32 %v92, 4294901760
    %v1675 = vsub.f32 %v92, %v1674
    %v1676 = vand.u32 %v1675, 4294901760
    %1677 = vmatpush1.msra.mxu0 %v1676
    %1678 = vmatprep.subr.mxu0 0.0
    %v1679 = vand.u32 %v93, 4294901760
    %v1680 = vsub.f32 %v93, %v1679
    %v1681 = vand.u32 %v1680, 4294901760
    %1682 = vmatpush1.msra.mxu0 %v1681
    %1683 = vmatprep.subr.mxu0 0.0
    %v1684 = vand.u32 %v94, 4294901760
    %v1685 = vsub.f32 %v94, %v1684
    %v1686 = vand.u32 %v1685, 4294901760
    %1687 = vmatpush1.msra.mxu0 %v1686
    %1688 = vmatprep.subr.mxu0 0.0
    %v1689 = vand.u32 %v95, 4294901760
    %v1690 = vsub.f32 %v95, %v1689
    %v1691 = vand.u32 %v1690, 4294901760
    %1692 = vmatpush1.msra.mxu0 %v1691
    %1693 = vmatprep.subr.mxu0 0.0
    %v1694 = vand.u32 %v96, 4294901760
    %v1695 = vsub.f32 %v96, %v1694
    %v1696 = vand.u32 %v1695, 4294901760
    %1697 = vmatpush1.msra.mxu0 %v1696
    %1698 = vmatprep.subr.mxu0 0.0
    %v1699 = vand.u32 %v97, 4294901760
    %v1700 = vsub.f32 %v97, %v1699
    %v1701 = vand.u32 %v1700, 4294901760
    %1702 = vmatpush1.msra.mxu0 %v1701
    %1703 = vmatprep.subr.mxu0 0.0
    %v1704 = vand.u32 %v98, 4294901760
    %v1705 = vsub.f32 %v98, %v1704
    %v1706 = vand.u32 %v1705, 4294901760
    %1707 = vmatpush1.msra.mxu0 %v1706
    %1708 = vmatprep.subr.mxu0 0.0
    %v1709 = vand.u32 %v99, 4294901760
    %v1710 = vsub.f32 %v99, %v1709
    %v1711 = vand.u32 %v1710, 4294901760
    %1712 = vmatpush1.msra.mxu0 %v1711
    %1713 = vmatprep.subr.mxu0 0.0
    %v1714 = vand.u32 %v100, 4294901760
    %v1715 = vsub.f32 %v100, %v1714
    %v1716 = vand.u32 %v1715, 4294901760
    %1717 = vmatpush1.msra.mxu0 %v1716
    %1718 = vmatprep.subr.mxu0 0.0
    %v1719 = vand.u32 %v101, 4294901760
    %v1720 = vsub.f32 %v101, %v1719
    %v1721 = vand.u32 %v1720, 4294901760
    %1722 = vmatpush1.msra.mxu0 %v1721
    %1723 = vmatprep.subr.mxu0 0.0
    %v1724 = vand.u32 %v102, 4294901760
    %v1725 = vsub.f32 %v102, %v1724
    %v1726 = vand.u32 %v1725, 4294901760
    %1727 = vmatpush1.msra.mxu0 %v1726
    %1728 = vmatprep.subr.mxu0 0.0
    %v1729 = vand.u32 %v103, 4294901760
    %v1730 = vsub.f32 %v103, %v1729
    %v1731 = vand.u32 %v1730, 4294901760
    %1732 = vmatpush1.msra.mxu0 %v1731
    %1733 = vmatprep.subr.mxu0 0.0
    %v1734 = vand.u32 %v104, 4294901760
    %v1735 = vsub.f32 %v104, %v1734
    %v1736 = vand.u32 %v1735, 4294901760
    %1737 = vmatpush1.msra.mxu0 %v1736
    %1738 = vmatprep.subr.mxu0 0.0
    %v1739 = vand.u32 %v105, 4294901760
    %v1740 = vsub.f32 %v105, %v1739
    %v1741 = vand.u32 %v1740, 4294901760
    %1742 = vmatpush1.msra.mxu0 %v1741
    %1743 = vmatprep.subr.mxu0 0.0
    %v1744 = vand.u32 %v106, 4294901760
    %v1745 = vsub.f32 %v106, %v1744
    %v1746 = vand.u32 %v1745, 4294901760
    %1747 = vmatpush1.msra.mxu0 %v1746
    %1748 = vmatprep.subr.mxu0 0.0
    %v1749 = vand.u32 %v107, 4294901760
    %v1750 = vsub.f32 %v107, %v1749
    %v1751 = vand.u32 %v1750, 4294901760
    %1752 = vmatpush1.msra.mxu0 %v1751
    %1753 = vmatprep.subr.mxu0 0.0
    %v1754 = vand.u32 %v108, 4294901760
    %v1755 = vsub.f32 %v108, %v1754
    %v1756 = vand.u32 %v1755, 4294901760
    %1757 = vmatpush1.msra.mxu0 %v1756
    %1758 = vmatprep.subr.mxu0 0.0
    %v1759 = vand.u32 %v109, 4294901760
    %v1760 = vsub.f32 %v109, %v1759
    %v1761 = vand.u32 %v1760, 4294901760
    %1762 = vmatpush1.msra.mxu0 %v1761
    %1763 = vmatprep.subr.mxu0 0.0
    %v1764 = vand.u32 %v110, 4294901760
    %v1765 = vsub.f32 %v110, %v1764
    %v1766 = vand.u32 %v1765, 4294901760
    %1767 = vmatpush1.msra.mxu0 %v1766
    %v1768 = vand.u32 %v43, 4294901760
    %1769 = vmatprep.mubr.f32.mxu0 %v1768
    %v1770 = vand.u32 %v42, 4294901760
    %1771 = vmatmul.mubr.f32.gmra.mrb[0].mxu0 %v1770
    %v1772 = vpop.f32.mrb[0].mxu0
    %v1773 = vadd.f32 %v1605, %v1772
    %v1774 = vpop.f32.mrb[0].mxu0
    %1775 = vdwg.mxu0
    %1776 = vmatprep.subr.mxu0 0.0
    %v1777 = vand.u32 %v79, 4294901760
    %1778 = vmatpush1.msra.mxu0 %v1777
    %1779 = vmatprep.subr.mxu0 0.0
    %v1780 = vand.u32 %v80, 4294901760
    %1781 = vmatpush1.msra.mxu0 %v1780
    %1782 = vmatprep.subr.mxu0 0.0
    %v1783 = vand.u32 %v81, 4294901760
    %1784 = vmatpush1.msra.mxu0 %v1783
    %1785 = vmatprep.subr.mxu0 0.0
    %v1786 = vand.u32 %v82, 4294901760
    %1787 = vmatpush1.msra.mxu0 %v1786
    %1788 = vmatprep.subr.mxu0 0.0
    %v1789 = vand.u32 %v83, 4294901760
    %1790 = vmatpush1.msra.mxu0 %v1789
    %1791 = vmatprep.subr.mxu0 0.0
    %v1792 = vand.u32 %v84, 4294901760
    %1793 = vmatpush1.msra.mxu0 %v1792
    %1794 = vmatprep.subr.mxu0 0.0
    %v1795 = vand.u32 %v85, 4294901760
    %1796 = vmatpush1.msra.mxu0 %v1795
    %1797 = vmatprep.subr.mxu0 0.0
    %v1798 = vand.u32 %v86, 4294901760
    %1799 = vmatpush1.msra.mxu0 %v1798
    %1800 = vmatprep.subr.mxu0 0.0
    %v1801 = vand.u32 %v87, 4294901760
    %1802 = vmatpush1.msra.mxu0 %v1801
    %1803 = vmatprep.subr.mxu0 0.0
    %v1804 = vand.u32 %v88, 4294901760
    %1805 = vmatpush1.msra.mxu0 %v1804
    %1806 = vmatprep.subr.mxu0 0.0
    %v1807 = vand.u32 %v89, 4294901760
    %1808 = vmatpush1.msra.mxu0 %v1807
    %1809 = vmatprep.subr.mxu0 0.0
    %v1810 = vand.u32 %v90, 4294901760
    %1811 = vmatpush1.msra.mxu0 %v1810
    %1812 = vmatprep.subr.mxu0 0.0
    %v1813 = vand.u32 %v91, 4294901760
    %1814 = vmatpush1.msra.mxu0 %v1813
    %1815 = vmatprep.subr.mxu0 0.0
    %v1816 = vand.u32 %v92, 4294901760
    %1817 = vmatpush1.msra.mxu0 %v1816
    %1818 = vmatprep.subr.mxu0 0.0
    %v1819 = vand.u32 %v93, 4294901760
    %1820 = vmatpush1.msra.mxu0 %v1819
    %1821 = vmatprep.subr.mxu0 0.0
    %v1822 = vand.u32 %v94, 4294901760
    %1823 = vmatpush1.msra.mxu0 %v1822
    %1824 = vmatprep.subr.mxu0 0.0
    %v1825 = vand.u32 %v95, 4294901760
    %1826 = vmatpush1.msra.mxu0 %v1825
    %1827 = vmatprep.subr.mxu0 0.0
    %v1828 = vand.u32 %v96, 4294901760
    %1829 = vmatpush1.msra.mxu0 %v1828
    %1830 = vmatprep.subr.mxu0 0.0
    %v1831 = vand.u32 %v97, 4294901760
    %1832 = vmatpush1.msra.mxu0 %v1831
    %1833 = vmatprep.subr.mxu0 0.0
    %v1834 = vand.u32 %v98, 4294901760
    %1835 = vmatpush1.msra.mxu0 %v1834
    %1836 = vmatprep.subr.mxu0 0.0
    %v1837 = vand.u32 %v99, 4294901760
    %1838 = vmatpush1.msra.mxu0 %v1837
    %1839 = vmatprep.subr.mxu0 0.0
    %v1840 = vand.u32 %v100, 4294901760
    %1841 = vmatpush1.msra.mxu0 %v1840
    %1842 = vmatprep.subr.mxu0 0.0
    %v1843 = vand.u32 %v101, 4294901760
    %1844 = vmatpush1.msra.mxu0 %v1843
    %1845 = vmatprep.subr.mxu0 0.0
    %v1846 = vand.u32 %v102, 4294901760
    %1847 = vmatpush1.msra.mxu0 %v1846
    %1848 = vmatprep.subr.mxu0 0.0
    %v1849 = vand.u32 %v103, 4294901760
    %1850 = vmatpush1.msra.mxu0 %v1849
    %1851 = vmatprep.subr.mxu0 0.0
    %v1852 = vand.u32 %v104, 4294901760
    %1853 = vmatpush1.msra.mxu0 %v1852
    %1854 = vmatprep.subr.mxu0 0.0
    %v1855 = vand.u32 %v105, 4294901760
    %1856 = vmatpush1.msra.mxu0 %v1855
    %1857 = vmatprep.subr.mxu0 0.0
    %v1858 = vand.u32 %v106, 4294901760
    %1859 = vmatpush1.msra.mxu0 %v1858
    %1860 = vmatprep.subr.mxu0 0.0
    %v1861 = vand.u32 %v107, 4294901760
    %1862 = vmatpush1.msra.mxu0 %v1861
    %1863 = vmatprep.subr.mxu0 0.0
    %v1864 = vand.u32 %v108, 4294901760
    %1865 = vmatpush1.msra.mxu0 %v1864
    %1866 = vmatprep.subr.mxu0 0.0
    %v1867 = vand.u32 %v109, 4294901760
    %1868 = vmatpush1.msra.mxu0 %v1867
    %1869 = vmatprep.subr.mxu0 0.0
    %v1870 = vand.u32 %v110, 4294901760
    %1871 = vmatpush1.msra.mxu0 %v1870
    %v1872 = vand.u32 %v43, 4294901760
    %1873 = vmatprep.mubr.f32.mxu0 %v1872
    %v1874 = vand.u32 %v42, 4294901760
    %1875 = vmatmul.mubr.f32.gmra.mrb[0].mxu0 %v1874
    %v1876 = vpop.f32.mrb[0].mxu0
    %v1877 = vadd.f32 %v1773, %v1876
    %v1878 = vpop.f32.mrb[0].mxu0
    %1879 = vdwg.mxu0
    %1880 = vmatprep.subr.mxu0 0.0
    %v1881 = vand.u32 %v111, 4294901760
    %1882 = vmatpush1.msra.mxu0 %v1881
    %1883 = vmatprep.subr.mxu0 0.0
    %v1884 = vand.u32 %v112, 4294901760
    %1885 = vmatpush1.msra.mxu0 %v1884
    %1886 = vmatprep.subr.mxu0 0.0
    %v1887 = vand.u32 %v113, 4294901760
    %1888 = vmatpush1.msra.mxu0 %v1887
    %1889 = vmatprep.subr.mxu0 0.0
    %v1890 = vand.u32 %v114, 4294901760
    %1891 = vmatpush1.msra.mxu0 %v1890
    %1892 = vmatprep.subr.mxu0 0.0
    %v1893 = vand.u32 %v115, 4294901760
    %1894 = vmatpush1.msra.mxu0 %v1893
    %1895 = vmatprep.subr.mxu0 0.0
    %v1896 = vand.u32 %v116, 4294901760
    %1897 = vmatpush1.msra.mxu0 %v1896
    %1898 = vmatprep.subr.mxu0 0.0
    %v1899 = vand.u32 %v117, 4294901760
    %1900 = vmatpush1.msra.mxu0 %v1899
    %1901 = vmatprep.subr.mxu0 0.0
    %v1902 = vand.u32 %v118, 4294901760
    %1903 = vmatpush1.msra.mxu0 %v1902
    %1904 = vmatprep.subr.mxu0 0.0
    %v1905 = vand.u32 %v119, 4294901760
    %1906 = vmatpush1.msra.mxu0 %v1905
    %1907 = vmatprep.subr.mxu0 0.0
    %v1908 = vand.u32 %v120, 4294901760
    %1909 = vmatpush1.msra.mxu0 %v1908
    %1910 = vmatprep.subr.mxu0 0.0
    %v1911 = vand.u32 %v121, 4294901760
    %1912 = vmatpush1.msra.mxu0 %v1911
    %1913 = vmatprep.subr.mxu0 0.0
    %v1914 = vand.u32 %v122, 4294901760
    %1915 = vmatpush1.msra.mxu0 %v1914
    %1916 = vmatprep.subr.mxu0 0.0
    %v1917 = vand.u32 %v123, 4294901760
    %1918 = vmatpush1.msra.mxu0 %v1917
    %1919 = vmatprep.subr.mxu0 0.0
    %v1920 = vand.u32 %v124, 4294901760
    %1921 = vmatpush1.msra.mxu0 %v1920
    %1922 = vmatprep.subr.mxu0 0.0
    %v1923 = vand.u32 %v125, 4294901760
    %1924 = vmatpush1.msra.mxu0 %v1923
    %1925 = vmatprep.subr.mxu0 0.0
    %v1926 = vand.u32 %v126, 4294901760
    %1927 = vmatpush1.msra.mxu0 %v1926
    %1928 = vmatprep.subr.mxu0 0.0
    %v1929 = vand.u32 %v127, 4294901760
    %1930 = vmatpush1.msra.mxu0 %v1929
    %1931 = vmatprep.subr.mxu0 0.0
    %v1932 = vand.u32 %v128, 4294901760
    %1933 = vmatpush1.msra.mxu0 %v1932
    %1934 = vmatprep.subr.mxu0 0.0
    %v1935 = vand.u32 %v129, 4294901760
    %1936 = vmatpush1.msra.mxu0 %v1935
    %1937 = vmatprep.subr.mxu0 0.0
    %v1938 = vand.u32 %v130, 4294901760
    %1939 = vmatpush1.msra.mxu0 %v1938
    %1940 = vmatprep.subr.mxu0 0.0
    %v1941 = vand.u32 %v131, 4294901760
    %1942 = vmatpush1.msra.mxu0 %v1941
    %1943 = vmatprep.subr.mxu0 0.0
    %v1944 = vand.u32 %v132, 4294901760
    %1945 = vmatpush1.msra.mxu0 %v1944
    %1946 = vmatprep.subr.mxu0 0.0
    %v1947 = vand.u32 %v133, 4294901760
    %1948 = vmatpush1.msra.mxu0 %v1947
    %1949 = vmatprep.subr.mxu0 0.0
    %v1950 = vand.u32 %v134, 4294901760
    %1951 = vmatpush1.msra.mxu0 %v1950
    %1952 = vmatprep.subr.mxu0 0.0
    %v1953 = vand.u32 %v135, 4294901760
    %1954 = vmatpush1.msra.mxu0 %v1953
    %1955 = vmatprep.subr.mxu0 0.0
    %v1956 = vand.u32 %v136, 4294901760
    %1957 = vmatpush1.msra.mxu0 %v1956
    %1958 = vmatprep.subr.mxu0 0.0
    %v1959 = vand.u32 %v137, 4294901760
    %1960 = vmatpush1.msra.mxu0 %v1959
    %1961 = vmatprep.subr.mxu0 0.0
    %v1962 = vand.u32 %v138, 4294901760
    %1963 = vmatpush1.msra.mxu0 %v1962
    %1964 = vmatprep.subr.mxu0 0.0
    %v1965 = vand.u32 %v139, 4294901760
    %1966 = vmatpush1.msra.mxu0 %v1965
    %1967 = vmatprep.subr.mxu0 0.0
    %v1968 = vand.u32 %v140, 4294901760
    %1969 = vmatpush1.msra.mxu0 %v1968
    %1970 = vmatprep.subr.mxu0 0.0
    %v1971 = vand.u32 %v141, 4294901760
    %1972 = vmatpush1.msra.mxu0 %v1971
    %1973 = vmatprep.subr.mxu0 0.0
    %v1974 = vand.u32 %v142, 4294901760
    %1975 = vmatpush1.msra.mxu0 %v1974
    %v1976 = vand.u32 %v45, 4294901760
    %v1977 = vsub.f32 %v45, %v1976
    %v1978 = vand.u32 %v1977, 4294901760
    %v1979 = vsub.f32 %v1977, %v1978
    %v1980 = vand.u32 %v1979, 4294901760
    %1981 = vmatprep.mubr.f32.mxu0 %v1980
    %v1982 = vand.u32 %v44, 4294901760
    %v1983 = vsub.f32 %v44, %v1982
    %v1984 = vand.u32 %v1983, 4294901760
    %v1985 = vsub.f32 %v1983, %v1984
    %v1986 = vand.u32 %v1985, 4294901760
    %1987 = vmatmul.mubr.f32.gmra.mrb[0].mxu0 %v1986
    %v1988 = vpop.f32.mrb[0].mxu0
    %v1989 = vadd.f32 %v1877, %v1988
    %v1990 = vpop.f32.mrb[0].mxu0
    %1991 = vdwg.mxu0
    %1992 = vmatprep.subr.mxu0 0.0
    %v1993 = vand.u32 %v111, 4294901760
    %v1994 = vsub.f32 %v111, %v1993
    %v1995 = vand.u32 %v1994, 4294901760
    %v1996 = vsub.f32 %v1994, %v1995
    %v1997 = vand.u32 %v1996, 4294901760
    %1998 = vmatpush1.msra.mxu0 %v1997
    %1999 = vmatprep.subr.mxu0 0.0
    %v2000 = vand.u32 %v112, 4294901760
    %v2001 = vsub.f32 %v112, %v2000
    %v2002 = vand.u32 %v2001, 4294901760
    %v2003 = vsub.f32 %v2001, %v2002
    %v2004 = vand.u32 %v2003, 4294901760
    %2005 = vmatpush1.msra.mxu0 %v2004
    %2006 = vmatprep.subr.mxu0 0.0
    %v2007 = vand.u32 %v113, 4294901760
    %v2008 = vsub.f32 %v113, %v2007
    %v2009 = vand.u32 %v2008, 4294901760
    %v2010 = vsub.f32 %v2008, %v2009
    %v2011 = vand.u32 %v2010, 4294901760
    %2012 = vmatpush1.msra.mxu0 %v2011
    %2013 = vmatprep.subr.mxu0 0.0
    %v2014 = vand.u32 %v114, 4294901760
    %v2015 = vsub.f32 %v114, %v2014
    %v2016 = vand.u32 %v2015, 4294901760
    %v2017 = vsub.f32 %v2015, %v2016
    %v2018 = vand.u32 %v2017, 4294901760
    %2019 = vmatpush1.msra.mxu0 %v2018
    %2020 = vmatprep.subr.mxu0 0.0
    %v2021 = vand.u32 %v115, 4294901760
    %v2022 = vsub.f32 %v115, %v2021
    %v2023 = vand.u32 %v2022, 4294901760
    %v2024 = vsub.f32 %v2022, %v2023
    %v2025 = vand.u32 %v2024, 4294901760
    %2026 = vmatpush1.msra.mxu0 %v2025
    %2027 = vmatprep.subr.mxu0 0.0
    %v2028 = vand.u32 %v116, 4294901760
    %v2029 = vsub.f32 %v116, %v2028
    %v2030 = vand.u32 %v2029, 4294901760
    %v2031 = vsub.f32 %v2029, %v2030
    %v2032 = vand.u32 %v2031, 4294901760
    %2033 = vmatpush1.msra.mxu0 %v2032
    %2034 = vmatprep.subr.mxu0 0.0
    %v2035 = vand.u32 %v117, 4294901760
    %v2036 = vsub.f32 %v117, %v2035
    %v2037 = vand.u32 %v2036, 4294901760
    %v2038 = vsub.f32 %v2036, %v2037
    %v2039 = vand.u32 %v2038, 4294901760
    %2040 = vmatpush1.msra.mxu0 %v2039
    %2041 = vmatprep.subr.mxu0 0.0
    %v2042 = vand.u32 %v118, 4294901760
    %v2043 = vsub.f32 %v118, %v2042
    %v2044 = vand.u32 %v2043, 4294901760
    %v2045 = vsub.f32 %v2043, %v2044
    %v2046 = vand.u32 %v2045, 4294901760
    %2047 = vmatpush1.msra.mxu0 %v2046
    %2048 = vmatprep.subr.mxu0 0.0
    %v2049 = vand.u32 %v119, 4294901760
    %v2050 = vsub.f32 %v119, %v2049
    %v2051 = vand.u32 %v2050, 4294901760
    %v2052 = vsub.f32 %v2050, %v2051
    %v2053 = vand.u32 %v2052, 4294901760
    %2054 = vmatpush1.msra.mxu0 %v2053
    %2055 = vmatprep.subr.mxu0 0.0
    %v2056 = vand.u32 %v120, 4294901760
    %v2057 = vsub.f32 %v120, %v2056
    %v2058 = vand.u32 %v2057, 4294901760
    %v2059 = vsub.f32 %v2057, %v2058
    %v2060 = vand.u32 %v2059, 4294901760
    %2061 = vmatpush1.msra.mxu0 %v2060
    %2062 = vmatprep.subr.mxu0 0.0
    %v2063 = vand.u32 %v121, 4294901760
    %v2064 = vsub.f32 %v121, %v2063
    %v2065 = vand.u32 %v2064, 4294901760
    %v2066 = vsub.f32 %v2064, %v2065
    %v2067 = vand.u32 %v2066, 4294901760
    %2068 = vmatpush1.msra.mxu0 %v2067
    %2069 = vmatprep.subr.mxu0 0.0
    %v2070 = vand.u32 %v122, 4294901760
    %v2071 = vsub.f32 %v122, %v2070
    %v2072 = vand.u32 %v2071, 4294901760
    %v2073 = vsub.f32 %v2071, %v2072
    %v2074 = vand.u32 %v2073, 4294901760
    %2075 = vmatpush1.msra.mxu0 %v2074
    %2076 = vmatprep.subr.mxu0 0.0
    %v2077 = vand.u32 %v123, 4294901760
    %v2078 = vsub.f32 %v123, %v2077
    %v2079 = vand.u32 %v2078, 4294901760
    %v2080 = vsub.f32 %v2078, %v2079
    %v2081 = vand.u32 %v2080, 4294901760
    %2082 = vmatpush1.msra.mxu0 %v2081
    %2083 = vmatprep.subr.mxu0 0.0
    %v2084 = vand.u32 %v124, 4294901760
    %v2085 = vsub.f32 %v124, %v2084
    %v2086 = vand.u32 %v2085, 4294901760
    %v2087 = vsub.f32 %v2085, %v2086
    %v2088 = vand.u32 %v2087, 4294901760
    %2089 = vmatpush1.msra.mxu0 %v2088
    %2090 = vmatprep.subr.mxu0 0.0
    %v2091 = vand.u32 %v125, 4294901760
    %v2092 = vsub.f32 %v125, %v2091
    %v2093 = vand.u32 %v2092, 4294901760
    %v2094 = vsub.f32 %v2092, %v2093
    %v2095 = vand.u32 %v2094, 4294901760
    %2096 = vmatpush1.msra.mxu0 %v2095
    %2097 = vmatprep.subr.mxu0 0.0
    %v2098 = vand.u32 %v126, 4294901760
    %v2099 = vsub.f32 %v126, %v2098
    %v2100 = vand.u32 %v2099, 4294901760
    %v2101 = vsub.f32 %v2099, %v2100
    %v2102 = vand.u32 %v2101, 4294901760
    %2103 = vmatpush1.msra.mxu0 %v2102
    %2104 = vmatprep.subr.mxu0 0.0
    %v2105 = vand.u32 %v127, 4294901760
    %v2106 = vsub.f32 %v127, %v2105
    %v2107 = vand.u32 %v2106, 4294901760
    %v2108 = vsub.f32 %v2106, %v2107
    %v2109 = vand.u32 %v2108, 4294901760
    %2110 = vmatpush1.msra.mxu0 %v2109
    %2111 = vmatprep.subr.mxu0 0.0
    %v2112 = vand.u32 %v128, 4294901760
    %v2113 = vsub.f32 %v128, %v2112
    %v2114 = vand.u32 %v2113, 4294901760
    %v2115 = vsub.f32 %v2113, %v2114
    %v2116 = vand.u32 %v2115, 4294901760
    %2117 = vmatpush1.msra.mxu0 %v2116
    %2118 = vmatprep.subr.mxu0 0.0
    %v2119 = vand.u32 %v129, 4294901760
    %v2120 = vsub.f32 %v129, %v2119
    %v2121 = vand.u32 %v2120, 4294901760
    %v2122 = vsub.f32 %v2120, %v2121
    %v2123 = vand.u32 %v2122, 4294901760
    %2124 = vmatpush1.msra.mxu0 %v2123
    %2125 = vmatprep.subr.mxu0 0.0
    %v2126 = vand.u32 %v130, 4294901760
    %v2127 = vsub.f32 %v130, %v2126
    %v2128 = vand.u32 %v2127, 4294901760
    %v2129 = vsub.f32 %v2127, %v2128
    %v2130 = vand.u32 %v2129, 4294901760
    %2131 = vmatpush1.msra.mxu0 %v2130
    %2132 = vmatprep.subr.mxu0 0.0
    %v2133 = vand.u32 %v131, 4294901760
    %v2134 = vsub.f32 %v131, %v2133
    %v2135 = vand.u32 %v2134, 4294901760
    %v2136 = vsub.f32 %v2134, %v2135
    %v2137 = vand.u32 %v2136, 4294901760
    %2138 = vmatpush1.msra.mxu0 %v2137
    %2139 = vmatprep.subr.mxu0 0.0
    %v2140 = vand.u32 %v132, 4294901760
    %v2141 = vsub.f32 %v132, %v2140
    %v2142 = vand.u32 %v2141, 4294901760
    %v2143 = vsub.f32 %v2141, %v2142
    %v2144 = vand.u32 %v2143, 4294901760
    %2145 = vmatpush1.msra.mxu0 %v2144
    %2146 = vmatprep.subr.mxu0 0.0
    %v2147 = vand.u32 %v133, 4294901760
    %v2148 = vsub.f32 %v133, %v2147
    %v2149 = vand.u32 %v2148, 4294901760
    %v2150 = vsub.f32 %v2148, %v2149
    %v2151 = vand.u32 %v2150, 4294901760
    %2152 = vmatpush1.msra.mxu0 %v2151
    %2153 = vmatprep.subr.mxu0 0.0
    %v2154 = vand.u32 %v134, 4294901760
    %v2155 = vsub.f32 %v134, %v2154
    %v2156 = vand.u32 %v2155, 4294901760
    %v2157 = vsub.f32 %v2155, %v2156
    %v2158 = vand.u32 %v2157, 4294901760
    %2159 = vmatpush1.msra.mxu0 %v2158
    %2160 = vmatprep.subr.mxu0 0.0
    %v2161 = vand.u32 %v135, 4294901760
    %v2162 = vsub.f32 %v135, %v2161
    %v2163 = vand.u32 %v2162, 4294901760
    %v2164 = vsub.f32 %v2162, %v2163
    %v2165 = vand.u32 %v2164, 4294901760
    %2166 = vmatpush1.msra.mxu0 %v2165
    %2167 = vmatprep.subr.mxu0 0.0
    %v2168 = vand.u32 %v136, 4294901760
    %v2169 = vsub.f32 %v136, %v2168
    %v2170 = vand.u32 %v2169, 4294901760
    %v2171 = vsub.f32 %v2169, %v2170
    %v2172 = vand.u32 %v2171, 4294901760
    %2173 = vmatpush1.msra.mxu0 %v2172
    %2174 = vmatprep.subr.mxu0 0.0
    %v2175 = vand.u32 %v137, 4294901760
    %v2176 = vsub.f32 %v137, %v2175
    %v2177 = vand.u32 %v2176, 4294901760
    %v2178 = vsub.f32 %v2176, %v2177
    %v2179 = vand.u32 %v2178, 4294901760
    %2180 = vmatpush1.msra.mxu0 %v2179
    %2181 = vmatprep.subr.mxu0 0.0
    %v2182 = vand.u32 %v138, 4294901760
    %v2183 = vsub.f32 %v138, %v2182
    %v2184 = vand.u32 %v2183, 4294901760
    %v2185 = vsub.f32 %v2183, %v2184
    %v2186 = vand.u32 %v2185, 4294901760
    %2187 = vmatpush1.msra.mxu0 %v2186
    %2188 = vmatprep.subr.mxu0 0.0
    %v2189 = vand.u32 %v139, 4294901760
    %v2190 = vsub.f32 %v139, %v2189
    %v2191 = vand.u32 %v2190, 4294901760
    %v2192 = vsub.f32 %v2190, %v2191
    %v2193 = vand.u32 %v2192, 4294901760
    %2194 = vmatpush1.msra.mxu0 %v2193
    %2195 = vmatprep.subr.mxu0 0.0
    %v2196 = vand.u32 %v140, 4294901760
    %v2197 = vsub.f32 %v140, %v2196
    %v2198 = vand.u32 %v2197, 4294901760
    %v2199 = vsub.f32 %v2197, %v2198
    %v2200 = vand.u32 %v2199, 4294901760
    %2201 = vmatpush1.msra.mxu0 %v2200
    %2202 = vmatprep.subr.mxu0 0.0
    %v2203 = vand.u32 %v141, 4294901760
    %v2204 = vsub.f32 %v141, %v2203
    %v2205 = vand.u32 %v2204, 4294901760
    %v2206 = vsub.f32 %v2204, %v2205
    %v2207 = vand.u32 %v2206, 4294901760
    %2208 = vmatpush1.msra.mxu0 %v2207
    %2209 = vmatprep.subr.mxu0 0.0
    %v2210 = vand.u32 %v142, 4294901760
    %v2211 = vsub.f32 %v142, %v2210
    %v2212 = vand.u32 %v2211, 4294901760
    %v2213 = vsub.f32 %v2211, %v2212
    %v2214 = vand.u32 %v2213, 4294901760
    %2215 = vmatpush1.msra.mxu0 %v2214
    %v2216 = vand.u32 %v45, 4294901760
    %2217 = vmatprep.mubr.f32.mxu0 %v2216
    %v2218 = vand.u32 %v44, 4294901760
    %2219 = vmatmul.mubr.f32.gmra.mrb[0].mxu0 %v2218
    %v2220 = vpop.f32.mrb[0].mxu0
    %v2221 = vadd.f32 %v1989, %v2220
    %v2222 = vpop.f32.mrb[0].mxu0
    %2223 = vdwg.mxu0
    %2224 = vmatprep.subr.mxu0 0.0
    %v2225 = vand.u32 %v111, 4294901760
    %v2226 = vsub.f32 %v111, %v2225
    %2227 = vmatpush1.msra.mxu0 %v2226
    %2228 = vmatprep.subr.mxu0 0.0
    %v2229 = vand.u32 %v112, 4294901760
    %v2230 = vsub.f32 %v112, %v2229
    %2231 = vmatpush1.msra.mxu0 %v2230
    %2232 = vmatprep.subr.mxu0 0.0
    %v2233 = vand.u32 %v113, 4294901760
    %v2234 = vsub.f32 %v113, %v2233
    %2235 = vmatpush1.msra.mxu0 %v2234
    %2236 = vmatprep.subr.mxu0 0.0
    %v2237 = vand.u32 %v114, 4294901760
    %v2238 = vsub.f32 %v114, %v2237
    %2239 = vmatpush1.msra.mxu0 %v2238
    %2240 = vmatprep.subr.mxu0 0.0
    %v2241 = vand.u32 %v115, 4294901760
    %v2242 = vsub.f32 %v115, %v2241
    %2243 = vmatpush1.msra.mxu0 %v2242
    %2244 = vmatprep.subr.mxu0 0.0
    %v2245 = vand.u32 %v116, 4294901760
    %v2246 = vsub.f32 %v116, %v2245
    %2247 = vmatpush1.msra.mxu0 %v2246
    %2248 = vmatprep.subr.mxu0 0.0
    %v2249 = vand.u32 %v117, 4294901760
    %v2250 = vsub.f32 %v117, %v2249
    %2251 = vmatpush1.msra.mxu0 %v2250
    %2252 = vmatprep.subr.mxu0 0.0
    %v2253 = vand.u32 %v118, 4294901760
    %v2254 = vsub.f32 %v118, %v2253
    %2255 = vmatpush1.msra.mxu0 %v2254
    %2256 = vmatprep.subr.mxu0 0.0
    %v2257 = vand.u32 %v119, 4294901760
    %v2258 = vsub.f32 %v119, %v2257
    %2259 = vmatpush1.msra.mxu0 %v2258
    %2260 = vmatprep.subr.mxu0 0.0
    %v2261 = vand.u32 %v120, 4294901760
    %v2262 = vsub.f32 %v120, %v2261
    %2263 = vmatpush1.msra.mxu0 %v2262
    %2264 = vmatprep.subr.mxu0 0.0
    %v2265 = vand.u32 %v121, 4294901760
    %v2266 = vsub.f32 %v121, %v2265
    %2267 = vmatpush1.msra.mxu0 %v2266
    %2268 = vmatprep.subr.mxu0 0.0
    %v2269 = vand.u32 %v122, 4294901760
    %v2270 = vsub.f32 %v122, %v2269
    %2271 = vmatpush1.msra.mxu0 %v2270
    %2272 = vmatprep.subr.mxu0 0.0
    %v2273 = vand.u32 %v123, 4294901760
    %v2274 = vsub.f32 %v123, %v2273
    %2275 = vmatpush1.msra.mxu0 %v2274
    %2276 = vmatprep.subr.mxu0 0.0
    %v2277 = vand.u32 %v124, 4294901760
    %v2278 = vsub.f32 %v124, %v2277
    %2279 = vmatpush1.msra.mxu0 %v2278
    %2280 = vmatprep.subr.mxu0 0.0
    %v2281 = vand.u32 %v125, 4294901760
    %v2282 = vsub.f32 %v125, %v2281
    %2283 = vmatpush1.msra.mxu0 %v2282
    %2284 = vmatprep.subr.mxu0 0.0
    %v2285 = vand.u32 %v126, 4294901760
    %v2286 = vsub.f32 %v126, %v2285
    %2287 = vmatpush1.msra.mxu0 %v2286
    %2288 = vmatprep.subr.mxu0 0.0
    %v2289 = vand.u32 %v127, 4294901760
    %v2290 = vsub.f32 %v127, %v2289
    %2291 = vmatpush1.msra.mxu0 %v2290
    %2292 = vmatprep.subr.mxu0 0.0
    %v2293 = vand.u32 %v128, 4294901760
    %v2294 = vsub.f32 %v128, %v2293
    %2295 = vmatpush1.msra.mxu0 %v2294
    %2296 = vmatprep.subr.mxu0 0.0
    %v2297 = vand.u32 %v129, 4294901760
    %v2298 = vsub.f32 %v129, %v2297
    %2299 = vmatpush1.msra.mxu0 %v2298
    %2300 = vmatprep.subr.mxu0 0.0
    %v2301 = vand.u32 %v130, 4294901760
    %v2302 = vsub.f32 %v130, %v2301
    %2303 = vmatpush1.msra.mxu0 %v2302
    %2304 = vmatprep.subr.mxu0 0.0
    %v2305 = vand.u32 %v131, 4294901760
    %v2306 = vsub.f32 %v131, %v2305
    %2307 = vmatpush1.msra.mxu0 %v2306
    %2308 = vmatprep.subr.mxu0 0.0
    %v2309 = vand.u32 %v132, 4294901760
    %v2310 = vsub.f32 %v132, %v2309
    %2311 = vmatpush1.msra.mxu0 %v2310
    %2312 = vmatprep.subr.mxu0 0.0
    %v2313 = vand.u32 %v133, 4294901760
    %v2314 = vsub.f32 %v133, %v2313
    %2315 = vmatpush1.msra.mxu0 %v2314
    %2316 = vmatprep.subr.mxu0 0.0
    %v2317 = vand.u32 %v134, 4294901760
    %v2318 = vsub.f32 %v134, %v2317
    %2319 = vmatpush1.msra.mxu0 %v2318
    %2320 = vmatprep.subr.mxu0 0.0
    %v2321 = vand.u32 %v135, 4294901760
    %v2322 = vsub.f32 %v135, %v2321
    %2323 = vmatpush1.msra.mxu0 %v2322
    %2324 = vmatprep.subr.mxu0 0.0
    %v2325 = vand.u32 %v136, 4294901760
    %v2326 = vsub.f32 %v136, %v2325
    %2327 = vmatpush1.msra.mxu0 %v2326
    %2328 = vmatprep.subr.mxu0 0.0
    %v2329 = vand.u32 %v137, 4294901760
    %v2330 = vsub.f32 %v137, %v2329
    %2331 = vmatpush1.msra.mxu0 %v2330
    %2332 = vmatprep.subr.mxu0 0.0
    %v2333 = vand.u32 %v138, 4294901760
    %v2334 = vsub.f32 %v138, %v2333
    %2335 = vmatpush1.msra.mxu0 %v2334
    %2336 = vmatprep.subr.mxu0 0.0
    %v2337 = vand.u32 %v139, 4294901760
    %v2338 = vsub.f32 %v139, %v2337
    %2339 = vmatpush1.msra.mxu0 %v2338
    %2340 = vmatprep.subr.mxu0 0.0
    %v2341 = vand.u32 %v140, 4294901760
    %v2342 = vsub.f32 %v140, %v2341
    %2343 = vmatpush1.msra.mxu0 %v2342
    %2344 = vmatprep.subr.mxu0 0.0
    %v2345 = vand.u32 %v141, 4294901760
    %v2346 = vsub.f32 %v141, %v2345
    %2347 = vmatpush1.msra.mxu0 %v2346
    %2348 = vmatprep.subr.mxu0 0.0
    %v2349 = vand.u32 %v142, 4294901760
    %v2350 = vsub.f32 %v142, %v2349
    %2351 = vmatpush1.msra.mxu0 %v2350
    %v2352 = vand.u32 %v45, 4294901760
    %v2353 = vsub.f32 %v45, %v2352
    %2354 = vmatprep.mubr.f32.mxu0 %v2353
    %v2355 = vand.u32 %v44, 4294901760
    %v2356 = vsub.f32 %v44, %v2355
    %2357 = vmatmul.mubr.f32.gmra.mrb[0].mxu0 %v2356
    %v2358 = vpop.f32.mrb[0].mxu0
    %v2359 = vadd.f32 %v2221, %v2358
    %v2360 = vpop.f32.mrb[0].mxu0
    %2361 = vdwg.mxu0
    %2362 = vmatprep.subr.mxu0 0.0
    %v2363 = vand.u32 %v111, 4294901760
    %2364 = vmatpush1.msra.mxu0 %v2363
    %2365 = vmatprep.subr.mxu0 0.0
    %v2366 = vand.u32 %v112, 4294901760
    %2367 = vmatpush1.msra.mxu0 %v2366
    %2368 = vmatprep.subr.mxu0 0.0
    %v2369 = vand.u32 %v113, 4294901760
    %2370 = vmatpush1.msra.mxu0 %v2369
    %2371 = vmatprep.subr.mxu0 0.0
    %v2372 = vand.u32 %v114, 4294901760
    %2373 = vmatpush1.msra.mxu0 %v2372
    %2374 = vmatprep.subr.mxu0 0.0
    %v2375 = vand.u32 %v115, 4294901760
    %2376 = vmatpush1.msra.mxu0 %v2375
    %2377 = vmatprep.subr.mxu0 0.0
    %v2378 = vand.u32 %v116, 4294901760
    %2379 = vmatpush1.msra.mxu0 %v2378
    %2380 = vmatprep.subr.mxu0 0.0
    %v2381 = vand.u32 %v117, 4294901760
    %2382 = vmatpush1.msra.mxu0 %v2381
    %2383 = vmatprep.subr.mxu0 0.0
    %v2384 = vand.u32 %v118, 4294901760
    %2385 = vmatpush1.msra.mxu0 %v2384
    %2386 = vmatprep.subr.mxu0 0.0
    %v2387 = vand.u32 %v119, 4294901760
    %2388 = vmatpush1.msra.mxu0 %v2387
    %2389 = vmatprep.subr.mxu0 0.0
    %v2390 = vand.u32 %v120, 4294901760
    %2391 = vmatpush1.msra.mxu0 %v2390
    %2392 = vmatprep.subr.mxu0 0.0
    %v2393 = vand.u32 %v121, 4294901760
    %2394 = vmatpush1.msra.mxu0 %v2393
    %2395 = vmatprep.subr.mxu0 0.0
    %v2396 = vand.u32 %v122, 4294901760
    %2397 = vmatpush1.msra.mxu0 %v2396
    %2398 = vmatprep.subr.mxu0 0.0
    %v2399 = vand.u32 %v123, 4294901760
    %2400 = vmatpush1.msra.mxu0 %v2399
    %2401 = vmatprep.subr.mxu0 0.0
    %v2402 = vand.u32 %v124, 4294901760
    %2403 = vmatpush1.msra.mxu0 %v2402
    %2404 = vmatprep.subr.mxu0 0.0
    %v2405 = vand.u32 %v125, 4294901760
    %2406 = vmatpush1.msra.mxu0 %v2405
    %2407 = vmatprep.subr.mxu0 0.0
    %v2408 = vand.u32 %v126, 4294901760
    %2409 = vmatpush1.msra.mxu0 %v2408
    %2410 = vmatprep.subr.mxu0 0.0
    %v2411 = vand.u32 %v127, 4294901760
    %2412 = vmatpush1.msra.mxu0 %v2411
    %2413 = vmatprep.subr.mxu0 0.0
    %v2414 = vand.u32 %v128, 4294901760
    %2415 = vmatpush1.msra.mxu0 %v2414
    %2416 = vmatprep.subr.mxu0 0.0
    %v2417 = vand.u32 %v129, 4294901760
    %2418 = vmatpush1.msra.mxu0 %v2417
    %2419 = vmatprep.subr.mxu0 0.0
    %v2420 = vand.u32 %v130, 4294901760
    %2421 = vmatpush1.msra.mxu0 %v2420
    %2422 = vmatprep.subr.mxu0 0.0
    %v2423 = vand.u32 %v131, 4294901760
    %2424 = vmatpush1.msra.mxu0 %v2423
    %2425 = vmatprep.subr.mxu0 0.0
    %v2426 = vand.u32 %v132, 4294901760
    %2427 = vmatpush1.msra.mxu0 %v2426
    %2428 = vmatprep.subr.mxu0 0.0
    %v2429 = vand.u32 %v133, 4294901760
    %2430 = vmatpush1.msra.mxu0 %v2429
    %2431 = vmatprep.subr.mxu0 0.0
    %v2432 = vand.u32 %v134, 4294901760
    %2433 = vmatpush1.msra.mxu0 %v2432
    %2434 = vmatprep.subr.mxu0 0.0
    %v2435 = vand.u32 %v135, 4294901760
    %2436 = vmatpush1.msra.mxu0 %v2435
    %2437 = vmatprep.subr.mxu0 0.0
    %v2438 = vand.u32 %v136, 4294901760
    %2439 = vmatpush1.msra.mxu0 %v2438
    %2440 = vmatprep.subr.mxu0 0.0
    %v2441 = vand.u32 %v137, 4294901760
    %2442 = vmatpush1.msra.mxu0 %v2441
    %2443 = vmatprep.subr.mxu0 0.0
    %v2444 = vand.u32 %v138, 4294901760
    %2445 = vmatpush1.msra.mxu0 %v2444
    %2446 = vmatprep.subr.mxu0 0.0
    %v2447 = vand.u32 %v139, 4294901760
    %2448 = vmatpush1.msra.mxu0 %v2447
    %2449 = vmatprep.subr.mxu0 0.0
    %v2450 = vand.u32 %v140, 4294901760
    %2451 = vmatpush1.msra.mxu0 %v2450
    %2452 = vmatprep.subr.mxu0 0.0
    %v2453 = vand.u32 %v141, 4294901760
    %2454 = vmatpush1.msra.mxu0 %v2453
    %2455 = vmatprep.subr.mxu0 0.0
    %v2456 = vand.u32 %v142, 4294901760
    %2457 = vmatpush1.msra.mxu0 %v2456
    %v2458 = vand.u32 %v45, 4294901760
    %v2459 = vsub.f32 %v45, %v2458
    %v2460 = vand.u32 %v2459, 4294901760
    %2461 = vmatprep.mubr.f32.mxu0 %v2460
    %v2462 = vand.u32 %v44, 4294901760
    %v2463 = vsub.f32 %v44, %v2462
    %v2464 = vand.u32 %v2463, 4294901760
    %2465 = vmatmul.mubr.f32.gmra.mrb[0].mxu0 %v2464
    %v2466 = vpop.f32.mrb[0].mxu0
    %v2467 = vadd.f32 %v2359, %v2466
    %v2468 = vpop.f32.mrb[0].mxu0
    %2469 = vdwg.mxu0
    %2470 = vmatprep.subr.mxu0 0.0
    %v2471 = vand.u32 %v111, 4294901760
    %v2472 = vsub.f32 %v111, %v2471
    %v2473 = vand.u32 %v2472, 4294901760
    %2474 = vmatpush1.msra.mxu0 %v2473
    %2475 = vmatprep.subr.mxu0 0.0
    %v2476 = vand.u32 %v112, 4294901760
    %v2477 = vsub.f32 %v112, %v2476
    %v2478 = vand.u32 %v2477, 4294901760
    %2479 = vmatpush1.msra.mxu0 %v2478
    %2480 = vmatprep.subr.mxu0 0.0
    %v2481 = vand.u32 %v113, 4294901760
    %v2482 = vsub.f32 %v113, %v2481
    %v2483 = vand.u32 %v2482, 4294901760
    %2484 = vmatpush1.msra.mxu0 %v2483
    %2485 = vmatprep.subr.mxu0 0.0
    %v2486 = vand.u32 %v114, 4294901760
    %v2487 = vsub.f32 %v114, %v2486
    %v2488 = vand.u32 %v2487, 4294901760
    %2489 = vmatpush1.msra.mxu0 %v2488
    %2490 = vmatprep.subr.mxu0 0.0
    %v2491 = vand.u32 %v115, 4294901760
    %v2492 = vsub.f32 %v115, %v2491
    %v2493 = vand.u32 %v2492, 4294901760
    %2494 = vmatpush1.msra.mxu0 %v2493
    %2495 = vmatprep.subr.mxu0 0.0
    %v2496 = vand.u32 %v116, 4294901760
    %v2497 = vsub.f32 %v116, %v2496
    %v2498 = vand.u32 %v2497, 4294901760
    %2499 = vmatpush1.msra.mxu0 %v2498
    %2500 = vmatprep.subr.mxu0 0.0
    %v2501 = vand.u32 %v117, 4294901760
    %v2502 = vsub.f32 %v117, %v2501
    %v2503 = vand.u32 %v2502, 4294901760
    %2504 = vmatpush1.msra.mxu0 %v2503
    %2505 = vmatprep.subr.mxu0 0.0
    %v2506 = vand.u32 %v118, 4294901760
    %v2507 = vsub.f32 %v118, %v2506
    %v2508 = vand.u32 %v2507, 4294901760
    %2509 = vmatpush1.msra.mxu0 %v2508
    %2510 = vmatprep.subr.mxu0 0.0
    %v2511 = vand.u32 %v119, 4294901760
    %v2512 = vsub.f32 %v119, %v2511
    %v2513 = vand.u32 %v2512, 4294901760
    %2514 = vmatpush1.msra.mxu0 %v2513
    %2515 = vmatprep.subr.mxu0 0.0
    %v2516 = vand.u32 %v120, 4294901760
    %v2517 = vsub.f32 %v120, %v2516
    %v2518 = vand.u32 %v2517, 4294901760
    %2519 = vmatpush1.msra.mxu0 %v2518
    %2520 = vmatprep.subr.mxu0 0.0
    %v2521 = vand.u32 %v121, 4294901760
    %v2522 = vsub.f32 %v121, %v2521
    %v2523 = vand.u32 %v2522, 4294901760
    %2524 = vmatpush1.msra.mxu0 %v2523
    %2525 = vmatprep.subr.mxu0 0.0
    %v2526 = vand.u32 %v122, 4294901760
    %v2527 = vsub.f32 %v122, %v2526
    %v2528 = vand.u32 %v2527, 4294901760
    %2529 = vmatpush1.msra.mxu0 %v2528
    %2530 = vmatprep.subr.mxu0 0.0
    %v2531 = vand.u32 %v123, 4294901760
    %v2532 = vsub.f32 %v123, %v2531
    %v2533 = vand.u32 %v2532, 4294901760
    %2534 = vmatpush1.msra.mxu0 %v2533
    %2535 = vmatprep.subr.mxu0 0.0
    %v2536 = vand.u32 %v124, 4294901760
    %v2537 = vsub.f32 %v124, %v2536
    %v2538 = vand.u32 %v2537, 4294901760
    %2539 = vmatpush1.msra.mxu0 %v2538
    %2540 = vmatprep.subr.mxu0 0.0
    %v2541 = vand.u32 %v125, 4294901760
    %v2542 = vsub.f32 %v125, %v2541
    %v2543 = vand.u32 %v2542, 4294901760
    %2544 = vmatpush1.msra.mxu0 %v2543
    %2545 = vmatprep.subr.mxu0 0.0
    %v2546 = vand.u32 %v126, 4294901760
    %v2547 = vsub.f32 %v126, %v2546
    %v2548 = vand.u32 %v2547, 4294901760
    %2549 = vmatpush1.msra.mxu0 %v2548
    %2550 = vmatprep.subr.mxu0 0.0
    %v2551 = vand.u32 %v127, 4294901760
    %v2552 = vsub.f32 %v127, %v2551
    %v2553 = vand.u32 %v2552, 4294901760
    %2554 = vmatpush1.msra.mxu0 %v2553
    %2555 = vmatprep.subr.mxu0 0.0
    %v2556 = vand.u32 %v128, 4294901760
    %v2557 = vsub.f32 %v128, %v2556
    %v2558 = vand.u32 %v2557, 4294901760
    %2559 = vmatpush1.msra.mxu0 %v2558
    %2560 = vmatprep.subr.mxu0 0.0
    %v2561 = vand.u32 %v129, 4294901760
    %v2562 = vsub.f32 %v129, %v2561
    %v2563 = vand.u32 %v2562, 4294901760
    %2564 = vmatpush1.msra.mxu0 %v2563
    %2565 = vmatprep.subr.mxu0 0.0
    %v2566 = vand.u32 %v130, 4294901760
    %v2567 = vsub.f32 %v130, %v2566
    %v2568 = vand.u32 %v2567, 4294901760
    %2569 = vmatpush1.msra.mxu0 %v2568
    %2570 = vmatprep.subr.mxu0 0.0
    %v2571 = vand.u32 %v131, 4294901760
    %v2572 = vsub.f32 %v131, %v2571
    %v2573 = vand.u32 %v2572, 4294901760
    %2574 = vmatpush1.msra.mxu0 %v2573
    %2575 = vmatprep.subr.mxu0 0.0
    %v2576 = vand.u32 %v132, 4294901760
    %v2577 = vsub.f32 %v132, %v2576
    %v2578 = vand.u32 %v2577, 4294901760
    %2579 = vmatpush1.msra.mxu0 %v2578
    %2580 = vmatprep.subr.mxu0 0.0
    %v2581 = vand.u32 %v133, 4294901760
    %v2582 = vsub.f32 %v133, %v2581
    %v2583 = vand.u32 %v2582, 4294901760
    %2584 = vmatpush1.msra.mxu0 %v2583
    %2585 = vmatprep.subr.mxu0 0.0
    %v2586 = vand.u32 %v134, 4294901760
    %v2587 = vsub.f32 %v134, %v2586
    %v2588 = vand.u32 %v2587, 4294901760
    %2589 = vmatpush1.msra.mxu0 %v2588
    %2590 = vmatprep.subr.mxu0 0.0
    %v2591 = vand.u32 %v135, 4294901760
    %v2592 = vsub.f32 %v135, %v2591
    %v2593 = vand.u32 %v2592, 4294901760
    %2594 = vmatpush1.msra.mxu0 %v2593
    %2595 = vmatprep.subr.mxu0 0.0
    %v2596 = vand.u32 %v136, 4294901760
    %v2597 = vsub.f32 %v136, %v2596
    %v2598 = vand.u32 %v2597, 4294901760
    %2599 = vmatpush1.msra.mxu0 %v2598
    %2600 = vmatprep.subr.mxu0 0.0
    %v2601 = vand.u32 %v137, 4294901760
    %v2602 = vsub.f32 %v137, %v2601
    %v2603 = vand.u32 %v2602, 4294901760
    %2604 = vmatpush1.msra.mxu0 %v2603
    %2605 = vmatprep.subr.mxu0 0.0
    %v2606 = vand.u32 %v138, 4294901760
    %v2607 = vsub.f32 %v138, %v2606
    %v2608 = vand.u32 %v2607, 4294901760
    %2609 = vmatpush1.msra.mxu0 %v2608
    %2610 = vmatprep.subr.mxu0 0.0
    %v2611 = vand.u32 %v139, 4294901760
    %v2612 = vsub.f32 %v139, %v2611
    %v2613 = vand.u32 %v2612, 4294901760
    %2614 = vmatpush1.msra.mxu0 %v2613
    %2615 = vmatprep.subr.mxu0 0.0
    %v2616 = vand.u32 %v140, 4294901760
    %v2617 = vsub.f32 %v140, %v2616
    %v2618 = vand.u32 %v2617, 4294901760
    %2619 = vmatpush1.msra.mxu0 %v2618
    %2620 = vmatprep.subr.mxu0 0.0
    %v2621 = vand.u32 %v141, 4294901760
    %v2622 = vsub.f32 %v141, %v2621
    %v2623 = vand.u32 %v2622, 4294901760
    %2624 = vmatpush1.msra.mxu0 %v2623
    %2625 = vmatprep.subr.mxu0 0.0
    %v2626 = vand.u32 %v142, 4294901760
    %v2627 = vsub.f32 %v142, %v2626
    %v2628 = vand.u32 %v2627, 4294901760
    %2629 = vmatpush1.msra.mxu0 %v2628
    %v2630 = vand.u32 %v45, 4294901760
    %2631 = vmatprep.mubr.f32.mxu0 %v2630
    %v2632 = vand.u32 %v44, 4294901760
    %2633 = vmatmul.mubr.f32.gmra.mrb[0].mxu0 %v2632
    %v2634 = vpop.f32.mrb[0].mxu0
    %v2635 = vadd.f32 %v2467, %v2634
    %v2636 = vpop.f32.mrb[0].mxu0
    %2637 = vdwg.mxu0
    %2638 = vmatprep.subr.mxu0 0.0
    %v2639 = vand.u32 %v111, 4294901760
    %2640 = vmatpush1.msra.mxu0 %v2639
    %2641 = vmatprep.subr.mxu0 0.0
    %v2642 = vand.u32 %v112, 4294901760
    %2643 = vmatpush1.msra.mxu0 %v2642
    %2644 = vmatprep.subr.mxu0 0.0
    %v2645 = vand.u32 %v113, 4294901760
    %2646 = vmatpush1.msra.mxu0 %v2645
    %2647 = vmatprep.subr.mxu0 0.0
    %v2648 = vand.u32 %v114, 4294901760
    %2649 = vmatpush1.msra.mxu0 %v2648
    %2650 = vmatprep.subr.mxu0 0.0
    %v2651 = vand.u32 %v115, 4294901760
    %2652 = vmatpush1.msra.mxu0 %v2651
    %2653 = vmatprep.subr.mxu0 0.0
    %v2654 = vand.u32 %v116, 4294901760
    %2655 = vmatpush1.msra.mxu0 %v2654
    %2656 = vmatprep.subr.mxu0 0.0
    %v2657 = vand.u32 %v117, 4294901760
    %2658 = vmatpush1.msra.mxu0 %v2657
    %2659 = vmatprep.subr.mxu0 0.0
    %v2660 = vand.u32 %v118, 4294901760
    %2661 = vmatpush1.msra.mxu0 %v2660
    %2662 = vmatprep.subr.mxu0 0.0
    %v2663 = vand.u32 %v119, 4294901760
    %2664 = vmatpush1.msra.mxu0 %v2663
    %2665 = vmatprep.subr.mxu0 0.0
    %v2666 = vand.u32 %v120, 4294901760
    %2667 = vmatpush1.msra.mxu0 %v2666
    %2668 = vmatprep.subr.mxu0 0.0
    %v2669 = vand.u32 %v121, 4294901760
    %2670 = vmatpush1.msra.mxu0 %v2669
    %2671 = vmatprep.subr.mxu0 0.0
    %v2672 = vand.u32 %v122, 4294901760
    %2673 = vmatpush1.msra.mxu0 %v2672
    %2674 = vmatprep.subr.mxu0 0.0
    %v2675 = vand.u32 %v123, 4294901760
    %2676 = vmatpush1.msra.mxu0 %v2675
    %2677 = vmatprep.subr.mxu0 0.0
    %v2678 = vand.u32 %v124, 4294901760
    %2679 = vmatpush1.msra.mxu0 %v2678
    %2680 = vmatprep.subr.mxu0 0.0
    %v2681 = vand.u32 %v125, 4294901760
    %2682 = vmatpush1.msra.mxu0 %v2681
    %2683 = vmatprep.subr.mxu0 0.0
    %v2684 = vand.u32 %v126, 4294901760
    %2685 = vmatpush1.msra.mxu0 %v2684
    %2686 = vmatprep.subr.mxu0 0.0
    %v2687 = vand.u32 %v127, 4294901760
    %2688 = vmatpush1.msra.mxu0 %v2687
    %2689 = vmatprep.subr.mxu0 0.0
    %v2690 = vand.u32 %v128, 4294901760
    %2691 = vmatpush1.msra.mxu0 %v2690
    %2692 = vmatprep.subr.mxu0 0.0
    %v2693 = vand.u32 %v129, 4294901760
    %2694 = vmatpush1.msra.mxu0 %v2693
    %2695 = vmatprep.subr.mxu0 0.0
    %v2696 = vand.u32 %v130, 4294901760
    %2697 = vmatpush1.msra.mxu0 %v2696
    %2698 = vmatprep.subr.mxu0 0.0
    %v2699 = vand.u32 %v131, 4294901760
    %2700 = vmatpush1.msra.mxu0 %v2699
    %2701 = vmatprep.subr.mxu0 0.0
    %v2702 = vand.u32 %v132, 4294901760
    %2703 = vmatpush1.msra.mxu0 %v2702
    %2704 = vmatprep.subr.mxu0 0.0
    %v2705 = vand.u32 %v133, 4294901760
    %2706 = vmatpush1.msra.mxu0 %v2705
    %2707 = vmatprep.subr.mxu0 0.0
    %v2708 = vand.u32 %v134, 4294901760
    %2709 = vmatpush1.msra.mxu0 %v2708
    %2710 = vmatprep.subr.mxu0 0.0
    %v2711 = vand.u32 %v135, 4294901760
    %2712 = vmatpush1.msra.mxu0 %v2711
    %2713 = vmatprep.subr.mxu0 0.0
    %v2714 = vand.u32 %v136, 4294901760
    %2715 = vmatpush1.msra.mxu0 %v2714
    %2716 = vmatprep.subr.mxu0 0.0
    %v2717 = vand.u32 %v137, 4294901760
    %2718 = vmatpush1.msra.mxu0 %v2717
    %2719 = vmatprep.subr.mxu0 0.0
    %v2720 = vand.u32 %v138, 4294901760
    %2721 = vmatpush1.msra.mxu0 %v2720
    %2722 = vmatprep.subr.mxu0 0.0
    %v2723 = vand.u32 %v139, 4294901760
    %2724 = vmatpush1.msra.mxu0 %v2723
    %2725 = vmatprep.subr.mxu0 0.0
    %v2726 = vand.u32 %v140, 4294901760
    %2727 = vmatpush1.msra.mxu0 %v2726
    %2728 = vmatprep.subr.mxu0 0.0
    %v2729 = vand.u32 %v141, 4294901760
    %2730 = vmatpush1.msra.mxu0 %v2729
    %2731 = vmatprep.subr.mxu0 0.0
    %v2732 = vand.u32 %v142, 4294901760
    %2733 = vmatpush1.msra.mxu0 %v2732
    %v2734 = vand.u32 %v45, 4294901760
    %2735 = vmatprep.mubr.f32.mxu0 %v2734
    %v2736 = vand.u32 %v44, 4294901760
    %2737 = vmatmul.mubr.f32.gmra.mrb[0].mxu0 %v2736
    %v2738 = vpop.f32.mrb[0].mxu0
    %v2739 = vadd.f32 %v2635, %v2738
    %v2740 = vpop.f32.mrb[0].mxu0
    %2741 = vdwg.mxu0
    %2742 = vmatprep.subr.mxu0 0.0
    %v2743 = vand.u32 %v143, 4294901760
    %2744 = vmatpush1.msra.mxu0 %v2743
    %2745 = vmatprep.subr.mxu0 0.0
    %v2746 = vand.u32 %v144, 4294901760
    %2747 = vmatpush1.msra.mxu0 %v2746
    %2748 = vmatprep.subr.mxu0 0.0
    %2749 = vmatpush1.msra.mxu0 0.0
    %2750 = vmatprep.subr.mxu0 0.0
    %2751 = vmatpush1.msra.mxu0 0.0
    %2752 = vmatprep.subr.mxu0 0.0
    %2753 = vmatpush1.msra.mxu0 0.0
    %2754 = vmatprep.subr.mxu0 0.0
    %2755 = vmatpush1.msra.mxu0 0.0
    %2756 = vmatprep.subr.mxu0 0.0
    %2757 = vmatpush1.msra.mxu0 0.0
    %2758 = vmatprep.subr.mxu0 0.0
    %2759 = vmatpush1.msra.mxu0 0.0
    %2760 = vmatprep.subr.mxu0 0.0
    %2761 = vmatpush1.msra.mxu0 0.0
    %2762 = vmatprep.subr.mxu0 0.0
    %2763 = vmatpush1.msra.mxu0 0.0
    %2764 = vmatprep.subr.mxu0 0.0
    %2765 = vmatpush1.msra.mxu0 0.0
    %2766 = vmatprep.subr.mxu0 0.0
    %2767 = vmatpush1.msra.mxu0 0.0
    %2768 = vmatprep.subr.mxu0 0.0
    %2769 = vmatpush1.msra.mxu0 0.0
    %2770 = vmatprep.subr.mxu0 0.0
    %2771 = vmatpush1.msra.mxu0 0.0
    %2772 = vmatprep.subr.mxu0 0.0
    %2773 = vmatpush1.msra.mxu0 0.0
    %2774 = vmatprep.subr.mxu0 0.0
    %2775 = vmatpush1.msra.mxu0 0.0
    %2776 = vmatprep.subr.mxu0 0.0
    %2777 = vmatpush1.msra.mxu0 0.0
    %2778 = vmatprep.subr.mxu0 0.0
    %2779 = vmatpush1.msra.mxu0 0.0
    %2780 = vmatprep.subr.mxu0 0.0
    %2781 = vmatpush1.msra.mxu0 0.0
    %2782 = vmatprep.subr.mxu0 0.0
    %2783 = vmatpush1.msra.mxu0 0.0
    %2784 = vmatprep.subr.mxu0 0.0
    %2785 = vmatpush1.msra.mxu0 0.0
    %2786 = vmatprep.subr.mxu0 0.0
    %2787 = vmatpush1.msra.mxu0 0.0
    %2788 = vmatprep.subr.mxu0 0.0
    %2789 = vmatpush1.msra.mxu0 0.0
    %2790 = vmatprep.subr.mxu0 0.0
    %2791 = vmatpush1.msra.mxu0 0.0
    %2792 = vmatprep.subr.mxu0 0.0
    %2793 = vmatpush1.msra.mxu0 0.0
    %2794 = vmatprep.subr.mxu0 0.0
    %2795 = vmatpush1.msra.mxu0 0.0
    %2796 = vmatprep.subr.mxu0 0.0
    %2797 = vmatpush1.msra.mxu0 0.0
    %2798 = vmatprep.subr.mxu0 0.0
    %2799 = vmatpush1.msra.mxu0 0.0
    %2800 = vmatprep.subr.mxu0 0.0
    %2801 = vmatpush1.msra.mxu0 0.0
    %2802 = vmatprep.subr.mxu0 0.0
    %2803 = vmatpush1.msra.mxu0 0.0
    %2804 = vmatprep.subr.mxu0 0.0
    %2805 = vmatpush1.msra.mxu0 0.0
    %2806 = vmatprep.subr.mxu0 0.0
    %2807 = vmatpush1.msra.mxu0 0.0
    %2808 = vmatprep.mubr.f32.mxu0 0.0
    %v2809 = vand.u32 %v154, 4294901760
    %v2810 = vsub.f32 %v154, %v2809
    %v2811 = vand.u32 %v2810, 4294901760
    %v2812 = vsub.f32 %v2810, %v2811
    %v2813 = vand.u32 %v2812, 4294901760
    %2814 = vmatmul.mubr.f32.gmra.mrb[0].mxu0 %v2813
    %v2815 = vpop.f32.mrb[0].mxu0
    %v2816 = vadd.f32 %v2739, %v2815
    %v2817 = vpop.f32.mrb[0].mxu0
    %2818 = vdwg.mxu0
    %2819 = vmatprep.subr.mxu0 0.0
    %v2820 = vand.u32 %v143, 4294901760
    %v2821 = vsub.f32 %v143, %v2820
    %v2822 = vand.u32 %v2821, 4294901760
    %v2823 = vsub.f32 %v2821, %v2822
    %v2824 = vand.u32 %v2823, 4294901760
    %2825 = vmatpush1.msra.mxu0 %v2824
    %2826 = vmatprep.subr.mxu0 0.0
    %v2827 = vand.u32 %v144, 4294901760
    %v2828 = vsub.f32 %v144, %v2827
    %v2829 = vand.u32 %v2828, 4294901760
    %v2830 = vsub.f32 %v2828, %v2829
    %v2831 = vand.u32 %v2830, 4294901760
    %2832 = vmatpush1.msra.mxu0 %v2831
    %2833 = vmatprep.subr.mxu0 0.0
    %2834 = vmatpush1.msra.mxu0 0.0
    %2835 = vmatprep.subr.mxu0 0.0
    %2836 = vmatpush1.msra.mxu0 0.0
    %2837 = vmatprep.subr.mxu0 0.0
    %2838 = vmatpush1.msra.mxu0 0.0
    %2839 = vmatprep.subr.mxu0 0.0
    %2840 = vmatpush1.msra.mxu0 0.0
    %2841 = vmatprep.subr.mxu0 0.0
    %2842 = vmatpush1.msra.mxu0 0.0
    %2843 = vmatprep.subr.mxu0 0.0
    %2844 = vmatpush1.msra.mxu0 0.0
    %2845 = vmatprep.subr.mxu0 0.0
    %2846 = vmatpush1.msra.mxu0 0.0
    %2847 = vmatprep.subr.mxu0 0.0
    %2848 = vmatpush1.msra.mxu0 0.0
    %2849 = vmatprep.subr.mxu0 0.0
    %2850 = vmatpush1.msra.mxu0 0.0
    %2851 = vmatprep.subr.mxu0 0.0
    %2852 = vmatpush1.msra.mxu0 0.0
    %2853 = vmatprep.subr.mxu0 0.0
    %2854 = vmatpush1.msra.mxu0 0.0
    %2855 = vmatprep.subr.mxu0 0.0
    %2856 = vmatpush1.msra.mxu0 0.0
    %2857 = vmatprep.subr.mxu0 0.0
    %2858 = vmatpush1.msra.mxu0 0.0
    %2859 = vmatprep.subr.mxu0 0.0
    %2860 = vmatpush1.msra.mxu0 0.0
    %2861 = vmatprep.subr.mxu0 0.0
    %2862 = vmatpush1.msra.mxu0 0.0
    %2863 = vmatprep.subr.mxu0 0.0
    %2864 = vmatpush1.msra.mxu0 0.0
    %2865 = vmatprep.subr.mxu0 0.0
    %2866 = vmatpush1.msra.mxu0 0.0
    %2867 = vmatprep.subr.mxu0 0.0
    %2868 = vmatpush1.msra.mxu0 0.0
    %2869 = vmatprep.subr.mxu0 0.0
    %2870 = vmatpush1.msra.mxu0 0.0
    %2871 = vmatprep.subr.mxu0 0.0
    %2872 = vmatpush1.msra.mxu0 0.0
    %2873 = vmatprep.subr.mxu0 0.0
    %2874 = vmatpush1.msra.mxu0 0.0
    %2875 = vmatprep.subr.mxu0 0.0
    %2876 = vmatpush1.msra.mxu0 0.0
    %2877 = vmatprep.subr.mxu0 0.0
    %2878 = vmatpush1.msra.mxu0 0.0
    %2879 = vmatprep.subr.mxu0 0.0
    %2880 = vmatpush1.msra.mxu0 0.0
    %2881 = vmatprep.subr.mxu0 0.0
    %2882 = vmatpush1.msra.mxu0 0.0
    %2883 = vmatprep.subr.mxu0 0.0
    %2884 = vmatpush1.msra.mxu0 0.0
    %2885 = vmatprep.subr.mxu0 0.0
    %2886 = vmatpush1.msra.mxu0 0.0
    %2887 = vmatprep.subr.mxu0 0.0
    %2888 = vmatpush1.msra.mxu0 0.0
    %2889 = vmatprep.subr.mxu0 0.0
    %2890 = vmatpush1.msra.mxu0 0.0
    %2891 = vmatprep.subr.mxu0 0.0
    %2892 = vmatpush1.msra.mxu0 0.0
    %2893 = vmatprep.mubr.f32.mxu0 0.0
    %v2894 = vand.u32 %v154, 4294901760
    %2895 = vmatmul.mubr.f32.gmra.mrb[0].mxu0 %v2894
    %v2896 = vpop.f32.mrb[0].mxu0
    %v2897 = vadd.f32 %v2816, %v2896
    %v2898 = vpop.f32.mrb[0].mxu0
    %2899 = vdwg.mxu0
    %2900 = vmatprep.subr.mxu0 0.0
    %v2901 = vand.u32 %v143, 4294901760
    %v2902 = vsub.f32 %v143, %v2901
    %2903 = vmatpush1.msra.mxu0 %v2902
    %2904 = vmatprep.subr.mxu0 0.0
    %v2905 = vand.u32 %v144, 4294901760
    %v2906 = vsub.f32 %v144, %v2905
    %2907 = vmatpush1.msra.mxu0 %v2906
    %2908 = vmatprep.subr.mxu0 0.0
    %2909 = vmatpush1.msra.mxu0 0.0
    %2910 = vmatprep.subr.mxu0 0.0
    %2911 = vmatpush1.msra.mxu0 0.0
    %2912 = vmatprep.subr.mxu0 0.0
    %2913 = vmatpush1.msra.mxu0 0.0
    %2914 = vmatprep.subr.mxu0 0.0
    %2915 = vmatpush1.msra.mxu0 0.0
    %2916 = vmatprep.subr.mxu0 0.0
    %2917 = vmatpush1.msra.mxu0 0.0
    %2918 = vmatprep.subr.mxu0 0.0
    %2919 = vmatpush1.msra.mxu0 0.0
    %2920 = vmatprep.subr.mxu0 0.0
    %2921 = vmatpush1.msra.mxu0 0.0
    %2922 = vmatprep.subr.mxu0 0.0
    %2923 = vmatpush1.msra.mxu0 0.0
    %2924 = vmatprep.subr.mxu0 0.0
    %2925 = vmatpush1.msra.mxu0 0.0
    %2926 = vmatprep.subr.mxu0 0.0
    %2927 = vmatpush1.msra.mxu0 0.0
    %2928 = vmatprep.subr.mxu0 0.0
    %2929 = vmatpush1.msra.mxu0 0.0
    %2930 = vmatprep.subr.mxu0 0.0
    %2931 = vmatpush1.msra.mxu0 0.0
    %2932 = vmatprep.subr.mxu0 0.0
    %2933 = vmatpush1.msra.mxu0 0.0
    %2934 = vmatprep.subr.mxu0 0.0
    %2935 = vmatpush1.msra.mxu0 0.0
    %2936 = vmatprep.subr.mxu0 0.0
    %2937 = vmatpush1.msra.mxu0 0.0
    %2938 = vmatprep.subr.mxu0 0.0
    %2939 = vmatpush1.msra.mxu0 0.0
    %2940 = vmatprep.subr.mxu0 0.0
    %2941 = vmatpush1.msra.mxu0 0.0
    %2942 = vmatprep.subr.mxu0 0.0
    %2943 = vmatpush1.msra.mxu0 0.0
    %2944 = vmatprep.subr.mxu0 0.0
    %2945 = vmatpush1.msra.mxu0 0.0
    %2946 = vmatprep.subr.mxu0 0.0
    %2947 = vmatpush1.msra.mxu0 0.0
    %2948 = vmatprep.subr.mxu0 0.0
    %2949 = vmatpush1.msra.mxu0 0.0
    %2950 = vmatprep.subr.mxu0 0.0
    %2951 = vmatpush1.msra.mxu0 0.0
    %2952 = vmatprep.subr.mxu0 0.0
    %2953 = vmatpush1.msra.mxu0 0.0
    %2954 = vmatprep.subr.mxu0 0.0
    %2955 = vmatpush1.msra.mxu0 0.0
    %2956 = vmatprep.subr.mxu0 0.0
    %2957 = vmatpush1.msra.mxu0 0.0
    %2958 = vmatprep.subr.mxu0 0.0
    %2959 = vmatpush1.msra.mxu0 0.0
    %2960 = vmatprep.subr.mxu0 0.0
    %2961 = vmatpush1.msra.mxu0 0.0
    %2962 = vmatprep.subr.mxu0 0.0
    %2963 = vmatpush1.msra.mxu0 0.0
    %2964 = vmatprep.subr.mxu0 0.0
    %2965 = vmatpush1.msra.mxu0 0.0
    %2966 = vmatprep.subr.mxu0 0.0
    %2967 = vmatpush1.msra.mxu0 0.0
    %2968 = vmatprep.mubr.f32.mxu0 0.0
    %v2969 = vand.u32 %v154, 4294901760
    %v2970 = vsub.f32 %v154, %v2969
    %2971 = vmatmul.mubr.f32.gmra.mrb[0].mxu0 %v2970
    %v2972 = vpop.f32.mrb[0].mxu0
    %v2973 = vadd.f32 %v2897, %v2972
    %v2974 = vpop.f32.mrb[0].mxu0
    %2975 = vdwg.mxu0
    %2976 = vmatprep.subr.mxu0 0.0
    %v2977 = vand.u32 %v143, 4294901760
    %2978 = vmatpush1.msra.mxu0 %v2977
    %2979 = vmatprep.subr.mxu0 0.0
    %v2980 = vand.u32 %v144, 4294901760
    %2981 = vmatpush1.msra.mxu0 %v2980
    %2982 = vmatprep.subr.mxu0 0.0
    %2983 = vmatpush1.msra.mxu0 0.0
    %2984 = vmatprep.subr.mxu0 0.0
    %2985 = vmatpush1.msra.mxu0 0.0
    %2986 = vmatprep.subr.mxu0 0.0
    %2987 = vmatpush1.msra.mxu0 0.0
    %2988 = vmatprep.subr.mxu0 0.0
    %2989 = vmatpush1.msra.mxu0 0.0
    %2990 = vmatprep.subr.mxu0 0.0
    %2991 = vmatpush1.msra.mxu0 0.0
    %2992 = vmatprep.subr.mxu0 0.0
    %2993 = vmatpush1.msra.mxu0 0.0
    %2994 = vmatprep.subr.mxu0 0.0
    %2995 = vmatpush1.msra.mxu0 0.0
    %2996 = vmatprep.subr.mxu0 0.0
    %2997 = vmatpush1.msra.mxu0 0.0
    %2998 = vmatprep.subr.mxu0 0.0
    %2999 = vmatpush1.msra.mxu0 0.0
    %3000 = vmatprep.subr.mxu0 0.0
    %3001 = vmatpush1.msra.mxu0 0.0
    %3002 = vmatprep.subr.mxu0 0.0
    %3003 = vmatpush1.msra.mxu0 0.0
    %3004 = vmatprep.subr.mxu0 0.0
    %3005 = vmatpush1.msra.mxu0 0.0
    %3006 = vmatprep.subr.mxu0 0.0
    %3007 = vmatpush1.msra.mxu0 0.0
    %3008 = vmatprep.subr.mxu0 0.0
    %3009 = vmatpush1.msra.mxu0 0.0
    %3010 = vmatprep.subr.mxu0 0.0
    %3011 = vmatpush1.msra.mxu0 0.0
    %3012 = vmatprep.subr.mxu0 0.0
    %3013 = vmatpush1.msra.mxu0 0.0
    %3014 = vmatprep.subr.mxu0 0.0
    %3015 = vmatpush1.msra.mxu0 0.0
    %3016 = vmatprep.subr.mxu0 0.0
    %3017 = vmatpush1.msra.mxu0 0.0
    %3018 = vmatprep.subr.mxu0 0.0
    %3019 = vmatpush1.msra.mxu0 0.0
    %3020 = vmatprep.subr.mxu0 0.0
    %3021 = vmatpush1.msra.mxu0 0.0
    %3022 = vmatprep.subr.mxu0 0.0
    %3023 = vmatpush1.msra.mxu0 0.0
    %3024 = vmatprep.subr.mxu0 0.0
    %3025 = vmatpush1.msra.mxu0 0.0
    %3026 = vmatprep.subr.mxu0 0.0
    %3027 = vmatpush1.msra.mxu0 0.0
    %3028 = vmatprep.subr.mxu0 0.0
    %3029 = vmatpush1.msra.mxu0 0.0
    %3030 = vmatprep.subr.mxu0 0.0
    %3031 = vmatpush1.msra.mxu0 0.0
    %3032 = vmatprep.subr.mxu0 0.0
    %3033 = vmatpush1.msra.mxu0 0.0
    %3034 = vmatprep.subr.mxu0 0.0
    %3035 = vmatpush1.msra.mxu0 0.0
    %3036 = vmatprep.subr.mxu0 0.0
    %3037 = vmatpush1.msra.mxu0 0.0
    %3038 = vmatprep.subr.mxu0 0.0
    %3039 = vmatpush1.msra.mxu0 0.0
    %3040 = vmatprep.subr.mxu0 0.0
    %3041 = vmatpush1.msra.mxu0 0.0
    %3042 = vmatprep.mubr.f32.mxu0 0.0
    %v3043 = vand.u32 %v154, 4294901760
    %v3044 = vsub.f32 %v154, %v3043
    %v3045 = vand.u32 %v3044, 4294901760
    %3046 = vmatmul.mubr.f32.gmra.mrb[0].mxu0 %v3045
    %v3047 = vpop.f32.mrb[0].mxu0
    %v3048 = vadd.f32 %v2973, %v3047
    %v3049 = vpop.f32.mrb[0].mxu0
    %3050 = vdwg.mxu0
    %3051 = vmatprep.subr.mxu0 0.0
    %v3052 = vand.u32 %v143, 4294901760
    %v3053 = vsub.f32 %v143, %v3052
    %v3054 = vand.u32 %v3053, 4294901760
    %3055 = vmatpush1.msra.mxu0 %v3054
    %3056 = vmatprep.subr.mxu0 0.0
    %v3057 = vand.u32 %v144, 4294901760
    %v3058 = vsub.f32 %v144, %v3057
    %v3059 = vand.u32 %v3058, 4294901760
    %3060 = vmatpush1.msra.mxu0 %v3059
    %3061 = vmatprep.subr.mxu0 0.0
    %3062 = vmatpush1.msra.mxu0 0.0
    %3063 = vmatprep.subr.mxu0 0.0
    %3064 = vmatpush1.msra.mxu0 0.0
    %3065 = vmatprep.subr.mxu0 0.0
    %3066 = vmatpush1.msra.mxu0 0.0
    %3067 = vmatprep.subr.mxu0 0.0
    %3068 = vmatpush1.msra.mxu0 0.0
    %3069 = vmatprep.subr.mxu0 0.0
    %3070 = vmatpush1.msra.mxu0 0.0
    %3071 = vmatprep.subr.mxu0 0.0
    %3072 = vmatpush1.msra.mxu0 0.0
    %3073 = vmatprep.subr.mxu0 0.0
    %3074 = vmatpush1.msra.mxu0 0.0
    %3075 = vmatprep.subr.mxu0 0.0
    %3076 = vmatpush1.msra.mxu0 0.0
    %3077 = vmatprep.subr.mxu0 0.0
    %3078 = vmatpush1.msra.mxu0 0.0
    %3079 = vmatprep.subr.mxu0 0.0
    %3080 = vmatpush1.msra.mxu0 0.0
    %3081 = vmatprep.subr.mxu0 0.0
    %3082 = vmatpush1.msra.mxu0 0.0
    %3083 = vmatprep.subr.mxu0 0.0
    %3084 = vmatpush1.msra.mxu0 0.0
    %3085 = vmatprep.subr.mxu0 0.0
    %3086 = vmatpush1.msra.mxu0 0.0
    %3087 = vmatprep.subr.mxu0 0.0
    %3088 = vmatpush1.msra.mxu0 0.0
    %3089 = vmatprep.subr.mxu0 0.0
    %3090 = vmatpush1.msra.mxu0 0.0
    %3091 = vmatprep.subr.mxu0 0.0
    %3092 = vmatpush1.msra.mxu0 0.0
    %3093 = vmatprep.subr.mxu0 0.0
    %3094 = vmatpush1.msra.mxu0 0.0
    %3095 = vmatprep.subr.mxu0 0.0
    %3096 = vmatpush1.msra.mxu0 0.0
    %3097 = vmatprep.subr.mxu0 0.0
    %3098 = vmatpush1.msra.mxu0 0.0
    %3099 = vmatprep.subr.mxu0 0.0
    %3100 = vmatpush1.msra.mxu0 0.0
    %3101 = vmatprep.subr.mxu0 0.0
    %3102 = vmatpush1.msra.mxu0 0.0
    %3103 = vmatprep.subr.mxu0 0.0
    %3104 = vmatpush1.msra.mxu0 0.0
    %3105 = vmatprep.subr.mxu0 0.0
    %3106 = vmatpush1.msra.mxu0 0.0
    %3107 = vmatprep.subr.mxu0 0.0
    %3108 = vmatpush1.msra.mxu0 0.0
    %3109 = vmatprep.subr.mxu0 0.0
    %3110 = vmatpush1.msra.mxu0 0.0
    %3111 = vmatprep.subr.mxu0 0.0
    %3112 = vmatpush1.msra.mxu0 0.0
    %3113 = vmatprep.subr.mxu0 0.0
    %3114 = vmatpush1.msra.mxu0 0.0
    %3115 = vmatprep.subr.mxu0 0.0
    %3116 = vmatpush1.msra.mxu0 0.0
    %3117 = vmatprep.subr.mxu0 0.0
    %3118 = vmatpush1.msra.mxu0 0.0
    %3119 = vmatprep.subr.mxu0 0.0
    %3120 = vmatpush1.msra.mxu0 0.0
    %3121 = vmatprep.mubr.f32.mxu0 0.0
    %v3122 = vand.u32 %v154, 4294901760
    %3123 = vmatmul.mubr.f32.gmra.mrb[0].mxu0 %v3122
    %v3124 = vpop.f32.mrb[0].mxu0
    %v3125 = vadd.f32 %v3048, %v3124
    %v3126 = vpop.f32.mrb[0].mxu0
    %3127 = vdwg.mxu0
    %3128 = vmatprep.subr.mxu0 0.0
    %v3129 = vand.u32 %v143, 4294901760
    %3130 = vmatpush1.msra.mxu0 %v3129
    %3131 = vmatprep.subr.mxu0 0.0
    %v3132 = vand.u32 %v144, 4294901760
    %3133 = vmatpush1.msra.mxu0 %v3132
    %3134 = vmatprep.subr.mxu0 0.0
    %3135 = vmatpush1.msra.mxu0 0.0
    %3136 = vmatprep.subr.mxu0 0.0
    %3137 = vmatpush1.msra.mxu0 0.0
    %3138 = vmatprep.subr.mxu0 0.0
    %3139 = vmatpush1.msra.mxu0 0.0
    %3140 = vmatprep.subr.mxu0 0.0
    %3141 = vmatpush1.msra.mxu0 0.0
    %3142 = vmatprep.subr.mxu0 0.0
    %3143 = vmatpush1.msra.mxu0 0.0
    %3144 = vmatprep.subr.mxu0 0.0
    %3145 = vmatpush1.msra.mxu0 0.0
    %3146 = vmatprep.subr.mxu0 0.0
    %3147 = vmatpush1.msra.mxu0 0.0
    %3148 = vmatprep.subr.mxu0 0.0
    %3149 = vmatpush1.msra.mxu0 0.0
    %3150 = vmatprep.subr.mxu0 0.0
    %3151 = vmatpush1.msra.mxu0 0.0
    %3152 = vmatprep.subr.mxu0 0.0
    %3153 = vmatpush1.msra.mxu0 0.0
    %3154 = vmatprep.subr.mxu0 0.0
    %3155 = vmatpush1.msra.mxu0 0.0
    %3156 = vmatprep.subr.mxu0 0.0
    %3157 = vmatpush1.msra.mxu0 0.0
    %3158 = vmatprep.subr.mxu0 0.0
    %3159 = vmatpush1.msra.mxu0 0.0
    %3160 = vmatprep.subr.mxu0 0.0
    %3161 = vmatpush1.msra.mxu0 0.0
    %3162 = vmatprep.subr.mxu0 0.0
    %3163 = vmatpush1.msra.mxu0 0.0
    %3164 = vmatprep.subr.mxu0 0.0
    %3165 = vmatpush1.msra.mxu0 0.0
    %3166 = vmatprep.subr.mxu0 0.0
    %3167 = vmatpush1.msra.mxu0 0.0
    %3168 = vmatprep.subr.mxu0 0.0
    %3169 = vmatpush1.msra.mxu0 0.0
    %3170 = vmatprep.subr.mxu0 0.0
    %3171 = vmatpush1.msra.mxu0 0.0
    %3172 = vmatprep.subr.mxu0 0.0
    %3173 = vmatpush1.msra.mxu0 0.0
    %3174 = vmatprep.subr.mxu0 0.0
    %3175 = vmatpush1.msra.mxu0 0.0
    %3176 = vmatprep.subr.mxu0 0.0
    %3177 = vmatpush1.msra.mxu0 0.0
    %3178 = vmatprep.subr.mxu0 0.0
    %3179 = vmatpush1.msra.mxu0 0.0
    %3180 = vmatprep.subr.mxu0 0.0
    %3181 = vmatpush1.msra.mxu0 0.0
    %3182 = vmatprep.subr.mxu0 0.0
    %3183 = vmatpush1.msra.mxu0 0.0
    %3184 = vmatprep.subr.mxu0 0.0
    %3185 = vmatpush1.msra.mxu0 0.0
    %3186 = vmatprep.subr.mxu0 0.0
    %3187 = vmatpush1.msra.mxu0 0.0
    %3188 = vmatprep.subr.mxu0 0.0
    %3189 = vmatpush1.msra.mxu0 0.0
    %3190 = vmatprep.subr.mxu0 0.0
    %3191 = vmatpush1.msra.mxu0 0.0
    %3192 = vmatprep.subr.mxu0 0.0
    %3193 = vmatpush1.msra.mxu0 0.0
    %3194 = vmatprep.mubr.f32.mxu0 0.0
    %v3195 = vand.u32 %v154, 4294901760
    %3196 = vmatmul.mubr.f32.gmra.mrb[0].mxu0 %v3195
    %v3197 = vpop.f32.mrb[0].mxu0
    %v3198 = vadd.f32 %v3125, %v3197
    %v3199 = vpop.f32.mrb[0].mxu0
    %3200 = vdwg.mxu0
    %vm3201 = vcmp.gt.f32.partialorder %v3198, 0.0
    %v3202 = vmul.f32 %v3198, 1.442695
    %v3203 = vpow.pop %v3202
    %v3204 = vsub.f32 %v3203, 1.0
    %v3205 = vsel %vm3201, %v3198, %v3204
    %v3206 = vld [vmem:[%s3] sm:$0xff]
    %v3207 = vld [vmem:[%s3 + $0x8] sm:$0xff]
    %v3208 = vld [vmem:[%s3 + $0x10] sm:$0xff]
    %v3209 = vld [vmem:[%s3 + $0x18] sm:$0xff]
    %v3210 = vld [vmem:[%s3 + $0x20] sm:$0xff]
    %v3211 = vld [vmem:[%s3 + $0x28] sm:$0xff]
    %v3212 = vld [vmem:[%s3 + $0x30] sm:$0xff]
    %v3213 = vld [vmem:[%s3 + $0x38] sm:$0xff]
    %v3214 = vld [vmem:[%s3 + $0x40] sm:$0xff]
    %v3215 = vld [vmem:[%s3 + $0x48] sm:$0xff]
    %v3216 = vld [vmem:[%s3 + $0x50] sm:$0xff]
    %v3217 = vld [vmem:[%s3 + $0x58] sm:$0xff]
    %v3218 = vld [vmem:[%s3 + $0x60] sm:$0xff]
    %v3219 = vld [vmem:[%s3 + $0x68] sm:$0xff]
    %v3220 = vld [vmem:[%s3 + $0x70] sm:$0xff]
    %v3221 = vld [vmem:[%s3 + $0x78] sm:$0xff]
    %v3222 = vld [vmem:[%s4] sm:$0x1]
    %v3224 = vlaneseq
    %v3225 = vshrl.u32 %v3224, 7
    %v3226 = vsub.s32 0, %v3225
    %v3227 = vrot.slane %v3222, %v3226
    %3229 = vmatprep.subr.mxu0 0.0
    %v3230 = vand.u32 %v3206, 4294901760
    %3231 = vmatpush1.msra.mxu0 %v3230
    %3232 = vmatprep.subr.mxu0 0.0
    %v3233 = vand.u32 %v3207, 4294901760
    %3234 = vmatpush1.msra.mxu0 %v3233
    %3235 = vmatprep.subr.mxu0 0.0
    %v3236 = vand.u32 %v3208, 4294901760
    %3237 = vmatpush1.msra.mxu0 %v3236
    %3238 = vmatprep.subr.mxu0 0.0
    %v3239 = vand.u32 %v3209, 4294901760
    %3240 = vmatpush1.msra.mxu0 %v3239
    %3241 = vmatprep.subr.mxu0 0.0
    %v3242 = vand.u32 %v3210, 4294901760
    %3243 = vmatpush1.msra.mxu0 %v3242
    %3244 = vmatprep.subr.mxu0 0.0
    %v3245 = vand.u32 %v3211, 4294901760
    %3246 = vmatpush1.msra.mxu0 %v3245
    %3247 = vmatprep.subr.mxu0 0.0
    %v3248 = vand.u32 %v3212, 4294901760
    %3249 = vmatpush1.msra.mxu0 %v3248
    %3250 = vmatprep.subr.mxu0 0.0
    %v3251 = vand.u32 %v3213, 4294901760
    %3252 = vmatpush1.msra.mxu0 %v3251
    %3253 = vmatprep.subr.mxu0 0.0
    %v3254 = vand.u32 %v3214, 4294901760
    %3255 = vmatpush1.msra.mxu0 %v3254
    %3256 = vmatprep.subr.mxu0 0.0
    %v3257 = vand.u32 %v3215, 4294901760
    %3258 = vmatpush1.msra.mxu0 %v3257
    %3259 = vmatprep.subr.mxu0 0.0
    %v3260 = vand.u32 %v3216, 4294901760
    %3261 = vmatpush1.msra.mxu0 %v3260
    %3262 = vmatprep.subr.mxu0 0.0
    %v3263 = vand.u32 %v3217, 4294901760
    %3264 = vmatpush1.msra.mxu0 %v3263
    %3265 = vmatprep.subr.mxu0 0.0
    %v3266 = vand.u32 %v3218, 4294901760
    %3267 = vmatpush1.msra.mxu0 %v3266
    %3268 = vmatprep.subr.mxu0 0.0
    %v3269 = vand.u32 %v3219, 4294901760
    %3270 = vmatpush1.msra.mxu0 %v3269
    %3271 = vmatprep.subr.mxu0 0.0
    %v3272 = vand.u32 %v3220, 4294901760
    %3273 = vmatpush1.msra.mxu0 %v3272
    %3274 = vmatprep.subr.mxu0 0.0
    %v3275 = vand.u32 %v3221, 4294901760
    %3276 = vmatpush1.msra.mxu0 %v3275
    %3277 = vmatprep.subr.mxu0 0.0
    %3278 = vmatpush1.msra.mxu0 0.0
    %3279 = vmatprep.subr.mxu0 0.0
    %3280 = vmatpush1.msra.mxu0 0.0
    %3281 = vmatprep.subr.mxu0 0.0
    %3282 = vmatpush1.msra.mxu0 0.0
    %3283 = vmatprep.subr.mxu0 0.0
    %3284 = vmatpush1.msra.mxu0 0.0
    %3285 = vmatprep.subr.mxu0 0.0
    %3286 = vmatpush1.msra.mxu0 0.0
    %3287 = vmatprep.subr.mxu0 0.0
    %3288 = vmatpush1.msra.mxu0 0.0
    %3289 = vmatprep.subr.mxu0 0.0
    %3290 = vmatpush1.msra.mxu0 0.0
    %3291 = vmatprep.subr.mxu0 0.0
    %3292 = vmatpush1.msra.mxu0 0.0
    %3293 = vmatprep.subr.mxu0 0.0
    %3294 = vmatpush1.msra.mxu0 0.0
    %3295 = vmatprep.subr.mxu0 0.0
    %3296 = vmatpush1.msra.mxu0 0.0
    %3297 = vmatprep.subr.mxu0 0.0
    %3298 = vmatpush1.msra.mxu0 0.0
    %3299 = vmatprep.subr.mxu0 0.0
    %3300 = vmatpush1.msra.mxu0 0.0
    %3301 = vmatprep.subr.mxu0 0.0
    %3302 = vmatpush1.msra.mxu0 0.0
    %3303 = vmatprep.subr.mxu0 0.0
    %3304 = vmatpush1.msra.mxu0 0.0
    %3305 = vmatprep.subr.mxu0 0.0
    %3306 = vmatpush1.msra.mxu0 0.0
    %3307 = vmatprep.subr.mxu0 0.0
    %3308 = vmatpush1.msra.mxu0 0.0
    %3309 = vmatprep.mubr.f32.mxu0 0.0
    %v3310 = vand.u32 %v3205, 4294901760
    %v3311 = vsub.f32 %v3205, %v3310
    %v3312 = vand.u32 %v3311, 4294901760
    %v3313 = vsub.f32 %v3311, %v3312
    %v3314 = vand.u32 %v3313, 4294901760
    %3315 = vmatmul.mubr.f32.gmra.mrb[0].mxu0 %v3314
    %v3316 = vpop.f32.mrb[0].mxu0
    %v3317 = vadd.f32 %v3227, %v3316
    %v3318 = vpop.f32.mrb[0].mxu0
    %3319 = vdwg.mxu0
    %3320 = vmatprep.subr.mxu0 0.0
    %v3321 = vand.u32 %v3206, 4294901760
    %v3322 = vsub.f32 %v3206, %v3321
    %v3323 = vand.u32 %v3322, 4294901760
    %v3324 = vsub.f32 %v3322, %v3323
    %v3325 = vand.u32 %v3324, 4294901760
    %3326 = vmatpush1.msra.mxu0 %v3325
    %3327 = vmatprep.subr.mxu0 0.0
    %v3328 = vand.u32 %v3207, 4294901760
    %v3329 = vsub.f32 %v3207, %v3328
    %v3330 = vand.u32 %v3329, 4294901760
    %v3331 = vsub.f32 %v3329, %v3330
    %v3332 = vand.u32 %v3331, 4294901760
    %3333 = vmatpush1.msra.mxu0 %v3332
    %3334 = vmatprep.subr.mxu0 0.0
    %v3335 = vand.u32 %v3208, 4294901760
    %v3336 = vsub.f32 %v3208, %v3335
    %v3337 = vand.u32 %v3336, 4294901760
    %v3338 = vsub.f32 %v3336, %v3337
    %v3339 = vand.u32 %v3338, 4294901760
    %3340 = vmatpush1.msra.mxu0 %v3339
    %3341 = vmatprep.subr.mxu0 0.0
    %v3342 = vand.u32 %v3209, 4294901760
    %v3343 = vsub.f32 %v3209, %v3342
    %v3344 = vand.u32 %v3343, 4294901760
    %v3345 = vsub.f32 %v3343, %v3344
    %v3346 = vand.u32 %v3345, 4294901760
    %3347 = vmatpush1.msra.mxu0 %v3346
    %3348 = vmatprep.subr.mxu0 0.0
    %v3349 = vand.u32 %v3210, 4294901760
    %v3350 = vsub.f32 %v3210, %v3349
    %v3351 = vand.u32 %v3350, 4294901760
    %v3352 = vsub.f32 %v3350, %v3351
    %v3353 = vand.u32 %v3352, 4294901760
    %3354 = vmatpush1.msra.mxu0 %v3353
    %3355 = vmatprep.subr.mxu0 0.0
    %v3356 = vand.u32 %v3211, 4294901760
    %v3357 = vsub.f32 %v3211, %v3356
    %v3358 = vand.u32 %v3357, 4294901760
    %v3359 = vsub.f32 %v3357, %v3358
    %v3360 = vand.u32 %v3359, 4294901760
    %3361 = vmatpush1.msra.mxu0 %v3360
    %3362 = vmatprep.subr.mxu0 0.0
    %v3363 = vand.u32 %v3212, 4294901760
    %v3364 = vsub.f32 %v3212, %v3363
    %v3365 = vand.u32 %v3364, 4294901760
    %v3366 = vsub.f32 %v3364, %v3365
    %v3367 = vand.u32 %v3366, 4294901760
    %3368 = vmatpush1.msra.mxu0 %v3367
    %3369 = vmatprep.subr.mxu0 0.0
    %v3370 = vand.u32 %v3213, 4294901760
    %v3371 = vsub.f32 %v3213, %v3370
    %v3372 = vand.u32 %v3371, 4294901760
    %v3373 = vsub.f32 %v3371, %v3372
    %v3374 = vand.u32 %v3373, 4294901760
    %3375 = vmatpush1.msra.mxu0 %v3374
    %3376 = vmatprep.subr.mxu0 0.0
    %v3377 = vand.u32 %v3214, 4294901760
    %v3378 = vsub.f32 %v3214, %v3377
    %v3379 = vand.u32 %v3378, 4294901760
    %v3380 = vsub.f32 %v3378, %v3379
    %v3381 = vand.u32 %v3380, 4294901760
    %3382 = vmatpush1.msra.mxu0 %v3381
    %3383 = vmatprep.subr.mxu0 0.0
    %v3384 = vand.u32 %v3215, 4294901760
    %v3385 = vsub.f32 %v3215, %v3384
    %v3386 = vand.u32 %v3385, 4294901760
    %v3387 = vsub.f32 %v3385, %v3386
    %v3388 = vand.u32 %v3387, 4294901760
    %3389 = vmatpush1.msra.mxu0 %v3388
    %3390 = vmatprep.subr.mxu0 0.0
    %v3391 = vand.u32 %v3216, 4294901760
    %v3392 = vsub.f32 %v3216, %v3391
    %v3393 = vand.u32 %v3392, 4294901760
    %v3394 = vsub.f32 %v3392, %v3393
    %v3395 = vand.u32 %v3394, 4294901760
    %3396 = vmatpush1.msra.mxu0 %v3395
    %3397 = vmatprep.subr.mxu0 0.0
    %v3398 = vand.u32 %v3217, 4294901760
    %v3399 = vsub.f32 %v3217, %v3398
    %v3400 = vand.u32 %v3399, 4294901760
    %v3401 = vsub.f32 %v3399, %v3400
    %v3402 = vand.u32 %v3401, 4294901760
    %3403 = vmatpush1.msra.mxu0 %v3402
    %3404 = vmatprep.subr.mxu0 0.0
    %v3405 = vand.u32 %v3218, 4294901760
    %v3406 = vsub.f32 %v3218, %v3405
    %v3407 = vand.u32 %v3406, 4294901760
    %v3408 = vsub.f32 %v3406, %v3407
    %v3409 = vand.u32 %v3408, 4294901760
    %3410 = vmatpush1.msra.mxu0 %v3409
    %3411 = vmatprep.subr.mxu0 0.0
    %v3412 = vand.u32 %v3219, 4294901760
    %v3413 = vsub.f32 %v3219, %v3412
    %v3414 = vand.u32 %v3413, 4294901760
    %v3415 = vsub.f32 %v3413, %v3414
    %v3416 = vand.u32 %v3415, 4294901760
    %3417 = vmatpush1.msra.mxu0 %v3416
    %3418 = vmatprep.subr.mxu0 0.0
    %v3419 = vand.u32 %v3220, 4294901760
    %v3420 = vsub.f32 %v3220, %v3419
    %v3421 = vand.u32 %v3420, 4294901760
    %v3422 = vsub.f32 %v3420, %v3421
    %v3423 = vand.u32 %v3422, 4294901760
    %3424 = vmatpush1.msra.mxu0 %v3423
    %3425 = vmatprep.subr.mxu0 0.0
    %v3426 = vand.u32 %v3221, 4294901760
    %v3427 = vsub.f32 %v3221, %v3426
    %v3428 = vand.u32 %v3427, 4294901760
    %v3429 = vsub.f32 %v3427, %v3428
    %v3430 = vand.u32 %v3429, 4294901760
    %3431 = vmatpush1.msra.mxu0 %v3430
    %3432 = vmatprep.subr.mxu0 0.0
    %3433 = vmatpush1.msra.mxu0 0.0
    %3434 = vmatprep.subr.mxu0 0.0
    %3435 = vmatpush1.msra.mxu0 0.0
    %3436 = vmatprep.subr.mxu0 0.0
    %3437 = vmatpush1.msra.mxu0 0.0
    %3438 = vmatprep.subr.mxu0 0.0
    %3439 = vmatpush1.msra.mxu0 0.0
    %3440 = vmatprep.subr.mxu0 0.0
    %3441 = vmatpush1.msra.mxu0 0.0
    %3442 = vmatprep.subr.mxu0 0.0
    %3443 = vmatpush1.msra.mxu0 0.0
    %3444 = vmatprep.subr.mxu0 0.0
    %3445 = vmatpush1.msra.mxu0 0.0
    %3446 = vmatprep.subr.mxu0 0.0
    %3447 = vmatpush1.msra.mxu0 0.0
    %3448 = vmatprep.subr.mxu0 0.0
    %3449 = vmatpush1.msra.mxu0 0.0
    %3450 = vmatprep.subr.mxu0 0.0
    %3451 = vmatpush1.msra.mxu0 0.0
    %3452 = vmatprep.subr.mxu0 0.0
    %3453 = vmatpush1.msra.mxu0 0.0
    %3454 = vmatprep.subr.mxu0 0.0
    %3455 = vmatpush1.msra.mxu0 0.0
    %3456 = vmatprep.subr.mxu0 0.0
    %3457 = vmatpush1.msra.mxu0 0.0
    %3458 = vmatprep.subr.mxu0 0.0
    %3459 = vmatpush1.msra.mxu0 0.0
    %3460 = vmatprep.subr.mxu0 0.0
    %3461 = vmatpush1.msra.mxu0 0.0
    %3462 = vmatprep.subr.mxu0 0.0
    %3463 = vmatpush1.msra.mxu0 0.0
    %3464 = vmatprep.mubr.f32.mxu0 0.0
    %v3465 = vand.u32 %v3205, 4294901760
    %3466 = vmatmul.mubr.f32.gmra.mrb[0].mxu0 %v3465
    %v3467 = vpop.f32.mrb[0].mxu0
    %v3468 = vadd.f32 %v3317, %v3467
    %v3469 = vpop.f32.mrb[0].mxu0
    %3470 = vdwg.mxu0
    %3471 = vmatprep.subr.mxu0 0.0
    %v3472 = vand.u32 %v3206, 4294901760
    %v3473 = vsub.f32 %v3206, %v3472
    %3474 = vmatpush1.msra.mxu0 %v3473
    %3475 = vmatprep.subr.mxu0 0.0
    %v3476 = vand.u32 %v3207, 4294901760
    %v3477 = vsub.f32 %v3207, %v3476
    %3478 = vmatpush1.msra.mxu0 %v3477
    %3479 = vmatprep.subr.mxu0 0.0
    %v3480 = vand.u32 %v3208, 4294901760
    %v3481 = vsub.f32 %v3208, %v3480
    %3482 = vmatpush1.msra.mxu0 %v3481
    %3483 = vmatprep.subr.mxu0 0.0
    %v3484 = vand.u32 %v3209, 4294901760
    %v3485 = vsub.f32 %v3209, %v3484
    %3486 = vmatpush1.msra.mxu0 %v3485
    %3487 = vmatprep.subr.mxu0 0.0
    %v3488 = vand.u32 %v3210, 4294901760
    %v3489 = vsub.f32 %v3210, %v3488
    %3490 = vmatpush1.msra.mxu0 %v3489
    %3491 = vmatprep.subr.mxu0 0.0
    %v3492 = vand.u32 %v3211, 4294901760
    %v3493 = vsub.f32 %v3211, %v3492
    %3494 = vmatpush1.msra.mxu0 %v3493
    %3495 = vmatprep.subr.mxu0 0.0
    %v3496 = vand.u32 %v3212, 4294901760
    %v3497 = vsub.f32 %v3212, %v3496
    %3498 = vmatpush1.msra.mxu0 %v3497
    %3499 = vmatprep.subr.mxu0 0.0
    %v3500 = vand.u32 %v3213, 4294901760
    %v3501 = vsub.f32 %v3213, %v3500
    %3502 = vmatpush1.msra.mxu0 %v3501
    %3503 = vmatprep.subr.mxu0 0.0
    %v3504 = vand.u32 %v3214, 4294901760
    %v3505 = vsub.f32 %v3214, %v3504
    %3506 = vmatpush1.msra.mxu0 %v3505
    %3507 = vmatprep.subr.mxu0 0.0
    %v3508 = vand.u32 %v3215, 4294901760
    %v3509 = vsub.f32 %v3215, %v3508
    %3510 = vmatpush1.msra.mxu0 %v3509
    %3511 = vmatprep.subr.mxu0 0.0
    %v3512 = vand.u32 %v3216, 4294901760
    %v3513 = vsub.f32 %v3216, %v3512
    %3514 = vmatpush1.msra.mxu0 %v3513
    %3515 = vmatprep.subr.mxu0 0.0
    %v3516 = vand.u32 %v3217, 4294901760
    %v3517 = vsub.f32 %v3217, %v3516
    %3518 = vmatpush1.msra.mxu0 %v3517
    %3519 = vmatprep.subr.mxu0 0.0
    %v3520 = vand.u32 %v3218, 4294901760
    %v3521 = vsub.f32 %v3218, %v3520
    %3522 = vmatpush1.msra.mxu0 %v3521
    %3523 = vmatprep.subr.mxu0 0.0
    %v3524 = vand.u32 %v3219, 4294901760
    %v3525 = vsub.f32 %v3219, %v3524
    %3526 = vmatpush1.msra.mxu0 %v3525
    %3527 = vmatprep.subr.mxu0 0.0
    %v3528 = vand.u32 %v3220, 4294901760
    %v3529 = vsub.f32 %v3220, %v3528
    %3530 = vmatpush1.msra.mxu0 %v3529
    %3531 = vmatprep.subr.mxu0 0.0
    %v3532 = vand.u32 %v3221, 4294901760
    %v3533 = vsub.f32 %v3221, %v3532
    %3534 = vmatpush1.msra.mxu0 %v3533
    %3535 = vmatprep.subr.mxu0 0.0
    %3536 = vmatpush1.msra.mxu0 0.0
    %3537 = vmatprep.subr.mxu0 0.0
    %3538 = vmatpush1.msra.mxu0 0.0
    %3539 = vmatprep.subr.mxu0 0.0
    %3540 = vmatpush1.msra.mxu0 0.0
    %3541 = vmatprep.subr.mxu0 0.0
    %3542 = vmatpush1.msra.mxu0 0.0
    %3543 = vmatprep.subr.mxu0 0.0
    %3544 = vmatpush1.msra.mxu0 0.0
    %3545 = vmatprep.subr.mxu0 0.0
    %3546 = vmatpush1.msra.mxu0 0.0
    %3547 = vmatprep.subr.mxu0 0.0
    %3548 = vmatpush1.msra.mxu0 0.0
    %3549 = vmatprep.subr.mxu0 0.0
    %3550 = vmatpush1.msra.mxu0 0.0
    %3551 = vmatprep.subr.mxu0 0.0
    %3552 = vmatpush1.msra.mxu0 0.0
    %3553 = vmatprep.subr.mxu0 0.0
    %3554 = vmatpush1.msra.mxu0 0.0
    %3555 = vmatprep.subr.mxu0 0.0
    %3556 = vmatpush1.msra.mxu0 0.0
    %3557 = vmatprep.subr.mxu0 0.0
    %3558 = vmatpush1.msra.mxu0 0.0
    %3559 = vmatprep.subr.mxu0 0.0
    %3560 = vmatpush1.msra.mxu0 0.0
    %3561 = vmatprep.subr.mxu0 0.0
    %3562 = vmatpush1.msra.mxu0 0.0
    %3563 = vmatprep.subr.mxu0 0.0
    %3564 = vmatpush1.msra.mxu0 0.0
    %3565 = vmatprep.subr.mxu0 0.0
    %3566 = vmatpush1.msra.mxu0 0.0
    %3567 = vmatprep.mubr.f32.mxu0 0.0
    %v3568 = vand.u32 %v3205, 4294901760
    %v3569 = vsub.f32 %v3205, %v3568
    %3570 = vmatmul.mubr.f32.gmra.mrb[0].mxu0 %v3569
    %v3571 = vpop.f32.mrb[0].mxu0
    %v3572 = vadd.f32 %v3468, %v3571
    %v3573 = vpop.f32.mrb[0].mxu0
    %3574 = vdwg.mxu0
    %3575 = vmatprep.subr.mxu0 0.0
    %v3576 = vand.u32 %v3206, 4294901760
    %3577 = vmatpush1.msra.mxu0 %v3576
    %3578 = vmatprep.subr.mxu0 0.0
    %v3579 = vand.u32 %v3207, 4294901760
    %3580 = vmatpush1.msra.mxu0 %v3579
    %3581 = vmatprep.subr.mxu0 0.0
    %v3582 = vand.u32 %v3208, 4294901760
    %3583 = vmatpush1.msra.mxu0 %v3582
    %3584 = vmatprep.subr.mxu0 0.0
    %v3585 = vand.u32 %v3209, 4294901760
    %3586 = vmatpush1.msra.mxu0 %v3585
    %3587 = vmatprep.subr.mxu0 0.0
    %v3588 = vand.u32 %v3210, 4294901760
    %3589 = vmatpush1.msra.mxu0 %v3588
    %3590 = vmatprep.subr.mxu0 0.0
    %v3591 = vand.u32 %v3211, 4294901760
    %3592 = vmatpush1.msra.mxu0 %v3591
    %3593 = vmatprep.subr.mxu0 0.0
    %v3594 = vand.u32 %v3212, 4294901760
    %3595 = vmatpush1.msra.mxu0 %v3594
    %3596 = vmatprep.subr.mxu0 0.0
    %v3597 = vand.u32 %v3213, 4294901760
    %3598 = vmatpush1.msra.mxu0 %v3597
    %3599 = vmatprep.subr.mxu0 0.0
    %v3600 = vand.u32 %v3214, 4294901760
    %3601 = vmatpush1.msra.mxu0 %v3600
    %3602 = vmatprep.subr.mxu0 0.0
    %v3603 = vand.u32 %v3215, 4294901760
    %3604 = vmatpush1.msra.mxu0 %v3603
    %3605 = vmatprep.subr.mxu0 0.0
    %v3606 = vand.u32 %v3216, 4294901760
    %3607 = vmatpush1.msra.mxu0 %v3606
    %3608 = vmatprep.subr.mxu0 0.0
    %v3609 = vand.u32 %v3217, 4294901760
    %3610 = vmatpush1.msra.mxu0 %v3609
    %3611 = vmatprep.subr.mxu0 0.0
    %v3612 = vand.u32 %v3218, 4294901760
    %3613 = vmatpush1.msra.mxu0 %v3612
    %3614 = vmatprep.subr.mxu0 0.0
    %v3615 = vand.u32 %v3219, 4294901760
    %3616 = vmatpush1.msra.mxu0 %v3615
    %3617 = vmatprep.subr.mxu0 0.0
    %v3618 = vand.u32 %v3220, 4294901760
    %3619 = vmatpush1.msra.mxu0 %v3618
    %3620 = vmatprep.subr.mxu0 0.0
    %v3621 = vand.u32 %v3221, 4294901760
    %3622 = vmatpush1.msra.mxu0 %v3621
    %3623 = vmatprep.subr.mxu0 0.0
    %3624 = vmatpush1.msra.mxu0 0.0
    %3625 = vmatprep.subr.mxu0 0.0
    %3626 = vmatpush1.msra.mxu0 0.0
    %3627 = vmatprep.subr.mxu0 0.0
    %3628 = vmatpush1.msra.mxu0 0.0
    %3629 = vmatprep.subr.mxu0 0.0
    %3630 = vmatpush1.msra.mxu0 0.0
    %3631 = vmatprep.subr.mxu0 0.0
    %3632 = vmatpush1.msra.mxu0 0.0
    %3633 = vmatprep.subr.mxu0 0.0
    %3634 = vmatpush1.msra.mxu0 0.0
    %3635 = vmatprep.subr.mxu0 0.0
    %3636 = vmatpush1.msra.mxu0 0.0
    %3637 = vmatprep.subr.mxu0 0.0
    %3638 = vmatpush1.msra.mxu0 0.0
    %3639 = vmatprep.subr.mxu0 0.0
    %3640 = vmatpush1.msra.mxu0 0.0
    %3641 = vmatprep.subr.mxu0 0.0
    %3642 = vmatpush1.msra.mxu0 0.0
    %3643 = vmatprep.subr.mxu0 0.0
    %3644 = vmatpush1.msra.mxu0 0.0
    %3645 = vmatprep.subr.mxu0 0.0
    %3646 = vmatpush1.msra.mxu0 0.0
    %3647 = vmatprep.subr.mxu0 0.0
    %3648 = vmatpush1.msra.mxu0 0.0
    %3649 = vmatprep.subr.mxu0 0.0
    %3650 = vmatpush1.msra.mxu0 0.0
    %3651 = vmatprep.subr.mxu0 0.0
    %3652 = vmatpush1.msra.mxu0 0.0
    %3653 = vmatprep.subr.mxu0 0.0
    %3654 = vmatpush1.msra.mxu0 0.0
    %3655 = vmatprep.mubr.f32.mxu0 0.0
    %v3656 = vand.u32 %v3205, 4294901760
    %v3657 = vsub.f32 %v3205, %v3656
    %v3658 = vand.u32 %v3657, 4294901760
    %3659 = vmatmul.mubr.f32.gmra.mrb[0].mxu0 %v3658
    %v3660 = vpop.f32.mrb[0].mxu0
    %v3661 = vadd.f32 %v3572, %v3660
    %v3662 = vpop.f32.mrb[0].mxu0
    %3663 = vdwg.mxu0
    %3664 = vmatprep.subr.mxu0 0.0
    %v3665 = vand.u32 %v3206, 4294901760
    %v3666 = vsub.f32 %v3206, %v3665
    %v3667 = vand.u32 %v3666, 4294901760
    %3668 = vmatpush1.msra.mxu0 %v3667
    %3669 = vmatprep.subr.mxu0 0.0
    %v3670 = vand.u32 %v3207, 4294901760
    %v3671 = vsub.f32 %v3207, %v3670
    %v3672 = vand.u32 %v3671, 4294901760
    %3673 = vmatpush1.msra.mxu0 %v3672
    %3674 = vmatprep.subr.mxu0 0.0
    %v3675 = vand.u32 %v3208, 4294901760
    %v3676 = vsub.f32 %v3208, %v3675
    %v3677 = vand.u32 %v3676, 4294901760
    %3678 = vmatpush1.msra.mxu0 %v3677
    %3679 = vmatprep.subr.mxu0 0.0
    %v3680 = vand.u32 %v3209, 4294901760
    %v3681 = vsub.f32 %v3209, %v3680
    %v3682 = vand.u32 %v3681, 4294901760
    %3683 = vmatpush1.msra.mxu0 %v3682
    %3684 = vmatprep.subr.mxu0 0.0
    %v3685 = vand.u32 %v3210, 4294901760
    %v3686 = vsub.f32 %v3210, %v3685
    %v3687 = vand.u32 %v3686, 4294901760
    %3688 = vmatpush1.msra.mxu0 %v3687
    %3689 = vmatprep.subr.mxu0 0.0
    %v3690 = vand.u32 %v3211, 4294901760
    %v3691 = vsub.f32 %v3211, %v3690
    %v3692 = vand.u32 %v3691, 4294901760
    %3693 = vmatpush1.msra.mxu0 %v3692
    %3694 = vmatprep.subr.mxu0 0.0
    %v3695 = vand.u32 %v3212, 4294901760
    %v3696 = vsub.f32 %v3212, %v3695
    %v3697 = vand.u32 %v3696, 4294901760
    %3698 = vmatpush1.msra.mxu0 %v3697
    %3699 = vmatprep.subr.mxu0 0.0
    %v3700 = vand.u32 %v3213, 4294901760
    %v3701 = vsub.f32 %v3213, %v3700
    %v3702 = vand.u32 %v3701, 4294901760
    %3703 = vmatpush1.msra.mxu0 %v3702
    %3704 = vmatprep.subr.mxu0 0.0
    %v3705 = vand.u32 %v3214, 4294901760
    %v3706 = vsub.f32 %v3214, %v3705
    %v3707 = vand.u32 %v3706, 4294901760
    %3708 = vmatpush1.msra.mxu0 %v3707
    %3709 = vmatprep.subr.mxu0 0.0
    %v3710 = vand.u32 %v3215, 4294901760
    %v3711 = vsub.f32 %v3215, %v3710
    %v3712 = vand.u32 %v3711, 4294901760
    %3713 = vmatpush1.msra.mxu0 %v3712
    %3714 = vmatprep.subr.mxu0 0.0
    %v3715 = vand.u32 %v3216, 4294901760
    %v3716 = vsub.f32 %v3216, %v3715
    %v3717 = vand.u32 %v3716, 4294901760
    %3718 = vmatpush1.msra.mxu0 %v3717
    %3719 = vmatprep.subr.mxu0 0.0
    %v3720 = vand.u32 %v3217, 4294901760
    %v3721 = vsub.f32 %v3217, %v3720
    %v3722 = vand.u32 %v3721, 4294901760
    %3723 = vmatpush1.msra.mxu0 %v3722
    %3724 = vmatprep.subr.mxu0 0.0
    %v3725 = vand.u32 %v3218, 4294901760
    %v3726 = vsub.f32 %v3218, %v3725
    %v3727 = vand.u32 %v3726, 4294901760
    %3728 = vmatpush1.msra.mxu0 %v3727
    %3729 = vmatprep.subr.mxu0 0.0
    %v3730 = vand.u32 %v3219, 4294901760
    %v3731 = vsub.f32 %v3219, %v3730
    %v3732 = vand.u32 %v3731, 4294901760
    %3733 = vmatpush1.msra.mxu0 %v3732
    %3734 = vmatprep.subr.mxu0 0.0
    %v3735 = vand.u32 %v3220, 4294901760
    %v3736 = vsub.f32 %v3220, %v3735
    %v3737 = vand.u32 %v3736, 4294901760
    %3738 = vmatpush1.msra.mxu0 %v3737
    %3739 = vmatprep.subr.mxu0 0.0
    %v3740 = vand.u32 %v3221, 4294901760
    %v3741 = vsub.f32 %v3221, %v3740
    %v3742 = vand.u32 %v3741, 4294901760
    %3743 = vmatpush1.msra.mxu0 %v3742
    %3744 = vmatprep.subr.mxu0 0.0
    %3745 = vmatpush1.msra.mxu0 0.0
    %3746 = vmatprep.subr.mxu0 0.0
    %3747 = vmatpush1.msra.mxu0 0.0
    %3748 = vmatprep.subr.mxu0 0.0
    %3749 = vmatpush1.msra.mxu0 0.0
    %3750 = vmatprep.subr.mxu0 0.0
    %3751 = vmatpush1.msra.mxu0 0.0
    %3752 = vmatprep.subr.mxu0 0.0
    %3753 = vmatpush1.msra.mxu0 0.0
    %3754 = vmatprep.subr.mxu0 0.0
    %3755 = vmatpush1.msra.mxu0 0.0
    %3756 = vmatprep.subr.mxu0 0.0
    %3757 = vmatpush1.msra.mxu0 0.0
    %3758 = vmatprep.subr.mxu0 0.0
    %3759 = vmatpush1.msra.mxu0 0.0
    %3760 = vmatprep.subr.mxu0 0.0
    %3761 = vmatpush1.msra.mxu0 0.0
    %3762 = vmatprep.subr.mxu0 0.0
    %3763 = vmatpush1.msra.mxu0 0.0
    %3764 = vmatprep.subr.mxu0 0.0
    %3765 = vmatpush1.msra.mxu0 0.0
    %3766 = vmatprep.subr.mxu0 0.0
    %3767 = vmatpush1.msra.mxu0 0.0
    %3768 = vmatprep.subr.mxu0 0.0
    %3769 = vmatpush1.msra.mxu0 0.0
    %3770 = vmatprep.subr.mxu0 0.0
    %3771 = vmatpush1.msra.mxu0 0.0
    %3772 = vmatprep.subr.mxu0 0.0
    %3773 = vmatpush1.msra.mxu0 0.0
    %3774 = vmatprep.subr.mxu0 0.0
    %3775 = vmatpush1.msra.mxu0 0.0
    %3776 = vmatprep.mubr.f32.mxu0 0.0
    %v3777 = vand.u32 %v3205, 4294901760
    %3778 = vmatmul.mubr.f32.gmra.mrb[0].mxu0 %v3777
    %v3779 = vpop.f32.mrb[0].mxu0
    %v3780 = vadd.f32 %v3661, %v3779
    %v3781 = vpop.f32.mrb[0].mxu0
    %3782 = vdwg.mxu0
    %3783 = vmatprep.subr.mxu0 0.0
    %v3784 = vand.u32 %v3206, 4294901760
    %3785 = vmatpush1.msra.mxu0 %v3784
    %3786 = vmatprep.subr.mxu0 0.0
    %v3787 = vand.u32 %v3207, 4294901760
    %3788 = vmatpush1.msra.mxu0 %v3787
    %3789 = vmatprep.subr.mxu0 0.0
    %v3790 = vand.u32 %v3208, 4294901760
    %3791 = vmatpush1.msra.mxu0 %v3790
    %3792 = vmatprep.subr.mxu0 0.0
    %v3793 = vand.u32 %v3209, 4294901760
    %3794 = vmatpush1.msra.mxu0 %v3793
    %3795 = vmatprep.subr.mxu0 0.0
    %v3796 = vand.u32 %v3210, 4294901760
    %3797 = vmatpush1.msra.mxu0 %v3796
    %3798 = vmatprep.subr.mxu0 0.0
    %v3799 = vand.u32 %v3211, 4294901760
    %3800 = vmatpush1.msra.mxu0 %v3799
    %3801 = vmatprep.subr.mxu0 0.0
    %v3802 = vand.u32 %v3212, 4294901760
    %3803 = vmatpush1.msra.mxu0 %v3802
    %3804 = vmatprep.subr.mxu0 0.0
    %v3805 = vand.u32 %v3213, 4294901760
    %3806 = vmatpush1.msra.mxu0 %v3805
    %3807 = vmatprep.subr.mxu0 0.0
    %v3808 = vand.u32 %v3214, 4294901760
    %3809 = vmatpush1.msra.mxu0 %v3808
    %3810 = vmatprep.subr.mxu0 0.0
    %v3811 = vand.u32 %v3215, 4294901760
    %3812 = vmatpush1.msra.mxu0 %v3811
    %3813 = vmatprep.subr.mxu0 0.0
    %v3814 = vand.u32 %v3216, 4294901760
    %3815 = vmatpush1.msra.mxu0 %v3814
    %3816 = vmatprep.subr.mxu0 0.0
    %v3817 = vand.u32 %v3217, 4294901760
    %3818 = vmatpush1.msra.mxu0 %v3817
    %3819 = vmatprep.subr.mxu0 0.0
    %v3820 = vand.u32 %v3218, 4294901760
    %3821 = vmatpush1.msra.mxu0 %v3820
    %3822 = vmatprep.subr.mxu0 0.0
    %v3823 = vand.u32 %v3219, 4294901760
    %3824 = vmatpush1.msra.mxu0 %v3823
    %3825 = vmatprep.subr.mxu0 0.0
    %v3826 = vand.u32 %v3220, 4294901760
    %3827 = vmatpush1.msra.mxu0 %v3826
    %3828 = vmatprep.subr.mxu0 0.0
    %v3829 = vand.u32 %v3221, 4294901760
    %3830 = vmatpush1.msra.mxu0 %v3829
    %3831 = vmatprep.subr.mxu0 0.0
    %3832 = vmatpush1.msra.mxu0 0.0
    %3833 = vmatprep.subr.mxu0 0.0
    %3834 = vmatpush1.msra.mxu0 0.0
    %3835 = vmatprep.subr.mxu0 0.0
    %3836 = vmatpush1.msra.mxu0 0.0
    %3837 = vmatprep.subr.mxu0 0.0
    %3838 = vmatpush1.msra.mxu0 0.0
    %3839 = vmatprep.subr.mxu0 0.0
    %3840 = vmatpush1.msra.mxu0 0.0
    %3841 = vmatprep.subr.mxu0 0.0
    %3842 = vmatpush1.msra.mxu0 0.0
    %3843 = vmatprep.subr.mxu0 0.0
    %3844 = vmatpush1.msra.mxu0 0.0
    %3845 = vmatprep.subr.mxu0 0.0
    %3846 = vmatpush1.msra.mxu0 0.0
    %3847 = vmatprep.subr.mxu0 0.0
    %3848 = vmatpush1.msra.mxu0 0.0
    %3849 = vmatprep.subr.mxu0 0.0
    %3850 = vmatpush1.msra.mxu0 0.0
    %3851 = vmatprep.subr.mxu0 0.0
    %3852 = vmatpush1.msra.mxu0 0.0
    %3853 = vmatprep.subr.mxu0 0.0
    %3854 = vmatpush1.msra.mxu0 0.0
    %3855 = vmatprep.subr.mxu0 0.0
    %3856 = vmatpush1.msra.mxu0 0.0
    %3857 = vmatprep.subr.mxu0 0.0
    %3858 = vmatpush1.msra.mxu0 0.0
    %3859 = vmatprep.subr.mxu0 0.0
    %3860 = vmatpush1.msra.mxu0 0.0
    %3861 = vmatprep.subr.mxu0 0.0
    %3862 = vmatpush1.msra.mxu0 0.0
    %3863 = vmatprep.mubr.f32.mxu0 0.0
    %v3864 = vand.u32 %v3205, 4294901760
    %3865 = vmatmul.mubr.f32.gmra.mrb[0].mxu0 %v3864
    %v3866 = vpop.f32.mrb[0].mxu0
    %v3867 = vadd.f32 %v3780, %v3866
    %v3868 = vpop.f32.mrb[0].mxu0
    %3869 = vdwg.mxu0
    %vm3870 = vcmp.gt.f32.partialorder %v3867, 0.0
    %v3871 = vmul.f32 %v3867, 1.442695
    %v3872 = vpow.pop %v3871
    %v3873 = vsub.f32 %v3872, 1.0
    %v3874 = vsel %vm3870, %v3867, %v3873
    %v3875 = vld [vmem:[%s5] sm:$0xff]
    %v3876 = vld [vmem:[%s5 + $0x8] sm:$0xff]
    %v3877 = vld [vmem:[%s5 + $0x10] sm:$0xff]
    %v3878 = vld [vmem:[%s5 + $0x18] sm:$0xff]
    %v3879 = vld [vmem:[%s5 + $0x20] sm:$0xff]
    %v3880 = vld [vmem:[%s5 + $0x28] sm:$0xff]
    %v3881 = vld [vmem:[%s5 + $0x30] sm:$0xff]
    %v3882 = vld [vmem:[%s5 + $0x38] sm:$0xff]
    %v3883 = vld [vmem:[%s6] sm:$0x1]
    %v3885 = vlaneseq
    %v3886 = vshrl.u32 %v3885, 7
    %v3887 = vsub.s32 0, %v3886
    %v3888 = vrot.slane %v3883, %v3887
    %vm3890 = vcmask 523264
    %v3892 = vsel %vm3890, %v3874, 0
    %3894 = vmatprep.subr.mxu0 0.0
    %v3895 = vand.u32 %v3875, 4294901760
    %3896 = vmatpush1.msra.mxu0 %v3895
    %3897 = vmatprep.subr.mxu0 0.0
    %v3898 = vand.u32 %v3876, 4294901760
    %3899 = vmatpush1.msra.mxu0 %v3898
    %3900 = vmatprep.subr.mxu0 0.0
    %v3901 = vand.u32 %v3877, 4294901760
    %3902 = vmatpush1.msra.mxu0 %v3901
    %3903 = vmatprep.subr.mxu0 0.0
    %v3904 = vand.u32 %v3878, 4294901760
    %3905 = vmatpush1.msra.mxu0 %v3904
    %3906 = vmatprep.subr.mxu0 0.0
    %v3907 = vand.u32 %v3879, 4294901760
    %3908 = vmatpush1.msra.mxu0 %v3907
    %3909 = vmatprep.subr.mxu0 0.0
    %v3910 = vand.u32 %v3880, 4294901760
    %3911 = vmatpush1.msra.mxu0 %v3910
    %3912 = vmatprep.subr.mxu0 0.0
    %v3913 = vand.u32 %v3881, 4294901760
    %3914 = vmatpush1.msra.mxu0 %v3913
    %3915 = vmatprep.subr.mxu0 0.0
    %v3916 = vand.u32 %v3882, 4294901760
    %3917 = vmatpush1.msra.mxu0 %v3916
    %3918 = vmatprep.subr.mxu0 0.0
    %3919 = vmatpush1.msra.mxu0 0.0
    %3920 = vmatprep.subr.mxu0 0.0
    %3921 = vmatpush1.msra.mxu0 0.0
    %3922 = vmatprep.subr.mxu0 0.0
    %3923 = vmatpush1.msra.mxu0 0.0
    %3924 = vmatprep.subr.mxu0 0.0
    %3925 = vmatpush1.msra.mxu0 0.0
    %3926 = vmatprep.subr.mxu0 0.0
    %3927 = vmatpush1.msra.mxu0 0.0
    %3928 = vmatprep.subr.mxu0 0.0
    %3929 = vmatpush1.msra.mxu0 0.0
    %3930 = vmatprep.subr.mxu0 0.0
    %3931 = vmatpush1.msra.mxu0 0.0
    %3932 = vmatprep.subr.mxu0 0.0
    %3933 = vmatpush1.msra.mxu0 0.0
    %3934 = vmatprep.subr.mxu0 0.0
    %3935 = vmatpush1.msra.mxu0 0.0
    %3936 = vmatprep.subr.mxu0 0.0
    %3937 = vmatpush1.msra.mxu0 0.0
    %3938 = vmatprep.subr.mxu0 0.0
    %3939 = vmatpush1.msra.mxu0 0.0
    %3940 = vmatprep.subr.mxu0 0.0
    %3941 = vmatpush1.msra.mxu0 0.0
    %3942 = vmatprep.subr.mxu0 0.0
    %3943 = vmatpush1.msra.mxu0 0.0
    %3944 = vmatprep.subr.mxu0 0.0
    %3945 = vmatpush1.msra.mxu0 0.0
    %3946 = vmatprep.subr.mxu0 0.0
    %3947 = vmatpush1.msra.mxu0 0.0
    %3948 = vmatprep.subr.mxu0 0.0
    %3949 = vmatpush1.msra.mxu0 0.0
    %3950 = vmatprep.subr.mxu0 0.0
    %3951 = vmatpush1.msra.mxu0 0.0
    %3952 = vmatprep.subr.mxu0 0.0
    %3953 = vmatpush1.msra.mxu0 0.0
    %3954 = vmatprep.subr.mxu0 0.0
    %3955 = vmatpush1.msra.mxu0 0.0
    %3956 = vmatprep.subr.mxu0 0.0
    %3957 = vmatpush1.msra.mxu0 0.0
    %3958 = vmatprep.subr.mxu0 0.0
    %3959 = vmatpush1.msra.mxu0 0.0
    %3960 = vmatprep.subr.mxu0 0.0
    %3961 = vmatpush1.msra.mxu0 0.0
    %3962 = vmatprep.subr.mxu0 0.0
    %3963 = vmatpush1.msra.mxu0 0.0
    %3964 = vmatprep.subr.mxu0 0.0
    %3965 = vmatpush1.msra.mxu0 0.0
    %3966 = vmatprep.mubr.f32.mxu0 0.0
    %v3967 = vand.u32 %v3892, 4294901760
    %v3968 = vsub.f32 %v3892, %v3967
    %v3969 = vand.u32 %v3968, 4294901760
    %v3970 = vsub.f32 %v3968, %v3969
    %v3971 = vand.u32 %v3970, 4294901760
    %3972 = vmatmul.mubr.f32.gmra.mrb[0].mxu0 %v3971
    %v3973 = vpop.f32.mrb[0].mxu0
    %v3974 = vadd.f32 %v3888, %v3973
    %v3975 = vpop.f32.mrb[0].mxu0
    %3976 = vdwg.mxu0
    %3977 = vmatprep.subr.mxu0 0.0
    %v3978 = vand.u32 %v3875, 4294901760
    %v3979 = vsub.f32 %v3875, %v3978
    %v3980 = vand.u32 %v3979, 4294901760
    %v3981 = vsub.f32 %v3979, %v3980
    %v3982 = vand.u32 %v3981, 4294901760
    %3983 = vmatpush1.msra.mxu0 %v3982
    %3984 = vmatprep.subr.mxu0 0.0
    %v3985 = vand.u32 %v3876, 4294901760
    %v3986 = vsub.f32 %v3876, %v3985
    %v3987 = vand.u32 %v3986, 4294901760
    %v3988 = vsub.f32 %v3986, %v3987
    %v3989 = vand.u32 %v3988, 4294901760
    %3990 = vmatpush1.msra.mxu0 %v3989
    %3991 = vmatprep.subr.mxu0 0.0
    %v3992 = vand.u32 %v3877, 4294901760
    %v3993 = vsub.f32 %v3877, %v3992
    %v3994 = vand.u32 %v3993, 4294901760
    %v3995 = vsub.f32 %v3993, %v3994
    %v3996 = vand.u32 %v3995, 4294901760
    %3997 = vmatpush1.msra.mxu0 %v3996
    %3998 = vmatprep.subr.mxu0 0.0
    %v3999 = vand.u32 %v3878, 4294901760
    %v4000 = vsub.f32 %v3878, %v3999
    %v4001 = vand.u32 %v4000, 4294901760
    %v4002 = vsub.f32 %v4000, %v4001
    %v4003 = vand.u32 %v4002, 4294901760
    %4004 = vmatpush1.msra.mxu0 %v4003
    %4005 = vmatprep.subr.mxu0 0.0
    %v4006 = vand.u32 %v3879, 4294901760
    %v4007 = vsub.f32 %v3879, %v4006
    %v4008 = vand.u32 %v4007, 4294901760
    %v4009 = vsub.f32 %v4007, %v4008
    %v4010 = vand.u32 %v4009, 4294901760
    %4011 = vmatpush1.msra.mxu0 %v4010
    %4012 = vmatprep.subr.mxu0 0.0
    %v4013 = vand.u32 %v3880, 4294901760
    %v4014 = vsub.f32 %v3880, %v4013
    %v4015 = vand.u32 %v4014, 4294901760
    %v4016 = vsub.f32 %v4014, %v4015
    %v4017 = vand.u32 %v4016, 4294901760
    %4018 = vmatpush1.msra.mxu0 %v4017
    %4019 = vmatprep.subr.mxu0 0.0
    %v4020 = vand.u32 %v3881, 4294901760
    %v4021 = vsub.f32 %v3881, %v4020
    %v4022 = vand.u32 %v4021, 4294901760
    %v4023 = vsub.f32 %v4021, %v4022
    %v4024 = vand.u32 %v4023, 4294901760
    %4025 = vmatpush1.msra.mxu0 %v4024
    %4026 = vmatprep.subr.mxu0 0.0
    %v4027 = vand.u32 %v3882, 4294901760
    %v4028 = vsub.f32 %v3882, %v4027
    %v4029 = vand.u32 %v4028, 4294901760
    %v4030 = vsub.f32 %v4028, %v4029
    %v4031 = vand.u32 %v4030, 4294901760
    %4032 = vmatpush1.msra.mxu0 %v4031
    %4033 = vmatprep.subr.mxu0 0.0
    %4034 = vmatpush1.msra.mxu0 0.0
    %4035 = vmatprep.subr.mxu0 0.0
    %4036 = vmatpush1.msra.mxu0 0.0
    %4037 = vmatprep.subr.mxu0 0.0
    %4038 = vmatpush1.msra.mxu0 0.0
    %4039 = vmatprep.subr.mxu0 0.0
    %4040 = vmatpush1.msra.mxu0 0.0
    %4041 = vmatprep.subr.mxu0 0.0
    %4042 = vmatpush1.msra.mxu0 0.0
    %4043 = vmatprep.subr.mxu0 0.0
    %4044 = vmatpush1.msra.mxu0 0.0
    %4045 = vmatprep.subr.mxu0 0.0
    %4046 = vmatpush1.msra.mxu0 0.0
    %4047 = vmatprep.subr.mxu0 0.0
    %4048 = vmatpush1.msra.mxu0 0.0
    %4049 = vmatprep.subr.mxu0 0.0
    %4050 = vmatpush1.msra.mxu0 0.0
    %4051 = vmatprep.subr.mxu0 0.0
    %4052 = vmatpush1.msra.mxu0 0.0
    %4053 = vmatprep.subr.mxu0 0.0
    %4054 = vmatpush1.msra.mxu0 0.0
    %4055 = vmatprep.subr.mxu0 0.0
    %4056 = vmatpush1.msra.mxu0 0.0
    %4057 = vmatprep.subr.mxu0 0.0
    %4058 = vmatpush1.msra.mxu0 0.0
    %4059 = vmatprep.subr.mxu0 0.0
    %4060 = vmatpush1.msra.mxu0 0.0
    %4061 = vmatprep.subr.mxu0 0.0
    %4062 = vmatpush1.msra.mxu0 0.0
    %4063 = vmatprep.subr.mxu0 0.0
    %4064 = vmatpush1.msra.mxu0 0.0
    %4065 = vmatprep.subr.mxu0 0.0
    %4066 = vmatpush1.msra.mxu0 0.0
    %4067 = vmatprep.subr.mxu0 0.0
    %4068 = vmatpush1.msra.mxu0 0.0
    %4069 = vmatprep.subr.mxu0 0.0
    %4070 = vmatpush1.msra.mxu0 0.0
    %4071 = vmatprep.subr.mxu0 0.0
    %4072 = vmatpush1.msra.mxu0 0.0
    %4073 = vmatprep.subr.mxu0 0.0
    %4074 = vmatpush1.msra.mxu0 0.0
    %4075 = vmatprep.subr.mxu0 0.0
    %4076 = vmatpush1.msra.mxu0 0.0
    %4077 = vmatprep.subr.mxu0 0.0
    %4078 = vmatpush1.msra.mxu0 0.0
    %4079 = vmatprep.subr.mxu0 0.0
    %4080 = vmatpush1.msra.mxu0 0.0
    %4081 = vmatprep.mubr.f32.mxu0 0.0
    %v4082 = vand.u32 %v3892, 4294901760
    %4083 = vmatmul.mubr.f32.gmra.mrb[0].mxu0 %v4082
    %v4084 = vpop.f32.mrb[0].mxu0
    %v4085 = vadd.f32 %v3974, %v4084
    %v4086 = vpop.f32.mrb[0].mxu0
    %4087 = vdwg.mxu0
    %4088 = vmatprep.subr.mxu0 0.0
    %v4089 = vand.u32 %v3875, 4294901760
    %v4090 = vsub.f32 %v3875, %v4089
    %4091 = vmatpush1.msra.mxu0 %v4090
    %4092 = vmatprep.subr.mxu0 0.0
    %v4093 = vand.u32 %v3876, 4294901760
    %v4094 = vsub.f32 %v3876, %v4093
    %4095 = vmatpush1.msra.mxu0 %v4094
    %4096 = vmatprep.subr.mxu0 0.0
    %v4097 = vand.u32 %v3877, 4294901760
    %v4098 = vsub.f32 %v3877, %v4097
    %4099 = vmatpush1.msra.mxu0 %v4098
    %4100 = vmatprep.subr.mxu0 0.0
    %v4101 = vand.u32 %v3878, 4294901760
    %v4102 = vsub.f32 %v3878, %v4101
    %4103 = vmatpush1.msra.mxu0 %v4102
    %4104 = vmatprep.subr.mxu0 0.0
    %v4105 = vand.u32 %v3879, 4294901760
    %v4106 = vsub.f32 %v3879, %v4105
    %4107 = vmatpush1.msra.mxu0 %v4106
    %4108 = vmatprep.subr.mxu0 0.0
    %v4109 = vand.u32 %v3880, 4294901760
    %v4110 = vsub.f32 %v3880, %v4109
    %4111 = vmatpush1.msra.mxu0 %v4110
    %4112 = vmatprep.subr.mxu0 0.0
    %v4113 = vand.u32 %v3881, 4294901760
    %v4114 = vsub.f32 %v3881, %v4113
    %4115 = vmatpush1.msra.mxu0 %v4114
    %4116 = vmatprep.subr.mxu0 0.0
    %v4117 = vand.u32 %v3882, 4294901760
    %v4118 = vsub.f32 %v3882, %v4117
    %4119 = vmatpush1.msra.mxu0 %v4118
    %4120 = vmatprep.subr.mxu0 0.0
    %4121 = vmatpush1.msra.mxu0 0.0
    %4122 = vmatprep.subr.mxu0 0.0
    %4123 = vmatpush1.msra.mxu0 0.0
    %4124 = vmatprep.subr.mxu0 0.0
    %4125 = vmatpush1.msra.mxu0 0.0
    %4126 = vmatprep.subr.mxu0 0.0
    %4127 = vmatpush1.msra.mxu0 0.0
    %4128 = vmatprep.subr.mxu0 0.0
    %4129 = vmatpush1.msra.mxu0 0.0
    %4130 = vmatprep.subr.mxu0 0.0
    %4131 = vmatpush1.msra.mxu0 0.0
    %4132 = vmatprep.subr.mxu0 0.0
    %4133 = vmatpush1.msra.mxu0 0.0
    %4134 = vmatprep.subr.mxu0 0.0
    %4135 = vmatpush1.msra.mxu0 0.0
    %4136 = vmatprep.subr.mxu0 0.0
    %4137 = vmatpush1.msra.mxu0 0.0
    %4138 = vmatprep.subr.mxu0 0.0
    %4139 = vmatpush1.msra.mxu0 0.0
    %4140 = vmatprep.subr.mxu0 0.0
    %4141 = vmatpush1.msra.mxu0 0.0
    %4142 = vmatprep.subr.mxu0 0.0
    %4143 = vmatpush1.msra.mxu0 0.0
    %4144 = vmatprep.subr.mxu0 0.0
    %4145 = vmatpush1.msra.mxu0 0.0
    %4146 = vmatprep.subr.mxu0 0.0
    %4147 = vmatpush1.msra.mxu0 0.0
    %4148 = vmatprep.subr.mxu0 0.0
    %4149 = vmatpush1.msra.mxu0 0.0
    %4150 = vmatprep.subr.mxu0 0.0
    %4151 = vmatpush1.msra.mxu0 0.0
    %4152 = vmatprep.subr.mxu0 0.0
    %4153 = vmatpush1.msra.mxu0 0.0
    %4154 = vmatprep.subr.mxu0 0.0
    %4155 = vmatpush1.msra.mxu0 0.0
    %4156 = vmatprep.subr.mxu0 0.0
    %4157 = vmatpush1.msra.mxu0 0.0
    %4158 = vmatprep.subr.mxu0 0.0
    %4159 = vmatpush1.msra.mxu0 0.0
    %4160 = vmatprep.subr.mxu0 0.0
    %4161 = vmatpush1.msra.mxu0 0.0
    %4162 = vmatprep.subr.mxu0 0.0
    %4163 = vmatpush1.msra.mxu0 0.0
    %4164 = vmatprep.subr.mxu0 0.0
    %4165 = vmatpush1.msra.mxu0 0.0
    %4166 = vmatprep.subr.mxu0 0.0
    %4167 = vmatpush1.msra.mxu0 0.0
    %4168 = vmatprep.mubr.f32.mxu0 0.0
    %v4169 = vand.u32 %v3892, 4294901760
    %v4170 = vsub.f32 %v3892, %v4169
    %4171 = vmatmul.mubr.f32.gmra.mrb[0].mxu0 %v4170
    %v4172 = vpop.f32.mrb[0].mxu0
    %v4173 = vadd.f32 %v4085, %v4172
    %v4174 = vpop.f32.mrb[0].mxu0
    %4175 = vdwg.mxu0
    %4176 = vmatprep.subr.mxu0 0.0
    %v4177 = vand.u32 %v3875, 4294901760
    %4178 = vmatpush1.msra.mxu0 %v4177
    %4179 = vmatprep.subr.mxu0 0.0
    %v4180 = vand.u32 %v3876, 4294901760
    %4181 = vmatpush1.msra.mxu0 %v4180
    %4182 = vmatprep.subr.mxu0 0.0
    %v4183 = vand.u32 %v3877, 4294901760
    %4184 = vmatpush1.msra.mxu0 %v4183
    %4185 = vmatprep.subr.mxu0 0.0
    %v4186 = vand.u32 %v3878, 4294901760
    %4187 = vmatpush1.msra.mxu0 %v4186
    %4188 = vmatprep.subr.mxu0 0.0
    %v4189 = vand.u32 %v3879, 4294901760
    %4190 = vmatpush1.msra.mxu0 %v4189
    %4191 = vmatprep.subr.mxu0 0.0
    %v4192 = vand.u32 %v3880, 4294901760
    %4193 = vmatpush1.msra.mxu0 %v4192
    %4194 = vmatprep.subr.mxu0 0.0
    %v4195 = vand.u32 %v3881, 4294901760
    %4196 = vmatpush1.msra.mxu0 %v4195
    %4197 = vmatprep.subr.mxu0 0.0
    %v4198 = vand.u32 %v3882, 4294901760
    %4199 = vmatpush1.msra.mxu0 %v4198
    %4200 = vmatprep.subr.mxu0 0.0
    %4201 = vmatpush1.msra.mxu0 0.0
    %4202 = vmatprep.subr.mxu0 0.0
    %4203 = vmatpush1.msra.mxu0 0.0
    %4204 = vmatprep.subr.mxu0 0.0
    %4205 = vmatpush1.msra.mxu0 0.0
    %4206 = vmatprep.subr.mxu0 0.0
    %4207 = vmatpush1.msra.mxu0 0.0
    %4208 = vmatprep.subr.mxu0 0.0
    %4209 = vmatpush1.msra.mxu0 0.0
    %4210 = vmatprep.subr.mxu0 0.0
    %4211 = vmatpush1.msra.mxu0 0.0
    %4212 = vmatprep.subr.mxu0 0.0
    %4213 = vmatpush1.msra.mxu0 0.0
    %4214 = vmatprep.subr.mxu0 0.0
    %4215 = vmatpush1.msra.mxu0 0.0
    %4216 = vmatprep.subr.mxu0 0.0
    %4217 = vmatpush1.msra.mxu0 0.0
    %4218 = vmatprep.subr.mxu0 0.0
    %4219 = vmatpush1.msra.mxu0 0.0
    %4220 = vmatprep.subr.mxu0 0.0
    %4221 = vmatpush1.msra.mxu0 0.0
    %4222 = vmatprep.subr.mxu0 0.0
    %4223 = vmatpush1.msra.mxu0 0.0
    %4224 = vmatprep.subr.mxu0 0.0
    %4225 = vmatpush1.msra.mxu0 0.0
    %4226 = vmatprep.subr.mxu0 0.0
    %4227 = vmatpush1.msra.mxu0 0.0
    %4228 = vmatprep.subr.mxu0 0.0
    %4229 = vmatpush1.msra.mxu0 0.0
    %4230 = vmatprep.subr.mxu0 0.0
    %4231 = vmatpush1.msra.mxu0 0.0
    %4232 = vmatprep.subr.mxu0 0.0
    %4233 = vmatpush1.msra.mxu0 0.0
    %4234 = vmatprep.subr.mxu0 0.0
    %4235 = vmatpush1.msra.mxu0 0.0
    %4236 = vmatprep.subr.mxu0 0.0
    %4237 = vmatpush1.msra.mxu0 0.0
    %4238 = vmatprep.subr.mxu0 0.0
    %4239 = vmatpush1.msra.mxu0 0.0
    %4240 = vmatprep.subr.mxu0 0.0
    %4241 = vmatpush1.msra.mxu0 0.0
    %4242 = vmatprep.subr.mxu0 0.0
    %4243 = vmatpush1.msra.mxu0 0.0
    %4244 = vmatprep.subr.mxu0 0.0
    %4245 = vmatpush1.msra.mxu0 0.0
    %4246 = vmatprep.subr.mxu0 0.0
    %4247 = vmatpush1.msra.mxu0 0.0
    %4248 = vmatprep.mubr.f32.mxu0 0.0
    %v4249 = vand.u32 %v3892, 4294901760
    %v4250 = vsub.f32 %v3892, %v4249
    %v4251 = vand.u32 %v4250, 4294901760
    %4252 = vmatmul.mubr.f32.gmra.mrb[0].mxu0 %v4251
    %v4253 = vpop.f32.mrb[0].mxu0
    %v4254 = vadd.f32 %v4173, %v4253
    %v4255 = vpop.f32.mrb[0].mxu0
    %4256 = vdwg.mxu0
    %4257 = vmatprep.subr.mxu0 0.0
    %v4258 = vand.u32 %v3875, 4294901760
    %v4259 = vsub.f32 %v3875, %v4258
    %v4260 = vand.u32 %v4259, 4294901760
    %4261 = vmatpush1.msra.mxu0 %v4260
    %4262 = vmatprep.subr.mxu0 0.0
    %v4263 = vand.u32 %v3876, 4294901760
    %v4264 = vsub.f32 %v3876, %v4263
    %v4265 = vand.u32 %v4264, 4294901760
    %4266 = vmatpush1.msra.mxu0 %v4265
    %4267 = vmatprep.subr.mxu0 0.0
    %v4268 = vand.u32 %v3877, 4294901760
    %v4269 = vsub.f32 %v3877, %v4268
    %v4270 = vand.u32 %v4269, 4294901760
    %4271 = vmatpush1.msra.mxu0 %v4270
    %4272 = vmatprep.subr.mxu0 0.0
    %v4273 = vand.u32 %v3878, 4294901760
    %v4274 = vsub.f32 %v3878, %v4273
    %v4275 = vand.u32 %v4274, 4294901760
    %4276 = vmatpush1.msra.mxu0 %v4275
    %4277 = vmatprep.subr.mxu0 0.0
    %v4278 = vand.u32 %v3879, 4294901760
    %v4279 = vsub.f32 %v3879, %v4278
    %v4280 = vand.u32 %v4279, 4294901760
    %4281 = vmatpush1.msra.mxu0 %v4280
    %4282 = vmatprep.subr.mxu0 0.0
    %v4283 = vand.u32 %v3880, 4294901760
    %v4284 = vsub.f32 %v3880, %v4283
    %v4285 = vand.u32 %v4284, 4294901760
    %4286 = vmatpush1.msra.mxu0 %v4285
    %4287 = vmatprep.subr.mxu0 0.0
    %v4288 = vand.u32 %v3881, 4294901760
    %v4289 = vsub.f32 %v3881, %v4288
    %v4290 = vand.u32 %v4289, 4294901760
    %4291 = vmatpush1.msra.mxu0 %v4290
    %4292 = vmatprep.subr.mxu0 0.0
    %v4293 = vand.u32 %v3882, 4294901760
    %v4294 = vsub.f32 %v3882, %v4293
    %v4295 = vand.u32 %v4294, 4294901760
    %4296 = vmatpush1.msra.mxu0 %v4295
    %4297 = vmatprep.subr.mxu0 0.0
    %4298 = vmatpush1.msra.mxu0 0.0
    %4299 = vmatprep.subr.mxu0 0.0
    %4300 = vmatpush1.msra.mxu0 0.0
    %4301 = vmatprep.subr.mxu0 0.0
    %4302 = vmatpush1.msra.mxu0 0.0
    %4303 = vmatprep.subr.mxu0 0.0
    %4304 = vmatpush1.msra.mxu0 0.0
    %4305 = vmatprep.subr.mxu0 0.0
    %4306 = vmatpush1.msra.mxu0 0.0
    %4307 = vmatprep.subr.mxu0 0.0
    %4308 = vmatpush1.msra.mxu0 0.0
    %4309 = vmatprep.subr.mxu0 0.0
    %4310 = vmatpush1.msra.mxu0 0.0
    %4311 = vmatprep.subr.mxu0 0.0
    %4312 = vmatpush1.msra.mxu0 0.0
    %4313 = vmatprep.subr.mxu0 0.0
    %4314 = vmatpush1.msra.mxu0 0.0
    %4315 = vmatprep.subr.mxu0 0.0
    %4316 = vmatpush1.msra.mxu0 0.0
    %4317 = vmatprep.subr.mxu0 0.0
    %4318 = vmatpush1.msra.mxu0 0.0
    %4319 = vmatprep.subr.mxu0 0.0
    %4320 = vmatpush1.msra.mxu0 0.0
    %4321 = vmatprep.subr.mxu0 0.0
    %4322 = vmatpush1.msra.mxu0 0.0
    %4323 = vmatprep.subr.mxu0 0.0
    %4324 = vmatpush1.msra.mxu0 0.0
    %4325 = vmatprep.subr.mxu0 0.0
    %4326 = vmatpush1.msra.mxu0 0.0
    %4327 = vmatprep.subr.mxu0 0.0
    %4328 = vmatpush1.msra.mxu0 0.0
    %4329 = vmatprep.subr.mxu0 0.0
    %4330 = vmatpush1.msra.mxu0 0.0
    %4331 = vmatprep.subr.mxu0 0.0
    %4332 = vmatpush1.msra.mxu0 0.0
    %4333 = vmatprep.subr.mxu0 0.0
    %4334 = vmatpush1.msra.mxu0 0.0
    %4335 = vmatprep.subr.mxu0 0.0
    %4336 = vmatpush1.msra.mxu0 0.0
    %4337 = vmatprep.subr.mxu0 0.0
    %4338 = vmatpush1.msra.mxu0 0.0
    %4339 = vmatprep.subr.mxu0 0.0
    %4340 = vmatpush1.msra.mxu0 0.0
    %4341 = vmatprep.subr.mxu0 0.0
    %4342 = vmatpush1.msra.mxu0 0.0
    %4343 = vmatprep.subr.mxu0 0.0
    %4344 = vmatpush1.msra.mxu0 0.0
    %4345 = vmatprep.mubr.f32.mxu0 0.0
    %v4346 = vand.u32 %v3892, 4294901760
    %4347 = vmatmul.mubr.f32.gmra.mrb[0].mxu0 %v4346
    %v4348 = vpop.f32.mrb[0].mxu0
    %v4349 = vadd.f32 %v4254, %v4348
    %v4350 = vpop.f32.mrb[0].mxu0
    %4351 = vdwg.mxu0
    %4352 = vmatprep.subr.mxu0 0.0
    %v4353 = vand.u32 %v3875, 4294901760
    %4354 = vmatpush1.msra.mxu0 %v4353
    %4355 = vmatprep.subr.mxu0 0.0
    %v4356 = vand.u32 %v3876, 4294901760
    %4357 = vmatpush1.msra.mxu0 %v4356
    %4358 = vmatprep.subr.mxu0 0.0
    %v4359 = vand.u32 %v3877, 4294901760
    %4360 = vmatpush1.msra.mxu0 %v4359
    %4361 = vmatprep.subr.mxu0 0.0
    %v4362 = vand.u32 %v3878, 4294901760
    %4363 = vmatpush1.msra.mxu0 %v4362
    %4364 = vmatprep.subr.mxu0 0.0
    %v4365 = vand.u32 %v3879, 4294901760
    %4366 = vmatpush1.msra.mxu0 %v4365
    %4367 = vmatprep.subr.mxu0 0.0
    %v4368 = vand.u32 %v3880, 4294901760
    %4369 = vmatpush1.msra.mxu0 %v4368
    %4370 = vmatprep.subr.mxu0 0.0
    %v4371 = vand.u32 %v3881, 4294901760
    %4372 = vmatpush1.msra.mxu0 %v4371
    %4373 = vmatprep.subr.mxu0 0.0
    %v4374 = vand.u32 %v3882, 4294901760
    %4375 = vmatpush1.msra.mxu0 %v4374
    %4376 = vmatprep.subr.mxu0 0.0
    %4377 = vmatpush1.msra.mxu0 0.0
    %4378 = vmatprep.subr.mxu0 0.0
    %4379 = vmatpush1.msra.mxu0 0.0
    %4380 = vmatprep.subr.mxu0 0.0
    %4381 = vmatpush1.msra.mxu0 0.0
    %4382 = vmatprep.subr.mxu0 0.0
    %4383 = vmatpush1.msra.mxu0 0.0
    %4384 = vmatprep.subr.mxu0 0.0
    %4385 = vmatpush1.msra.mxu0 0.0
    %4386 = vmatprep.subr.mxu0 0.0
    %4387 = vmatpush1.msra.mxu0 0.0
    %4388 = vmatprep.subr.mxu0 0.0
    %4389 = vmatpush1.msra.mxu0 0.0
    %4390 = vmatprep.subr.mxu0 0.0
    %4391 = vmatpush1.msra.mxu0 0.0
    %4392 = vmatprep.subr.mxu0 0.0
    %4393 = vmatpush1.msra.mxu0 0.0
    %4394 = vmatprep.subr.mxu0 0.0
    %4395 = vmatpush1.msra.mxu0 0.0
    %4396 = vmatprep.subr.mxu0 0.0
    %4397 = vmatpush1.msra.mxu0 0.0
    %4398 = vmatprep.subr.mxu0 0.0
    %4399 = vmatpush1.msra.mxu0 0.0
    %4400 = vmatprep.subr.mxu0 0.0
    %4401 = vmatpush1.msra.mxu0 0.0
    %4402 = vmatprep.subr.mxu0 0.0
    %4403 = vmatpush1.msra.mxu0 0.0
    %4404 = vmatprep.subr.mxu0 0.0
    %4405 = vmatpush1.msra.mxu0 0.0
    %4406 = vmatprep.subr.mxu0 0.0
    %4407 = vmatpush1.msra.mxu0 0.0
    %4408 = vmatprep.subr.mxu0 0.0
    %4409 = vmatpush1.msra.mxu0 0.0
    %4410 = vmatprep.subr.mxu0 0.0
    %4411 = vmatpush1.msra.mxu0 0.0
    %4412 = vmatprep.subr.mxu0 0.0
    %4413 = vmatpush1.msra.mxu0 0.0
    %4414 = vmatprep.subr.mxu0 0.0
    %4415 = vmatpush1.msra.mxu0 0.0
    %4416 = vmatprep.subr.mxu0 0.0
    %4417 = vmatpush1.msra.mxu0 0.0
    %4418 = vmatprep.subr.mxu0 0.0
    %4419 = vmatpush1.msra.mxu0 0.0
    %4420 = vmatprep.subr.mxu0 0.0
    %4421 = vmatpush1.msra.mxu0 0.0
    %4422 = vmatprep.subr.mxu0 0.0
    %4423 = vmatpush1.msra.mxu0 0.0
    %4424 = vmatprep.mubr.f32.mxu0 0.0
    %v4425 = vand.u32 %v3892, 4294901760
    %4426 = vmatmul.mubr.f32.gmra.mrb[0].mxu0 %v4425
    %v4427 = vpop.f32.mrb[0].mxu0
    %v4428 = vadd.f32 %v4349, %v4427
    %v4429 = vpop.f32.mrb[0].mxu0
    %4430 = vdwg.mxu0
    %vm4431 = vcmask 162816
    %4432 = vst.msk [vmem:[%s7] sm:$0xff] %vm4431, %v4428
    // Predicated region
    $region34: #{mnist_encoder.1} parent=1 // pred_check
      _
    $region35: #{mnist_encoder.1} parent=1 // pred_check_branch
      %4434 = sbr.rel (0) target = $region37
    $region36: #{mnist_encoder.1} parent=1 // pred_region
      _
    $region37: #{mnist_encoder.1} parent=1 // pred_fallthru
      _
    // Predicated region
    $region38: #{mnist_encoder.1} parent=1 // pred_check
      _
    $region39: #{mnist_encoder.1} parent=1 // pred_check_branch
      %4436 = sbr.rel (0) target = $region41
    $region40: #{mnist_encoder.1} parent=1 // pred_region
      _
    $region41: #{mnist_encoder.1} parent=1 // pred_fallthru
      _
    %4437 = vsyncpa [#allocation3], 1

</llo_original>
